<compile_context>
chip_gen: v5e
topology: v5e:2x2
jax: 0.10.0
libtpu: 0.0.40
codegen_flags: <defaults>
</compile_context>

<pallas_src>
import functools

import numpy as np

import jax
import jax.numpy as jnp
from jax.experimental import pallas as pl
from jax.experimental.pallas import tpu as pltpu


# ---------------------------------------------------------------------------
# Kernel
# ---------------------------------------------------------------------------
def _bottleneck_kernel(NB, D, H, W, P, Cin, Cout,
                       x_ref, w1_ref, b1_ref, w2_ref, b2_ref, w3_ref, b3_ref,
                       o_ref, pad_ref):
    DH = D * H
    WP = W * P
    M = NB * DH

    # conv1 (1x1x1) + folded BN1 (scale already in weight columns) + ReLU.
    # x is read here for conv1 only; it is re-read at the residual add so the
    # (M, W*Cin) value is not kept live across all three matmuls.
    x1 = x_ref[...].reshape(M, W * Cin)                       # bf16
    h1 = jnp.dot(x1, w1_ref[...], preferred_element_type=jnp.float32)
    h1 = jnp.maximum(h1 + b1_ref[...], 0.0)                   # (M, WP) f32

    # Stage h1 into a (d, h) zero-halo bf16 volume.  Lane-aligned (offset-0)
    # interior store; only the halo planes/rows are zeroed (interior is fully
    # overwritten every grid step, and the W halo lives in the weight band).
    pad_ref[:, 0:1, :, :] = jnp.zeros((NB, 1, H + 2, WP), jnp.bfloat16)
    pad_ref[:, D + 1:D + 2, :, :] = jnp.zeros((NB, 1, H + 2, WP), jnp.bfloat16)
    pad_ref[:, 1:D + 1, 0:1, :] = jnp.zeros((NB, D, 1, WP), jnp.bfloat16)
    pad_ref[:, 1:D + 1, H + 1:H + 2, :] = jnp.zeros((NB, D, 1, WP), jnp.bfloat16)
    pad_ref[:, 1:D + 1, 1:H + 1, :] = (
        h1.astype(jnp.bfloat16).reshape(NB, D, H, WP))

    # conv2 (3x3x3, stride 1, pad 1): 9 accumulated MXU matmuls.  The kw taps
    # and the left/right W padding are folded into the banded per-tap weight
    # w2_ref[t] of shape (WP, WP); the (kd, kh) shifts are static slices of the
    # zero-halo scratch.
    acc = jnp.zeros((M, WP), jnp.float32)
    for kd in range(3):
        for kh in range(3):
            t = kd * 3 + kh
            slab = pad_ref[:, kd:kd + D, kh:kh + H, :].reshape(M, WP)
            acc = acc + jnp.dot(slab, w2_ref[t],
                                preferred_element_type=jnp.float32)
    h2 = jnp.maximum(acc + b2_ref[...], 0.0)                  # (M, WP) f32

    # conv3 (1x1x1) + folded BN3 + identity residual + ReLU (lane-dense store).
    h3 = jnp.dot(h2.astype(jnp.bfloat16), w3_ref[...],
                 preferred_element_type=jnp.float32)          # (M, W*Cout)
    res = x_ref[...].reshape(M, W * Cout).astype(jnp.float32)  # cheap re-read
    out = jnp.maximum(h3 + b3_ref[...] + res, 0.0)
    o_ref[...] = out.astype(o_ref.dtype).reshape(NB, DH, W * Cout)


# ---------------------------------------------------------------------------
# Host-side weight repacking into lane-dense "line" operands.
# BN scales are folded into the weight columns (before the bf16 cast).
# ---------------------------------------------------------------------------
def _build_line_weights(w1, w2_5d, w3, s1, s2, s3, W):
    w1 = np.asarray(w1, np.float32) * np.asarray(s1, np.float32)[None, :]
    w3 = np.asarray(w3, np.float32) * np.asarray(s3, np.float32)[None, :]
    w2 = (np.asarray(w2_5d, np.float32)                        # (3,3,3,ci,co)
          * np.asarray(s2, np.float32)[None, None, None, None, :])
    Cin, P = w1.shape
    WP = W * P
    eye = np.eye(W, dtype=np.float32)
    W1L = np.kron(eye, w1)                                     # (W*Cin, W*P)
    W3L = np.kron(eye, w3)                                     # (W*P, W*Cout)
    # Banded per-(kd,kh) conv2 weight (WP, WP): for output block w and tap kw,
    # the input block is r = w + kw - 1; out-of-range r (the W halo) is simply
    # omitted, so the scratch never needs lane padding.
    W2L = np.zeros((9, WP, WP), np.float32)
    for kd in range(3):
        for kh in range(3):
            t = kd * 3 + kh
            for kw in range(3):
                for w in range(W):
                    r = w + kw - 1
                    if 0 <= r < W:
                        W2L[t, r * P:(r + 1) * P, w * P:(w + 1) * P] = w2[kd, kh, kw]
    return W1L, W2L, W3L


def _pick_block_batch(N, nb_target):
    nb = max(1, min(nb_target, N))
    if N >= 2:
        nb = min(nb, max(1, N // 2))   # keep >= 2 grid steps so both TCs work
    while N % nb:
        nb -= 1
    return nb


# ---------------------------------------------------------------------------
# Wrapper
# ---------------------------------------------------------------------------
def bottleneck_pallas(x_ndhwc, w1, w2_5d, w3, s1, b1, s2, b2, s3, b3,
                      *, nb_target=8):
    N, D, H, W, Cin = x_ndhwc.shape
    P = w1.shape[1]
    Cout = w3.shape[1]
    assert Cin == Cout, "identity residual requires in_planes == planes*expansion"
    DH = D * H
    WP = W * P
    NB = _pick_block_batch(N, nb_target)

    W1L_np, W2L_np, W3L_np = _build_line_weights(w1, w2_5d, w3, s1, s2, s3, W)
    W1L = jnp.asarray(W1L_np, jnp.bfloat16)
    W2L = jnp.asarray(W2L_np, jnp.bfloat16)
    W3L = jnp.asarray(W3L_np, jnp.bfloat16)

    def tile_bias(b):                       # per-channel -> per-(w, channel)
        return jnp.tile(jnp.asarray(b, jnp.float32).reshape(-1), W)[None, :]

    b1L, b2L, b3L = tile_bias(b1), tile_bias(b2), tile_bias(b3)   # f32

    # Lane-dense bf16 "line" view of the activations: (N, D*H, W*C).
    x_lines = x_ndhwc.reshape(N, DH, W * Cin).astype(jnp.bfloat16)

    kernel = functools.partial(_bottleneck_kernel, NB, D, H, W, P, Cin, Cout)

    # Actual MXU MACs (W folded into K) and actual bytes moved.
    flops = 2 * N * DH * (W * Cin * WP + 9 * WP * WP + WP * W * Cout)
    bytes_accessed = (2 * N * DH * (W * Cin + W * Cout)
                      + 2 * (int(W1L.size) + int(W2L.size) + int(W3L.size))
                      + 4 * (int(b1L.size) + int(b2L.size) + int(b3L.size)))

    c2 = lambda n: (0, 0)                   # weights / biases stay resident
    c3 = lambda n: (0, 0, 0)
    grid_spec = pltpu.PrefetchScalarGridSpec(
        num_scalar_prefetch=0,
        grid=(N // NB,),
        in_specs=[
            pl.BlockSpec((NB, DH, W * Cin), lambda n: (n, 0, 0)),   # x block
            pl.BlockSpec((W * Cin, WP), c2),                        # W1 (scaled)
            pl.BlockSpec((1, WP), c2),                              # b1
            pl.BlockSpec((9, WP, WP), c3),                          # W2 band (scaled)
            pl.BlockSpec((1, WP), c2),                              # b2
            pl.BlockSpec((WP, W * Cout), c2),                       # W3 (scaled)
            pl.BlockSpec((1, W * Cout), c2),                        # b3
        ],
        out_specs=pl.BlockSpec((NB, DH, W * Cout), lambda n: (n, 0, 0)),
        scratch_shapes=[pltpu.VMEM((NB, D + 2, H + 2, WP), jnp.bfloat16)],
    )

    out_lines = pl.pallas_call(
        kernel,
        out_shape=jax.ShapeDtypeStruct((N, DH, W * Cout), jnp.bfloat16),
        grid_spec=grid_spec,
        compiler_params=pltpu.CompilerParams(
            dimension_semantics=("parallel",),
            vmem_limit_bytes=32 * 1024 * 1024,
        ),
        cost_estimate=pl.CostEstimate(
            flops=int(flops), transcendentals=0,
            bytes_accessed=int(bytes_accessed)),
    )(x_lines, W1L, b1L, W2L, b2L, W3L, b3L)

    return out_lines.reshape(N, D, H, W, Cout)


# ---------------------------------------------------------------------------
# Pure-JAX reference with the SAME numerics contract as the kernel:
# bf16 activation I/O, BN scale folded into bf16 weights, f32 accumulation,
# f32 bias/ReLU/residual, bf16 output.
# ---------------------------------------------------------------------------
def bottleneck_reference(x, w1, w2_5d, w3, s1, b1, s2, b2, s3, b3):
    f32, bf16 = jnp.float32, jnp.bfloat16
    N, D, H, W, Cin = x.shape
    xb = x.astype(bf16)
    w1s = (w1 * s1[None, :]).astype(bf16)
    w3s = (w3 * s3[None, :]).astype(bf16)
    h = jnp.einsum('ndhwc,cp->ndhwp', xb, w1s, preferred_element_type=f32)
    h = jnp.maximum(h + b1, 0.0)
    hp = jnp.pad(h.astype(bf16), ((0, 0), (1, 1), (1, 1), (1, 1), (0, 0)))
    acc = jnp.zeros(h.shape[:-1] + (w2_5d.shape[-1],), f32)
    for kd in range(3):
        for kh in range(3):
            for kw in range(3):
                w2s = (w2_5d[kd, kh, kw] * s2[None, :]).astype(bf16)
                acc = acc + jnp.einsum(
                    'ndhwc,cp->ndhwp',
                    hp[:, kd:kd + D, kh:kh + H, kw:kw + W, :], w2s,
                    preferred_element_type=f32)
    h = jnp.maximum(acc + b2, 0.0)
    h = jnp.einsum('ndhwp,po->ndhwo', h.astype(bf16), w3s,
                   preferred_element_type=f32)
    out = jnp.maximum(h + b3 + xb.astype(f32), 0.0)
    return out.astype(bf16)


def _fold_bn(gamma, beta, mean, var, eps=1e-5):
    scale = gamma / jnp.sqrt(var + eps)
    bias = beta - mean * scale
    return scale.astype(jnp.float32), bias.astype(jnp.float32)


# ---------------------------------------------------------------------------
# Example / self-check
# ---------------------------------------------------------------------------
if __name__ == "__main__":
    # Bottleneck(in_planes=32, planes=8): expansion=4 -> out channels 32 ==
    # in_planes, so the identity residual is valid (downsample=None, stride=1).
    N, D, H, W = 4, 8, 8, 8
    planes = 8
    in_planes = planes * 4      # 32
    out_planes = planes * 4     # 32

    key = jax.random.PRNGKey(0)
    ks = jax.random.split(key, 16)

    # Input in PyTorch NCDHW layout, converted to channels-last NDHWC.
    x_ncdhw = jax.random.normal(ks[0], (N, in_planes, D, H, W), jnp.float32)
    x_ndhwc = jnp.transpose(x_ncdhw, (0, 2, 3, 4, 1))

    # Conv weights in matmul-friendly layouts (PyTorch Conv3d (co,ci,kd,kh,kw)
    # maps to w1/w3: (ci,co); w2_5d: (kd,kh,kw,ci,co)).
    w1 = jax.random.normal(ks[1], (in_planes, planes), jnp.float32) / jnp.sqrt(in_planes)
    w2_5d = jax.random.normal(ks[2], (3, 3, 3, planes, planes), jnp.float32) / jnp.sqrt(27.0 * planes)
    w3 = jax.random.normal(ks[3], (planes, out_planes), jnp.float32) / jnp.sqrt(planes)

    # BatchNorm parameters (eval mode), folded into per-channel scale/bias.
    def bn_params(kg, kb, km, kv, c):
        gamma = 1.0 + 0.1 * jax.random.normal(kg, (c,), jnp.float32)
        beta = 0.1 * jax.random.normal(kb, (c,), jnp.float32)
        mean = 0.1 * jax.random.normal(km, (c,), jnp.float32)
        var = 0.5 + jnp.abs(jax.random.normal(kv, (c,), jnp.float32)) * 0.5
        return _fold_bn(gamma, beta, mean, var)

    s1, b1 = bn_params(ks[4], ks[5], ks[6], ks[7], planes)
    s2, b2 = bn_params(ks[8], ks[9], ks[10], ks[11], planes)
    s3, b3 = bn_params(ks[12], ks[13], ks[14], ks[15], out_planes)

    out = bottleneck_pallas(x_ndhwc, w1, w2_5d, w3, s1, b1, s2, b2, s3, b3)
    out = jax.block_until_ready(out)

    ref = bottleneck_reference(x_ndhwc, w1, w2_5d, w3, s1, b1, s2, b2, s3, b3)
    assert out.shape == (N, D, H, W, out_planes)
    assert jnp.allclose(out.astype(jnp.float32), ref.astype(jnp.float32),
                        atol=3e-2, rtol=3e-2), "kernel != reference"

    print("KERNEL_OK")
</pallas_src>

<mosaic_0001>
module attributes {stable_mosaic.version = 11 : i64} {
  func.func @_bottleneck_kernel(%arg0: i32, %arg1: memref<2x64x256xbf16, #tpu.memory_space<vmem>>, %arg2: memref<256x64xbf16, #tpu.memory_space<vmem>>, %arg3: memref<1x64xf32, #tpu.memory_space<vmem>>, %arg4: memref<9x64x64xbf16, #tpu.memory_space<vmem>>, %arg5: memref<1x64xf32, #tpu.memory_space<vmem>>, %arg6: memref<64x256xbf16, #tpu.memory_space<vmem>>, %arg7: memref<1x256xf32, #tpu.memory_space<vmem>>, %arg8: memref<2x64x256xbf16, #tpu.memory_space<vmem>>, %arg9: memref<2x10x10x64xbf16, #tpu.memory_space<vmem>>) attributes {dimension_semantics = [#tpu.dimension_semantics<parallel>], iteration_bounds = array<i64: 2>, scalar_prefetch = 0 : i64, scratch_operands = 1 : i64, tpu.core_type = #tpu.core_type<tc>, window_params = [{transform_indices = @transform_0, window_bounds = array<i64: 2, 64, 256>}, {pipeline_mode = #tpu.pipeline_mode<synchronous>, transform_indices = @transform_1, window_bounds = array<i64: 256, 64>}, {pipeline_mode = #tpu.pipeline_mode<synchronous>, transform_indices = @transform_2, window_bounds = array<i64: 1, 64>}, {pipeline_mode = #tpu.pipeline_mode<synchronous>, transform_indices = @transform_3, window_bounds = array<i64: 9, 64, 64>}, {pipeline_mode = #tpu.pipeline_mode<synchronous>, transform_indices = @transform_4, window_bounds = array<i64: 1, 64>}, {pipeline_mode = #tpu.pipeline_mode<synchronous>, transform_indices = @transform_5, window_bounds = array<i64: 64, 256>}, {pipeline_mode = #tpu.pipeline_mode<synchronous>, transform_indices = @transform_6, window_bounds = array<i64: 1, 256>}, {transform_indices = @transform_7, window_bounds = array<i64: 2, 64, 256>}]} {
    %c0 = arith.constant 0 : index
    %c0_0 = arith.constant 0 : index
    %c0_1 = arith.constant 0 : index
    %0 = vector.load %arg1[%c0, %c0_0, %c0_1] : memref<2x64x256xbf16, #tpu.memory_space<vmem>>, vector<2x64x256xbf16>
    %1 = vector.shape_cast %0 : vector<2x64x256xbf16> to vector<128x256xbf16>
    %c0_2 = arith.constant 0 : index
    %c0_3 = arith.constant 0 : index
    %2 = vector.load %arg2[%c0_2, %c0_3] : memref<256x64xbf16, #tpu.memory_space<vmem>>, vector<256x64xbf16>
    %cst = arith.constant dense<0.000000e+00> : vector<128x64xf32>
    %3 = tpu.matmul %1, %2, %cst {dimension_numbers = #tpu.dot_dimension_numbers<[1], [0], [0], [1], [0, 0, 1, 1], [], []>} : vector<128x256xbf16>, vector<256x64xbf16>, vector<128x64xf32> -> vector<128x64xf32>
    %c0_4 = arith.constant 0 : index
    %c0_5 = arith.constant 0 : index
    %4 = vector.load %arg3[%c0_4, %c0_5] : memref<1x64xf32, #tpu.memory_space<vmem>>, vector<1x64xf32>
    %5 = vector.broadcast %4 : vector<1x64xf32> to vector<128x64xf32>
    %6 = arith.addf %3, %5 : vector<128x64xf32>
    %cst_6 = arith.constant 0.000000e+00 : f32
    %7 = vector.broadcast %cst_6 : f32 to vector<128x64xf32>
    %8 = arith.maximumf %6, %7 : vector<128x64xf32>
    %cst_7 = arith.constant 0.000000e+00 : bf16
    %9 = vector.broadcast %cst_7 : bf16 to vector<2x1x10x64xbf16>
    %c0_8 = arith.constant 0 : index
    %c0_9 = arith.constant 0 : index
    %c0_10 = arith.constant 0 : index
    %c0_11 = arith.constant 0 : index
    %10 = vector.load %arg9[%c0_8, %c0_9, %c0_10, %c0_11] : memref<2x10x10x64xbf16, #tpu.memory_space<vmem>>, vector<2x1x10x64xbf16>
    tpu.vector_store %arg9[%c0_8, %c0_9, %c0_10, %c0_11], %9 {strides = array<i32>} : memref<2x10x10x64xbf16, #tpu.memory_space<vmem>>, vector<2x1x10x64xbf16>,
    %cst_12 = arith.constant 0.000000e+00 : bf16
    %11 = vector.broadcast %cst_12 : bf16 to vector<2x1x10x64xbf16>
    %c0_13 = arith.constant 0 : index
    %c9 = arith.constant 9 : index
    %c0_14 = arith.constant 0 : index
    %c0_15 = arith.constant 0 : index
    %12 = vector.load %arg9[%c0_13, %c9, %c0_14, %c0_15] : memref<2x10x10x64xbf16, #tpu.memory_space<vmem>>, vector<2x1x10x64xbf16>
    tpu.vector_store %arg9[%c0_13, %c9, %c0_14, %c0_15], %11 {strides = array<i32>} : memref<2x10x10x64xbf16, #tpu.memory_space<vmem>>, vector<2x1x10x64xbf16>,
    %cst_16 = arith.constant 0.000000e+00 : bf16
    %13 = vector.broadcast %cst_16 : bf16 to vector<2x8x1x64xbf16>
    %c0_17 = arith.constant 0 : index
    %c1 = arith.constant 1 : index
    %c0_18 = arith.constant 0 : index
    %c0_19 = arith.constant 0 : index
    %14 = vector.load %arg9[%c0_17, %c1, %c0_18, %c0_19] : memref<2x10x10x64xbf16, #tpu.memory_space<vmem>>, vector<2x8x1x64xbf16>
    tpu.vector_store %arg9[%c0_17, %c1, %c0_18, %c0_19], %13 {strides = array<i32>} : memref<2x10x10x64xbf16, #tpu.memory_space<vmem>>, vector<2x8x1x64xbf16>,
    %cst_20 = arith.constant 0.000000e+00 : bf16
    %15 = vector.broadcast %cst_20 : bf16 to vector<2x8x1x64xbf16>
    %c0_21 = arith.constant 0 : index
    %c1_22 = arith.constant 1 : index
    %c9_23 = arith.constant 9 : index
    %c0_24 = arith.constant 0 : index
    %16 = vector.load %arg9[%c0_21, %c1_22, %c9_23, %c0_24] : memref<2x10x10x64xbf16, #tpu.memory_space<vmem>>, vector<2x8x1x64xbf16>
    tpu.vector_store %arg9[%c0_21, %c1_22, %c9_23, %c0_24], %15 {strides = array<i32>} : memref<2x10x10x64xbf16, #tpu.memory_space<vmem>>, vector<2x8x1x64xbf16>,
    %17 = arith.truncf %8 : vector<128x64xf32> to vector<128x64xbf16>
    %18 = vector.shape_cast %17 : vector<128x64xbf16> to vector<2x8x8x64xbf16>
    %c0_25 = arith.constant 0 : index
    %c1_26 = arith.constant 1 : index
    %c1_27 = arith.constant 1 : index
    %c0_28 = arith.constant 0 : index
    %19 = vector.load %arg9[%c0_25, %c1_26, %c1_27, %c0_28] : memref<2x10x10x64xbf16, #tpu.memory_space<vmem>>, vector<2x8x8x64xbf16>
    tpu.vector_store %arg9[%c0_25, %c1_26, %c1_27, %c0_28], %18 {strides = array<i32>} : memref<2x10x10x64xbf16, #tpu.memory_space<vmem>>, vector<2x8x8x64xbf16>,
    %cst_29 = arith.constant 0.000000e+00 : f32
    %20 = vector.broadcast %cst_29 : f32 to vector<128x64xf32>
    %c0_30 = arith.constant 0 : index
    %c0_31 = arith.constant 0 : index
    %c0_32 = arith.constant 0 : index
    %c0_33 = arith.constant 0 : index
    %21 = vector.load %arg9[%c0_30, %c0_31, %c0_32, %c0_33] : memref<2x10x10x64xbf16, #tpu.memory_space<vmem>>, vector<2x8x8x64xbf16>
    %22 = vector.shape_cast %21 : vector<2x8x8x64xbf16> to vector<128x64xbf16>
    %c0_34 = arith.constant 0 : index
    %c0_35 = arith.constant 0 : index
    %c0_36 = arith.constant 0 : index
    %23 = vector.load %arg4[%c0_34, %c0_35, %c0_36] : memref<9x64x64xbf16, #tpu.memory_space<vmem>>, vector<1x64x64xbf16>
    %24 = vector.shape_cast %23 : vector<1x64x64xbf16> to vector<64x64xbf16>
    %cst_37 = arith.constant dense<0.000000e+00> : vector<128x64xf32>
    %25 = tpu.matmul %22, %24, %cst_37 {dimension_numbers = #tpu.dot_dimension_numbers<[1], [0], [0], [1], [0, 0, 1, 1], [], []>} : vector<128x64xbf16>, vector<64x64xbf16>, vector<128x64xf32> -> vector<128x64xf32>
    %26 = arith.addf %20, %25 : vector<128x64xf32>
    %c0_38 = arith.constant 0 : index
    %c0_39 = arith.constant 0 : index
    %c1_40 = arith.constant 1 : index
    %c0_41 = arith.constant 0 : index
    %27 = vector.load %arg9[%c0_38, %c0_39, %c1_40, %c0_41] : memref<2x10x10x64xbf16, #tpu.memory_space<vmem>>, vector<2x8x8x64xbf16>
    %28 = vector.shape_cast %27 : vector<2x8x8x64xbf16> to vector<128x64xbf16>
    %c1_42 = arith.constant 1 : index
    %c0_43 = arith.constant 0 : index
    %c0_44 = arith.constant 0 : index
    %29 = vector.load %arg4[%c1_42, %c0_43, %c0_44] : memref<9x64x64xbf16, #tpu.memory_space<vmem>>, vector<1x64x64xbf16>
    %30 = vector.shape_cast %29 : vector<1x64x64xbf16> to vector<64x64xbf16>
    %cst_45 = arith.constant dense<0.000000e+00> : vector<128x64xf32>
    %31 = tpu.matmul %28, %30, %cst_45 {dimension_numbers = #tpu.dot_dimension_numbers<[1], [0], [0], [1], [0, 0, 1, 1], [], []>} : vector<128x64xbf16>, vector<64x64xbf16>, vector<128x64xf32> -> vector<128x64xf32>
    %32 = arith.addf %26, %31 : vector<128x64xf32>
    %c0_46 = arith.constant 0 : index
    %c0_47 = arith.constant 0 : index
    %c2 = arith.constant 2 : index
    %c0_48 = arith.constant 0 : index
    %33 = vector.load %arg9[%c0_46, %c0_47, %c2, %c0_48] : memref<2x10x10x64xbf16, #tpu.memory_space<vmem>>, vector<2x8x8x64xbf16>
    %34 = vector.shape_cast %33 : vector<2x8x8x64xbf16> to vector<128x64xbf16>
    %c2_49 = arith.constant 2 : index
    %c0_50 = arith.constant 0 : index
    %c0_51 = arith.constant 0 : index
    %35 = vector.load %arg4[%c2_49, %c0_50, %c0_51] : memref<9x64x64xbf16, #tpu.memory_space<vmem>>, vector<1x64x64xbf16>
    %36 = vector.shape_cast %35 : vector<1x64x64xbf16> to vector<64x64xbf16>
    %cst_52 = arith.constant dense<0.000000e+00> : vector<128x64xf32>
    %37 = tpu.matmul %34, %36, %cst_52 {dimension_numbers = #tpu.dot_dimension_numbers<[1], [0], [0], [1], [0, 0, 1, 1], [], []>} : vector<128x64xbf16>, vector<64x64xbf16>, vector<128x64xf32> -> vector<128x64xf32>
    %38 = arith.addf %32, %37 : vector<128x64xf32>
    %c0_53 = arith.constant 0 : index
    %c1_54 = arith.constant 1 : index
    %c0_55 = arith.constant 0 : index
    %c0_56 = arith.constant 0 : index
    %39 = vector.load %arg9[%c0_53, %c1_54, %c0_55, %c0_56] : memref<2x10x10x64xbf16, #tpu.memory_space<vmem>>, vector<2x8x8x64xbf16>
    %40 = vector.shape_cast %39 : vector<2x8x8x64xbf16> to vector<128x64xbf16>
    %c3 = arith.constant 3 : index
    %c0_57 = arith.constant 0 : index
    %c0_58 = arith.constant 0 : index
    %41 = vector.load %arg4[%c3, %c0_57, %c0_58] : memref<9x64x64xbf16, #tpu.memory_space<vmem>>, vector<1x64x64xbf16>
    %42 = vector.shape_cast %41 : vector<1x64x64xbf16> to vector<64x64xbf16>
    %cst_59 = arith.constant dense<0.000000e+00> : vector<128x64xf32>
    %43 = tpu.matmul %40, %42, %cst_59 {dimension_numbers = #tpu.dot_dimension_numbers<[1], [0], [0], [1], [0, 0, 1, 1], [], []>} : vector<128x64xbf16>, vector<64x64xbf16>, vector<128x64xf32> -> vector<128x64xf32>
    %44 = arith.addf %38, %43 : vector<128x64xf32>
    %c0_60 = arith.constant 0 : index
    %c1_61 = arith.constant 1 : index
    %c1_62 = arith.constant 1 : index
    %c0_63 = arith.constant 0 : index
    %45 = vector.load %arg9[%c0_60, %c1_61, %c1_62, %c0_63] : memref<2x10x10x64xbf16, #tpu.memory_space<vmem>>, vector<2x8x8x64xbf16>
    %46 = vector.shape_cast %45 : vector<2x8x8x64xbf16> to vector<128x64xbf16>
    %c4 = arith.constant 4 : index
    %c0_64 = arith.constant 0 : index
    %c0_65 = arith.constant 0 : index
    %47 = vector.load %arg4[%c4, %c0_64, %c0_65] : memref<9x64x64xbf16, #tpu.memory_space<vmem>>, vector<1x64x64xbf16>
    %48 = vector.shape_cast %47 : vector<1x64x64xbf16> to vector<64x64xbf16>
    %cst_66 = arith.constant dense<0.000000e+00> : vector<128x64xf32>
    %49 = tpu.matmul %46, %48, %cst_66 {dimension_numbers = #tpu.dot_dimension_numbers<[1], [0], [0], [1], [0, 0, 1, 1], [], []>} : vector<128x64xbf16>, vector<64x64xbf16>, vector<128x64xf32> -> vector<128x64xf32>
    %50 = arith.addf %44, %49 : vector<128x64xf32>
    %c0_67 = arith.constant 0 : index
    %c1_68 = arith.constant 1 : index
    %c2_69 = arith.constant 2 : index
    %c0_70 = arith.constant 0 : index
    %51 = vector.load %arg9[%c0_67, %c1_68, %c2_69, %c0_70] : memref<2x10x10x64xbf16, #tpu.memory_space<vmem>>, vector<2x8x8x64xbf16>
    %52 = vector.shape_cast %51 : vector<2x8x8x64xbf16> to vector<128x64xbf16>
    %c5 = arith.constant 5 : index
    %c0_71 = arith.constant 0 : index
    %c0_72 = arith.constant 0 : index
    %53 = vector.load %arg4[%c5, %c0_71, %c0_72] : memref<9x64x64xbf16, #tpu.memory_space<vmem>>, vector<1x64x64xbf16>
    %54 = vector.shape_cast %53 : vector<1x64x64xbf16> to vector<64x64xbf16>
    %cst_73 = arith.constant dense<0.000000e+00> : vector<128x64xf32>
    %55 = tpu.matmul %52, %54, %cst_73 {dimension_numbers = #tpu.dot_dimension_numbers<[1], [0], [0], [1], [0, 0, 1, 1], [], []>} : vector<128x64xbf16>, vector<64x64xbf16>, vector<128x64xf32> -> vector<128x64xf32>
    %56 = arith.addf %50, %55 : vector<128x64xf32>
    %c0_74 = arith.constant 0 : index
    %c2_75 = arith.constant 2 : index
    %c0_76 = arith.constant 0 : index
    %c0_77 = arith.constant 0 : index
    %57 = vector.load %arg9[%c0_74, %c2_75, %c0_76, %c0_77] : memref<2x10x10x64xbf16, #tpu.memory_space<vmem>>, vector<2x8x8x64xbf16>
    %58 = vector.shape_cast %57 : vector<2x8x8x64xbf16> to vector<128x64xbf16>
    %c6 = arith.constant 6 : index
    %c0_78 = arith.constant 0 : index
    %c0_79 = arith.constant 0 : index
    %59 = vector.load %arg4[%c6, %c0_78, %c0_79] : memref<9x64x64xbf16, #tpu.memory_space<vmem>>, vector<1x64x64xbf16>
    %60 = vector.shape_cast %59 : vector<1x64x64xbf16> to vector<64x64xbf16>
    %cst_80 = arith.constant dense<0.000000e+00> : vector<128x64xf32>
    %61 = tpu.matmul %58, %60, %cst_80 {dimension_numbers = #tpu.dot_dimension_numbers<[1], [0], [0], [1], [0, 0, 1, 1], [], []>} : vector<128x64xbf16>, vector<64x64xbf16>, vector<128x64xf32> -> vector<128x64xf32>
    %62 = arith.addf %56, %61 : vector<128x64xf32>
    %c0_81 = arith.constant 0 : index
    %c2_82 = arith.constant 2 : index
    %c1_83 = arith.constant 1 : index
    %c0_84 = arith.constant 0 : index
    %63 = vector.load %arg9[%c0_81, %c2_82, %c1_83, %c0_84] : memref<2x10x10x64xbf16, #tpu.memory_space<vmem>>, vector<2x8x8x64xbf16>
    %64 = vector.shape_cast %63 : vector<2x8x8x64xbf16> to vector<128x64xbf16>
    %c7 = arith.constant 7 : index
    %c0_85 = arith.constant 0 : index
    %c0_86 = arith.constant 0 : index
    %65 = vector.load %arg4[%c7, %c0_85, %c0_86] : memref<9x64x64xbf16, #tpu.memory_space<vmem>>, vector<1x64x64xbf16>
    %66 = vector.shape_cast %65 : vector<1x64x64xbf16> to vector<64x64xbf16>
    %cst_87 = arith.constant dense<0.000000e+00> : vector<128x64xf32>
    %67 = tpu.matmul %64, %66, %cst_87 {dimension_numbers = #tpu.dot_dimension_numbers<[1], [0], [0], [1], [0, 0, 1, 1], [], []>} : vector<128x64xbf16>, vector<64x64xbf16>, vector<128x64xf32> -> vector<128x64xf32>
    %68 = arith.addf %62, %67 : vector<128x64xf32>
    %c0_88 = arith.constant 0 : index
    %c2_89 = arith.constant 2 : index
    %c2_90 = arith.constant 2 : index
    %c0_91 = arith.constant 0 : index
    %69 = vector.load %arg9[%c0_88, %c2_89, %c2_90, %c0_91] : memref<2x10x10x64xbf16, #tpu.memory_space<vmem>>, vector<2x8x8x64xbf16>
    %70 = vector.shape_cast %69 : vector<2x8x8x64xbf16> to vector<128x64xbf16>
    %c8 = arith.constant 8 : index
    %c0_92 = arith.constant 0 : index
    %c0_93 = arith.constant 0 : index
    %71 = vector.load %arg4[%c8, %c0_92, %c0_93] : memref<9x64x64xbf16, #tpu.memory_space<vmem>>, vector<1x64x64xbf16>
    %72 = vector.shape_cast %71 : vector<1x64x64xbf16> to vector<64x64xbf16>
    %cst_94 = arith.constant dense<0.000000e+00> : vector<128x64xf32>
    %73 = tpu.matmul %70, %72, %cst_94 {dimension_numbers = #tpu.dot_dimension_numbers<[1], [0], [0], [1], [0, 0, 1, 1], [], []>} : vector<128x64xbf16>, vector<64x64xbf16>, vector<128x64xf32> -> vector<128x64xf32>
    %74 = arith.addf %68, %73 : vector<128x64xf32>
    %c0_95 = arith.constant 0 : index
    %c0_96 = arith.constant 0 : index
    %75 = vector.load %arg5[%c0_95, %c0_96] : memref<1x64xf32, #tpu.memory_space<vmem>>, vector<1x64xf32>
    %76 = vector.broadcast %75 : vector<1x64xf32> to vector<128x64xf32>
    %77 = arith.addf %74, %76 : vector<128x64xf32>
    %cst_97 = arith.constant 0.000000e+00 : f32
    %78 = vector.broadcast %cst_97 : f32 to vector<128x64xf32>
    %79 = arith.maximumf %77, %78 : vector<128x64xf32>
    %80 = arith.truncf %79 : vector<128x64xf32> to vector<128x64xbf16>
    %c0_98 = arith.constant 0 : index
    %c0_99 = arith.constant 0 : index
    %81 = vector.load %arg6[%c0_98, %c0_99] : memref<64x256xbf16, #tpu.memory_space<vmem>>, vector<64x256xbf16>
    %cst_100 = arith.constant dense<0.000000e+00> : vector<128x256xf32>
    %82 = tpu.matmul %80, %81, %cst_100 {dimension_numbers = #tpu.dot_dimension_numbers<[1], [0], [0], [1], [0, 0, 1, 1], [], []>} : vector<128x64xbf16>, vector<64x256xbf16>, vector<128x256xf32> -> vector<128x256xf32>
    %c0_101 = arith.constant 0 : index
    %c0_102 = arith.constant 0 : index
    %c0_103 = arith.constant 0 : index
    %83 = vector.load %arg1[%c0_101, %c0_102, %c0_103] : memref<2x64x256xbf16, #tpu.memory_space<vmem>>, vector<2x64x256xbf16>
    %84 = vector.shape_cast %83 : vector<2x64x256xbf16> to vector<128x256xbf16>
    %85 = arith.extf %84 : vector<128x256xbf16> to vector<128x256xf32>
    %c0_104 = arith.constant 0 : index
    %c0_105 = arith.constant 0 : index
    %86 = vector.load %arg7[%c0_104, %c0_105] : memref<1x256xf32, #tpu.memory_space<vmem>>, vector<1x256xf32>
    %87 = vector.broadcast %86 : vector<1x256xf32> to vector<128x256xf32>
    %88 = arith.addf %82, %87 : vector<128x256xf32>
    %89 = arith.addf %88, %85 : vector<128x256xf32>
    %cst_106 = arith.constant 0.000000e+00 : f32
    %90 = vector.broadcast %cst_106 : f32 to vector<128x256xf32>
    %91 = arith.maximumf %89, %90 : vector<128x256xf32>
    %92 = arith.truncf %91 : vector<128x256xf32> to vector<128x256xbf16>
    %93 = vector.shape_cast %92 : vector<128x256xbf16> to vector<2x64x256xbf16>
    %c0_107 = arith.constant 0 : index
    %c0_108 = arith.constant 0 : index
    %c0_109 = arith.constant 0 : index
    %94 = vector.load %arg8[%c0_107, %c0_108, %c0_109] : memref<2x64x256xbf16, #tpu.memory_space<vmem>>, vector<2x64x256xbf16>
    tpu.vector_store %arg8[%c0_107, %c0_108, %c0_109], %93 {strides = array<i32>} : memref<2x64x256xbf16, #tpu.memory_space<vmem>>, vector<2x64x256xbf16>,
    return
  }
  func.func @transform_0(%arg0: i32) -> (i32, i32, i32) {
    %c0_i32 = arith.constant 0 : i32
    %c0_i32_0 = arith.constant 0 : i32
    %c0_i32_1 = arith.constant 0 : i32
    return %arg0, %c0_i32, %c0_i32_0 : i32, i32, i32
  }
  func.func @transform_1(%arg0: i32) -> (i32, i32) {
    %c0_i32 = arith.constant 0 : i32
    %c0_i32_0 = arith.constant 0 : i32
    %c0_i32_1 = arith.constant 0 : i32
    return %c0_i32, %c0_i32_0 : i32, i32
  }
  func.func @transform_2(%arg0: i32) -> (i32, i32) {
    %c0_i32 = arith.constant 0 : i32
    %c0_i32_0 = arith.constant 0 : i32
    %c0_i32_1 = arith.constant 0 : i32
    return %c0_i32, %c0_i32_0 : i32, i32
  }
  func.func @transform_3(%arg0: i32) -> (i32, i32, i32) {
    %c0_i32 = arith.constant 0 : i32
    %c0_i32_0 = arith.constant 0 : i32
    %c0_i32_1 = arith.constant 0 : i32
    %c0_i32_2 = arith.constant 0 : i32
    return %c0_i32, %c0_i32_0, %c0_i32_1 : i32, i32, i32
  }
  func.func @transform_4(%arg0: i32) -> (i32, i32) {
    %c0_i32 = arith.constant 0 : i32
    %c0_i32_0 = arith.constant 0 : i32
    %c0_i32_1 = arith.constant 0 : i32
    return %c0_i32, %c0_i32_0 : i32, i32
  }
  func.func @transform_5(%arg0: i32) -> (i32, i32) {
    %c0_i32 = arith.constant 0 : i32
    %c0_i32_0 = arith.constant 0 : i32
    %c0_i32_1 = arith.constant 0 : i32
    return %c0_i32, %c0_i32_0 : i32, i32
  }
  func.func @transform_6(%arg0: i32) -> (i32, i32) {
    %c0_i32 = arith.constant 0 : i32
    %c0_i32_0 = arith.constant 0 : i32
    %c0_i32_1 = arith.constant 0 : i32
    return %c0_i32, %c0_i32_0 : i32, i32
  }
  func.func @transform_7(%arg0: i32) -> (i32, i32, i32) {
    %c0_i32 = arith.constant 0 : i32
    %c0_i32_0 = arith.constant 0 : i32
    %c0_i32_1 = arith.constant 0 : i32
    return %arg0, %c0_i32, %c0_i32_0 : i32, i32, i32
  }
}

</mosaic_0001>

<llo_original>
// kernel: tpu_custom_call.1
$region0: #{tpu_custom_call.1}
  #allocation0 [shape = 'u32[]', space=smem, size = 0x4, offset = 0x4, fixed_abs, tag = 'smem constant byte address 0x4 - core index']
  #allocation1 [shape = 'u32[72,128]{1,0:T(1,128)}', space=vmem, size = 0x9000, scoped, tag = 'internal scratch']
  #allocation2 [shape = 'bf16[2,10,10,64]{3,2,1,0:T(8,128)(2,1)}', space=vmem, size = 0x14000, scoped, tag = 'scratch operand']
  %s0 = inlined_call_operand.hbm [shape: bf16[4,64,256], index: 0, kind: input, shape index: {}]
  %s1 = inlined_call_operand.vmem [shape: bf16[256,64], index: 1, kind: input, shape index: {}]
  %s2 = inlined_call_operand.vmem [shape: f32[1,64], index: 2, kind: input, shape index: {}]
  %s3 = inlined_call_operand.hbm [shape: bf16[9,64,64], index: 3, kind: input, shape index: {}]
  %s4 = inlined_call_operand.vmem [shape: f32[1,64], index: 4, kind: input, shape index: {}]
  %s5 = inlined_call_operand.vmem [shape: bf16[64,256], index: 5, kind: input, shape index: {}]
  %s6 = inlined_call_operand.vmem [shape: f32[1,256], index: 6, kind: input, shape index: {}]
  %s7 = inlined_call_operand.hbm [shape: bf16[4,64,256], index: 7, kind: output, shape index: {}]
  %s8 = sld [smem:[#allocation0]]
  $region69: #{tpu_custom_call.1} parent=0
    _
  %s10 = ssub.s32 1, %s8
  %s11 = scalar_select 0, %s10, %s8
  $region1: #{tpu_custom_call.1} parent=0
    #allocation3 [shape = 'u8[131072]{0}', space=vmem, size = 0x20000, scoped, tag = 'input window, operand 0']
    #allocation4 [shape = 's32[2]{0}', space=sflag, size = 0x8, scoped, tag = 'scoped memory for tpu_custom_call.1']
    #allocation5 [shape = 's32[2]{0}', space=sflag, size = 0x8, scoped, tag = 'scoped memory for tpu_custom_call.1']
    #allocation6 [shape = 'u8[147456]{0}', space=vmem, size = 0x24000, scoped, tag = 'input window, operand 3, single buffered']
    #allocation7 [shape = 's32[1]{0}', space=sflag, size = 0x4, scoped, tag = 'scoped memory for tpu_custom_call.1']
    #allocation8 [shape = 'u8[131072]{0}', space=vmem, size = 0x20000, scoped, tag = 'output window, operand 0']
    %12 = vsyncpa [#allocation4], 0
    %s13 = scalar_lea.sflag [#allocation4], 1
    %14 = vsyncpa %s13, 0
    %15 = vsyncpa [#allocation7], 0
    %16 = vsyncpa [#allocation5], 0
    %s17 = scalar_lea.sflag [#allocation5], 1
    %18 = vsyncpa %s17, 0
    loop: start=0, step=1, limit=4
    $region2: #{tpu_custom_call.1} parent=1 // loop_pre_header
      _
    $region3: #{tpu_custom_call.1} parent=1 // loop_header
      %s20 = sphi 0, %s24
      %p21 = scmp.ge.s32.totalorder %s20, 4
      %s30 = sphi 0, %s32
      %s33 = sphi 0, %s30
      %s34 = sphi 0, %s33
      %s50 = sphi 0, %s34
      %s54 = sphi 0, %s54
      %s56 = sphi 0, %s54
      %s57 = sphi 0, %s56
      %s71 = sphi 0, %s57
      %s75 = sphi 0, %s75
      %s77 = sphi 0, %s75
      %s78 = sphi 0, %s77
      %s92 = sphi 0, %s78
      %s96 = sphi 0, %s96
      %s98 = sphi 0, %s96
      %s99 = sphi 0, %s98
      %s113 = sphi 0, %s99
      %s117 = sphi 0, %s117
      %s119 = sphi 0, %s117
      %s120 = sphi 0, %s119
      %s134 = sphi 0, %s120
      %s138 = sphi 0, %s138
      %s140 = sphi 0, %s138
      %s141 = sphi 0, %s140
      %s155 = sphi 0, %s141
      %s159 = sphi 0, %s159
      %s161 = sphi 0, %s159
      %s162 = sphi 0, %s161
      %s176 = sphi 0, %s162
      %s182 = sphi 0, %s184
      %s185 = sphi 0, %s182
      %s186 = sphi 0, %s185
      %s202 = sphi 0, %s186
    $region4: #{tpu_custom_call.1} parent=1 // loop_header_branch
      %23 = sbr.rel (%p21) target = $region8
    $region5: #{tpu_custom_call.1} parent=1 // loop_body
      %s25 = ssub.s32 %s20, 1
      %s26 = ssub.s32 %s20, 2
      %s27 = sadd.s32 %s20, 1
      %s28 = ssub.s32 %s20, %s27
      %p29 = scmp.eq.s32.totalorder %s28, 0
      %s31 = sadd.s32 %s30, 1
      %s32 = scalar_select %p29, %s30, %s31
      %p35 = pneg %p29
      %p36 = scmp.eq.s32.totalorder %s20, 1
      %p37 = por %p35, %p36
      %p38 = scmp.ne.s32.totalorder %s30, %s33
      %p39 = scmp.eq.s32.totalorder %s20, 0
      %p40 = por %p38, %p39
      %p41 = scmp.ne.s32.totalorder %s30, %s33
      %p42 = scmp.eq.s32.totalorder %s25, 1
      %p43 = por %p41, %p42
      %p44 = scmp.ne.s32.totalorder %s33, %s34
      %p45 = scmp.eq.s32.totalorder %s25, 0
      %p46 = por %p44, %p45
      %p47 = scmp.ne.s32.totalorder %s33, %s34
      %p48 = scmp.eq.s32.totalorder %s26, 1
      %p49 = por %p47, %p48
      %p51 = scmp.ne.s32.totalorder %s34, %s50
      %p52 = scmp.eq.s32.totalorder %s26, 0
      %p53 = por %p51, %p52
      %s55 = sadd.s32 %s54, 1
      %p58 = scmp.eq.s32.totalorder %s20, 1
      %p59 = scmp.ne.s32.totalorder %s54, %s56
      %p60 = scmp.eq.s32.totalorder %s20, 0
      %p61 = por %p59, %p60
      %p62 = scmp.ne.s32.totalorder %s54, %s56
      %p63 = scmp.eq.s32.totalorder %s25, 1
      %p64 = por %p62, %p63
      %p65 = scmp.ne.s32.totalorder %s56, %s57
      %p66 = scmp.eq.s32.totalorder %s25, 0
      %p67 = por %p65, %p66
      %p68 = scmp.ne.s32.totalorder %s56, %s57
      %p69 = scmp.eq.s32.totalorder %s26, 1
      %p70 = por %p68, %p69
      %p72 = scmp.ne.s32.totalorder %s57, %s71
      %p73 = scmp.eq.s32.totalorder %s26, 0
      %p74 = por %p72, %p73
      %s76 = sadd.s32 %s75, 1
      %p79 = scmp.eq.s32.totalorder %s20, 1
      %p80 = scmp.ne.s32.totalorder %s75, %s77
      %p81 = scmp.eq.s32.totalorder %s20, 0
      %p82 = por %p80, %p81
      %p83 = scmp.ne.s32.totalorder %s75, %s77
      %p84 = scmp.eq.s32.totalorder %s25, 1
      %p85 = por %p83, %p84
      %p86 = scmp.ne.s32.totalorder %s77, %s78
      %p87 = scmp.eq.s32.totalorder %s25, 0
      %p88 = por %p86, %p87
      %p89 = scmp.ne.s32.totalorder %s77, %s78
      %p90 = scmp.eq.s32.totalorder %s26, 1
      %p91 = por %p89, %p90
      %p93 = scmp.ne.s32.totalorder %s78, %s92
      %p94 = scmp.eq.s32.totalorder %s26, 0
      %p95 = por %p93, %p94
      %s97 = sadd.s32 %s96, 1
      %p100 = scmp.eq.s32.totalorder %s20, 1
      %p101 = scmp.ne.s32.totalorder %s96, %s98
      %p102 = scmp.eq.s32.totalorder %s20, 0
      %p103 = por %p101, %p102
      %p104 = scmp.ne.s32.totalorder %s96, %s98
      %p105 = scmp.eq.s32.totalorder %s25, 1
      %p106 = por %p104, %p105
      %p107 = scmp.ne.s32.totalorder %s98, %s99
      %p108 = scmp.eq.s32.totalorder %s25, 0
      %p109 = por %p107, %p108
      %p110 = scmp.ne.s32.totalorder %s98, %s99
      %p111 = scmp.eq.s32.totalorder %s26, 1
      %p112 = por %p110, %p111
      %p114 = scmp.ne.s32.totalorder %s99, %s113
      %p115 = scmp.eq.s32.totalorder %s26, 0
      %p116 = por %p114, %p115
      %s118 = sadd.s32 %s117, 1
      %p121 = scmp.eq.s32.totalorder %s20, 1
      %p122 = scmp.ne.s32.totalorder %s117, %s119
      %p123 = scmp.eq.s32.totalorder %s20, 0
      %p124 = por %p122, %p123
      %p125 = scmp.ne.s32.totalorder %s117, %s119
      %p126 = scmp.eq.s32.totalorder %s25, 1
      %p127 = por %p125, %p126
      %p128 = scmp.ne.s32.totalorder %s119, %s120
      %p129 = scmp.eq.s32.totalorder %s25, 0
      %p130 = por %p128, %p129
      %p131 = scmp.ne.s32.totalorder %s119, %s120
      %p132 = scmp.eq.s32.totalorder %s26, 1
      %p133 = por %p131, %p132
      %p135 = scmp.ne.s32.totalorder %s120, %s134
      %p136 = scmp.eq.s32.totalorder %s26, 0
      %p137 = por %p135, %p136
      %s139 = sadd.s32 %s138, 1
      %p142 = scmp.eq.s32.totalorder %s20, 1
      %p143 = scmp.ne.s32.totalorder %s138, %s140
      %p144 = scmp.eq.s32.totalorder %s20, 0
      %p145 = por %p143, %p144
      %p146 = scmp.ne.s32.totalorder %s138, %s140
      %p147 = scmp.eq.s32.totalorder %s25, 1
      %p148 = por %p146, %p147
      %p149 = scmp.ne.s32.totalorder %s140, %s141
      %p150 = scmp.eq.s32.totalorder %s25, 0
      %p151 = por %p149, %p150
      %p152 = scmp.ne.s32.totalorder %s140, %s141
      %p153 = scmp.eq.s32.totalorder %s26, 1
      %p154 = por %p152, %p153
      %p156 = scmp.ne.s32.totalorder %s141, %s155
      %p157 = scmp.eq.s32.totalorder %s26, 0
      %p158 = por %p156, %p157
      %s160 = sadd.s32 %s159, 1
      %p163 = scmp.eq.s32.totalorder %s20, 1
      %p164 = scmp.ne.s32.totalorder %s159, %s161
      %p165 = scmp.eq.s32.totalorder %s20, 0
      %p166 = por %p164, %p165
      %p167 = scmp.ne.s32.totalorder %s159, %s161
      %p168 = scmp.eq.s32.totalorder %s25, 1
      %p169 = por %p167, %p168
      %p170 = scmp.ne.s32.totalorder %s161, %s162
      %p171 = scmp.eq.s32.totalorder %s25, 0
      %p172 = por %p170, %p171
      %p173 = scmp.ne.s32.totalorder %s161, %s162
      %p174 = scmp.eq.s32.totalorder %s26, 1
      %p175 = por %p173, %p174
      %p177 = scmp.ne.s32.totalorder %s162, %s176
      %p178 = scmp.eq.s32.totalorder %s26, 0
      %p179 = por %p177, %p178
      %s180 = ssub.s32 %s20, %s27
      %p181 = scmp.eq.s32.totalorder %s180, 0
      %s183 = sadd.s32 %s182, 1
      %s184 = scalar_select %p181, %s182, %s183
      %p187 = pneg %p181
      %p188 = scmp.eq.s32.totalorder %s20, 1
      %p189 = por %p187, %p188
      %p190 = scmp.ne.s32.totalorder %s182, %s185
      %p191 = scmp.eq.s32.totalorder %s20, 0
      %p192 = por %p190, %p191
      %p193 = scmp.ne.s32.totalorder %s182, %s185
      %p194 = scmp.eq.s32.totalorder %s25, 1
      %p195 = por %p193, %p194
      %p196 = scmp.ne.s32.totalorder %s185, %s186
      %p197 = scmp.eq.s32.totalorder %s25, 0
      %p198 = por %p196, %p197
      %p199 = scmp.ne.s32.totalorder %s185, %s186
      %p200 = scmp.eq.s32.totalorder %s26, 1
      %p201 = por %p199, %p200
      %p203 = scmp.ne.s32.totalorder %s186, %s202
      %p204 = scmp.eq.s32.totalorder %s26, 0
      %p205 = por %p203, %p204
      %p206 = scmp.le.s32.totalorder 1, %s20
      %p207 = scmp.lt.s32.totalorder %s20, 3
      %p208 = pnand %p206, %p207
      %p209 = pneg %p208
      // Predicated region
      $region9: #{tpu_custom_call.1} parent=5 // pred_check
        _
      $region10: #{tpu_custom_call.1} parent=5 // pred_check_branch
        %211 = sbr.rel (%p208) target = $region12
      $region11: #{tpu_custom_call.1} parent=5 // pred_region
        %s212 = ssub.s32 %s20, 1
        // Predicated region
        $region13: #{tpu_custom_call.1} parent=11 // pred_check
          %p213 = pneg %p67
        $region14: #{tpu_custom_call.1} parent=11 // pred_check_branch
          %215 = sbr.rel (%p213) target = $region16
        $region15: #{tpu_custom_call.1} parent=11 // pred_region
          _
        $region16: #{tpu_custom_call.1} parent=11 // pred_fallthru
          _
        // Predicated region
        $region17: #{tpu_custom_call.1} parent=11 // pred_check
          %p216 = pneg %p88
        $region18: #{tpu_custom_call.1} parent=11 // pred_check_branch
          %218 = sbr.rel (%p216) target = $region20
        $region19: #{tpu_custom_call.1} parent=11 // pred_region
          _
        $region20: #{tpu_custom_call.1} parent=11 // pred_fallthru
          _
        // Predicated region
        $region21: #{tpu_custom_call.1} parent=11 // pred_check
          %p219 = pneg %p109
        $region22: #{tpu_custom_call.1} parent=11 // pred_check_branch
          %221 = sbr.rel (%p219) target = $region24
        $region23: #{tpu_custom_call.1} parent=11 // pred_region
          %223 = vsyncadd [#allocation7], 0
          %s224 = sshll.u32 %s3, 4
          %s225 = int_to_ptr.hbm [resolvable:$true] %s224
          %s226 = sshll.u32 [#allocation6], 4
          %s227 = int_to_ptr.vmem [resolvable:$true] %s226
          %232 = dma.hbm_to_vmem [thread:$0]  %s225, 4608, %s227, [#allocation7], 64, 64, 4
        $region24: #{tpu_custom_call.1} parent=11 // pred_fallthru
          _
        // Predicated region
        $region25: #{tpu_custom_call.1} parent=11 // pred_check
          %p233 = pneg %p130
        $region26: #{tpu_custom_call.1} parent=11 // pred_check_branch
          %235 = sbr.rel (%p233) target = $region28
        $region27: #{tpu_custom_call.1} parent=11 // pred_region
          _
        $region28: #{tpu_custom_call.1} parent=11 // pred_fallthru
          _
        // Predicated region
        $region29: #{tpu_custom_call.1} parent=11 // pred_check
          %p236 = pneg %p151
        $region30: #{tpu_custom_call.1} parent=11 // pred_check_branch
          %238 = sbr.rel (%p236) target = $region32
        $region31: #{tpu_custom_call.1} parent=11 // pred_region
          _
        $region32: #{tpu_custom_call.1} parent=11 // pred_fallthru
          _
        // Predicated region
        $region33: #{tpu_custom_call.1} parent=11 // pred_check
          %p239 = pneg %p172
        $region34: #{tpu_custom_call.1} parent=11 // pred_check_branch
          %241 = sbr.rel (%p239) target = $region36
        $region35: #{tpu_custom_call.1} parent=11 // pred_region
          _
        $region36: #{tpu_custom_call.1} parent=11 // pred_fallthru
          _
      $region12: #{tpu_custom_call.1} parent=5 // pred_fallthru
        _
      %p242 = scmp.lt.s32.totalorder %s20, 2
      // Predicated region
      $region37: #{tpu_custom_call.1} parent=5 // pred_check
        %p243 = pneg %p242
      $region38: #{tpu_custom_call.1} parent=5 // pred_check_branch
        %245 = sbr.rel (%p243) target = $region40
      $region39: #{tpu_custom_call.1} parent=5 // pred_region
        // Predicated region
        $region41: #{tpu_custom_call.1} parent=39 // pred_check
          %p246 = pneg %p40
        $region42: #{tpu_custom_call.1} parent=39 // pred_check_branch
          %248 = sbr.rel (%p246) target = $region44
        $region43: #{tpu_custom_call.1} parent=39 // pred_region
          %s249 = sand.u32 %s30, 1
          %s250 = scalar_lea.sflag [#allocation4], %s249
          %s251 = sand.u32 %s30, 1
          %s252 = smul.addr %s251, 128
          %s253 = scalar_lea.vmem [#allocation3], %s252
          %s254 = smul.u32 2, %s20
          %256 = vsyncadd %s250, 0
          %s257 = smul.addr %s254, 16
          %s258 = smul.addr %s257, 4
          %s259 = scalar_lea.hbm %s0, %s258
          %s260 = sshll.u32 %s259, 4
          %s261 = int_to_ptr.hbm [resolvable:$true] %s260
          %s262 = sshll.u32 %s253, 4
          %s263 = int_to_ptr.vmem [resolvable:$true] %s262
          %268 = dma.hbm_to_vmem [thread:$0]  %s261, 2048, %s263, %s250, 128, 128, 8
        $region44: #{tpu_custom_call.1} parent=39 // pred_fallthru
          _
      $region40: #{tpu_custom_call.1} parent=5 // pred_fallthru
        _
      %p269 = scmp.le.s32.totalorder 1, %s20
      %p270 = scmp.lt.s32.totalorder %s20, 3
      %p271 = pnand %p269, %p270
      %p272 = pneg %p271
      // Predicated region
      $region45: #{tpu_custom_call.1} parent=5 // pred_check
        _
      $region46: #{tpu_custom_call.1} parent=5 // pred_check_branch
        %274 = sbr.rel (%p271) target = $region48
      $region47: #{tpu_custom_call.1} parent=5 // pred_region
        %s275 = ssub.s32 %s20, 1
        %s276 = sand.u32 %s33, 1
        %s277 = scalar_lea.sflag [#allocation4], %s276
        %s278 = sand.u32 %s33, 1
        %s279 = smul.addr %s278, 128
        %s280 = scalar_lea.vmem [#allocation3], %s279
        // Predicated region
        $region49: #{tpu_custom_call.1} parent=47 // pred_check
          %p281 = pneg %p46
        $region50: #{tpu_custom_call.1} parent=47 // pred_check_branch
          %283 = sbr.rel (%p281) target = $region52
        $region51: #{tpu_custom_call.1} parent=47 // pred_region
          %285 = dma.done %s277, 2048
        $region52: #{tpu_custom_call.1} parent=47 // pred_fallthru
          _
        // Predicated region
        $region53: #{tpu_custom_call.1} parent=47 // pred_check
          %p286 = pneg %p109
        $region54: #{tpu_custom_call.1} parent=47 // pred_check_branch
          %288 = sbr.rel (%p286) target = $region56
        $region55: #{tpu_custom_call.1} parent=47 // pred_region
          %290 = dma.done [#allocation7], 4608
        $region56: #{tpu_custom_call.1} parent=47 // pred_fallthru
          _
        %s291 = sand.u32 %s33, 1
        %s292 = scalar_lea.sflag [#allocation4], %s291
        %s293 = sand.u32 %s33, 1
        %s294 = smul.addr %s293, 128
        %s295 = scalar_lea.vmem [#allocation3], %s294
        %p296 = pneg %p46
        %p297 = pneg %p43
        %p298 = pneg %p67
        %p299 = pneg %p64
        %p300 = pneg %p88
        %p301 = pneg %p85
        %p302 = pneg %p109
        %p303 = pneg %p106
        %p304 = pneg %p130
        %p305 = pneg %p127
        %p306 = pneg %p151
        %p307 = pneg %p148
        %p308 = pneg %p172
        %p309 = pneg %p169
        %p310 = pneg %p198
        %p311 = pneg %p195
        %s312 = sand.u32 %s185, 1
        %s313 = scalar_lea.sflag [#allocation5], %s312
        %s314 = sand.u32 %s185, 1
        %s315 = smul.addr %s314, 128
        %s316 = scalar_lea.vmem [#allocation8], %s315
        %s317 = smul.u32 2, %s25
        %s318 = smul.u32 2, %s25
        %v320 = vld [vmem:[%s280] sm:$0xff]
        %v321 = vld [vmem:[%s280 + $0x8] sm:$0xff]
        %v322 = vld [vmem:[%s280 + $0x10] sm:$0xff]
        %v323 = vld [vmem:[%s280 + $0x18] sm:$0xff]
        %v324 = vld [vmem:[%s280 + $0x20] sm:$0xff]
        %v325 = vld [vmem:[%s280 + $0x28] sm:$0xff]
        %v326 = vld [vmem:[%s280 + $0x30] sm:$0xff]
        %v327 = vld [vmem:[%s280 + $0x38] sm:$0xff]
        %v328 = vld [vmem:[%s280 + $0x40] sm:$0xff]
        %v329 = vld [vmem:[%s280 + $0x48] sm:$0xff]
        %v330 = vld [vmem:[%s280 + $0x50] sm:$0xff]
        %v331 = vld [vmem:[%s280 + $0x58] sm:$0xff]
        %v332 = vld [vmem:[%s280 + $0x60] sm:$0xff]
        %v333 = vld [vmem:[%s280 + $0x68] sm:$0xff]
        %v334 = vld [vmem:[%s280 + $0x70] sm:$0xff]
        %v335 = vld [vmem:[%s280 + $0x78] sm:$0xff]
        %v336 = vld [vmem:[%s1] sm:$0xf]
        %v337 = vld [vmem:[%s1 + $0x4] sm:$0xf]
        %v338 = vld [vmem:[%s1 + $0x8] sm:$0xf]
        %v339 = vld [vmem:[%s1 + $0xc] sm:$0xf]
        %v340 = vld [vmem:[%s1 + $0x10] sm:$0xf]
        %v341 = vld [vmem:[%s1 + $0x14] sm:$0xf]
        %v342 = vld [vmem:[%s1 + $0x18] sm:$0xf]
        %v343 = vld [vmem:[%s1 + $0x1c] sm:$0xf]
        %v344 = vld [vmem:[%s1 + $0x20] sm:$0xf]
        %v345 = vld [vmem:[%s1 + $0x24] sm:$0xf]
        %v346 = vld [vmem:[%s1 + $0x28] sm:$0xf]
        %v347 = vld [vmem:[%s1 + $0x2c] sm:$0xf]
        %v348 = vld [vmem:[%s1 + $0x30] sm:$0xf]
        %v349 = vld [vmem:[%s1 + $0x34] sm:$0xf]
        %v350 = vld [vmem:[%s1 + $0x38] sm:$0xf]
        %v351 = vld [vmem:[%s1 + $0x3c] sm:$0xf]
        %v352 = vld [vmem:[%s1 + $0x40] sm:$0xf]
        %v353 = vld [vmem:[%s1 + $0x44] sm:$0xf]
        %v354 = vld [vmem:[%s1 + $0x48] sm:$0xf]
        %v355 = vld [vmem:[%s1 + $0x4c] sm:$0xf]
        %v356 = vld [vmem:[%s1 + $0x50] sm:$0xf]
        %v357 = vld [vmem:[%s1 + $0x54] sm:$0xf]
        %v358 = vld [vmem:[%s1 + $0x58] sm:$0xf]
        %v359 = vld [vmem:[%s1 + $0x5c] sm:$0xf]
        %v360 = vld [vmem:[%s1 + $0x60] sm:$0xf]
        %v361 = vld [vmem:[%s1 + $0x64] sm:$0xf]
        %v362 = vld [vmem:[%s1 + $0x68] sm:$0xf]
        %v363 = vld [vmem:[%s1 + $0x6c] sm:$0xf]
        %v364 = vld [vmem:[%s1 + $0x70] sm:$0xf]
        %v365 = vld [vmem:[%s1 + $0x74] sm:$0xf]
        %v366 = vld [vmem:[%s1 + $0x78] sm:$0xf]
        %v367 = vld [vmem:[%s1 + $0x7c] sm:$0xf]
        %v368 = vld [vmem:[%s2] sm:$0x1]
        %v370 = vperm.slane %v368, 0
        %v388 = vunpack.c.l.b16 %v320
        %v389 = vunpack.c.h.b16 %v320
        %v390 = vunpack.c.l.b16 %v321
        %v391 = vunpack.c.h.b16 %v321
        %v392 = vunpack.c.l.b16 %v322
        %v393 = vunpack.c.h.b16 %v322
        %v394 = vunpack.c.l.b16 %v323
        %v395 = vunpack.c.h.b16 %v323
        %v396 = vunpack.c.l.b16 %v324
        %v397 = vunpack.c.h.b16 %v324
        %v398 = vunpack.c.l.b16 %v325
        %v399 = vunpack.c.h.b16 %v325
        %v400 = vunpack.c.l.b16 %v326
        %v401 = vunpack.c.h.b16 %v326
        %v402 = vunpack.c.l.b16 %v327
        %v403 = vunpack.c.h.b16 %v327
        %v404 = vunpack.c.l.b16 %v328
        %v405 = vunpack.c.h.b16 %v328
        %v406 = vunpack.c.l.b16 %v329
        %v407 = vunpack.c.h.b16 %v329
        %v408 = vunpack.c.l.b16 %v330
        %v409 = vunpack.c.h.b16 %v330
        %v410 = vunpack.c.l.b16 %v331
        %v411 = vunpack.c.h.b16 %v331
        %v412 = vunpack.c.l.b16 %v332
        %v413 = vunpack.c.h.b16 %v332
        %v414 = vunpack.c.l.b16 %v333
        %v415 = vunpack.c.h.b16 %v333
        %v416 = vunpack.c.l.b16 %v334
        %v417 = vunpack.c.h.b16 %v334
        %v418 = vunpack.c.l.b16 %v335
        %v419 = vunpack.c.h.b16 %v335
        %v420 = vpack.c.b16 %v390, %v388
        %v421 = vpack.c.b16 %v391, %v389
        %v422 = vpack.c.b16 %v394, %v392
        %v423 = vpack.c.b16 %v395, %v393
        %v424 = vpack.c.b16 %v398, %v396
        %v425 = vpack.c.b16 %v399, %v397
        %v426 = vpack.c.b16 %v402, %v400
        %v427 = vpack.c.b16 %v403, %v401
        %v428 = vpack.c.b16 %v406, %v404
        %v429 = vpack.c.b16 %v407, %v405
        %v430 = vpack.c.b16 %v410, %v408
        %v431 = vpack.c.b16 %v411, %v409
        %v432 = vpack.c.b16 %v414, %v412
        %v433 = vpack.c.b16 %v415, %v413
        %v434 = vpack.c.b16 %v418, %v416
        %v435 = vpack.c.b16 %v419, %v417
        %v484 = vunpack.c.l.b16 %v336
        %v485 = vunpack.c.l.b16 %v337
        %v486 = vunpack.c.l.b16 %v338
        %v487 = vunpack.c.l.b16 %v339
        %v488 = vunpack.c.l.b16 %v340
        %v489 = vunpack.c.l.b16 %v341
        %v490 = vunpack.c.l.b16 %v342
        %v491 = vunpack.c.l.b16 %v343
        %v492 = vunpack.c.l.b16 %v344
        %v493 = vunpack.c.l.b16 %v345
        %v494 = vunpack.c.l.b16 %v346
        %v495 = vunpack.c.l.b16 %v347
        %v496 = vunpack.c.l.b16 %v348
        %v497 = vunpack.c.l.b16 %v349
        %v498 = vunpack.c.l.b16 %v350
        %v499 = vunpack.c.l.b16 %v351
        %v500 = vunpack.c.l.b16 %v352
        %v501 = vunpack.c.l.b16 %v353
        %v502 = vunpack.c.l.b16 %v354
        %v503 = vunpack.c.l.b16 %v355
        %v504 = vunpack.c.l.b16 %v356
        %v505 = vunpack.c.l.b16 %v357
        %v506 = vunpack.c.l.b16 %v358
        %v507 = vunpack.c.l.b16 %v359
        %v508 = vunpack.c.l.b16 %v360
        %v509 = vunpack.c.l.b16 %v361
        %v510 = vunpack.c.l.b16 %v362
        %v511 = vunpack.c.l.b16 %v363
        %v512 = vunpack.c.l.b16 %v364
        %v513 = vunpack.c.l.b16 %v365
        %v514 = vunpack.c.l.b16 %v366
        %v515 = vunpack.c.l.b16 %v367
        %v516 = vpack.c.b16 %v485, %v484
        %v517 = vpack.c.b16 %v487, %v486
        %v518 = vpack.c.b16 %v489, %v488
        %v519 = vpack.c.b16 %v491, %v490
        %v520 = vpack.c.b16 %v493, %v492
        %v521 = vpack.c.b16 %v495, %v494
        %v522 = vpack.c.b16 %v497, %v496
        %v523 = vpack.c.b16 %v499, %v498
        %v524 = vpack.c.b16 %v501, %v500
        %v525 = vpack.c.b16 %v503, %v502
        %v526 = vpack.c.b16 %v505, %v504
        %v527 = vpack.c.b16 %v507, %v506
        %v528 = vpack.c.b16 %v509, %v508
        %v529 = vpack.c.b16 %v511, %v510
        %v530 = vpack.c.b16 %v513, %v512
        %v531 = vpack.c.b16 %v515, %v514
        %548 = vmatpush.bf16.msra.mxu0 %v523
        %549 = vmatpush.bf16.msra.mxu0 %v522
        %550 = vmatpush.bf16.msra.mxu0 %v521
        %551 = vmatpush.bf16.msra.mxu0 %v520
        %552 = vmatpush.bf16.msra.mxu0 %v519
        %553 = vmatpush.bf16.msra.mxu0 %v518
        %554 = vmatpush.bf16.msra.mxu0 %v517
        %555 = vmatpush.bf16.msra.mxu0 %v516
        %556 = vmatmul.bf16.gmra.mxu0 %v420
        %v557 = vpop.f32.mrf.mxu0
        %v558 = vadd.f32 %v370, %v557
        %v559 = vpop.f32.mrf.mxu0
        %v560 = vadd.f32 %v370, %v559
        %561 = vmatmul.bf16.gmra.mxu0 %v422
        %v562 = vpop.f32.mrf.mxu0
        %v563 = vadd.f32 %v370, %v562
        %v564 = vpop.f32.mrf.mxu0
        %v565 = vadd.f32 %v370, %v564
        %566 = vmatmul.bf16.gmra.mxu0 %v424
        %v567 = vpop.f32.mrf.mxu0
        %v568 = vadd.f32 %v370, %v567
        %v569 = vpop.f32.mrf.mxu0
        %v570 = vadd.f32 %v370, %v569
        %571 = vmatmul.bf16.gmra.mxu0 %v426
        %v572 = vpop.f32.mrf.mxu0
        %v573 = vadd.f32 %v370, %v572
        %v574 = vpop.f32.mrf.mxu0
        %v575 = vadd.f32 %v370, %v574
        %576 = vmatmul.bf16.gmra.mxu0 %v428
        %v577 = vpop.f32.mrf.mxu0
        %v578 = vadd.f32 %v370, %v577
        %v579 = vpop.f32.mrf.mxu0
        %v580 = vadd.f32 %v370, %v579
        %581 = vmatmul.bf16.gmra.mxu0 %v430
        %v582 = vpop.f32.mrf.mxu0
        %v583 = vadd.f32 %v370, %v582
        %v584 = vpop.f32.mrf.mxu0
        %v585 = vadd.f32 %v370, %v584
        %586 = vmatmul.bf16.gmra.mxu0 %v432
        %v587 = vpop.f32.mrf.mxu0
        %v588 = vadd.f32 %v370, %v587
        %v589 = vpop.f32.mrf.mxu0
        %v590 = vadd.f32 %v370, %v589
        %591 = vmatmul.bf16.gmra.mxu0 %v434
        %v592 = vpop.f32.mrf.mxu0
        %v593 = vadd.f32 %v370, %v592
        %v594 = vpop.f32.mrf.mxu0
        %v595 = vadd.f32 %v370, %v594
        %596 = vdwg.mxu0
        %597 = vmatpush.bf16.msra.mxu0 %v531
        %598 = vmatpush.bf16.msra.mxu0 %v530
        %599 = vmatpush.bf16.msra.mxu0 %v529
        %600 = vmatpush.bf16.msra.mxu0 %v528
        %601 = vmatpush.bf16.msra.mxu0 %v527
        %602 = vmatpush.bf16.msra.mxu0 %v526
        %603 = vmatpush.bf16.msra.mxu0 %v525
        %604 = vmatpush.bf16.msra.mxu0 %v524
        %605 = vmatmul.bf16.gmra.mxu0 %v421
        %v606 = vpop.f32.mrf.mxu0
        %v607 = vadd.f32 %v558, %v606
        %v608 = vpop.f32.mrf.mxu0
        %v609 = vadd.f32 %v560, %v608
        %610 = vmatmul.bf16.gmra.mxu0 %v423
        %v611 = vpop.f32.mrf.mxu0
        %v612 = vadd.f32 %v563, %v611
        %v613 = vpop.f32.mrf.mxu0
        %v614 = vadd.f32 %v565, %v613
        %615 = vmatmul.bf16.gmra.mxu0 %v425
        %v616 = vpop.f32.mrf.mxu0
        %v617 = vadd.f32 %v568, %v616
        %v618 = vpop.f32.mrf.mxu0
        %v619 = vadd.f32 %v570, %v618
        %620 = vmatmul.bf16.gmra.mxu0 %v427
        %v621 = vpop.f32.mrf.mxu0
        %v622 = vadd.f32 %v573, %v621
        %v623 = vpop.f32.mrf.mxu0
        %v624 = vadd.f32 %v575, %v623
        %625 = vmatmul.bf16.gmra.mxu0 %v429
        %v626 = vpop.f32.mrf.mxu0
        %v627 = vadd.f32 %v578, %v626
        %v628 = vpop.f32.mrf.mxu0
        %v629 = vadd.f32 %v580, %v628
        %630 = vmatmul.bf16.gmra.mxu0 %v431
        %v631 = vpop.f32.mrf.mxu0
        %v632 = vadd.f32 %v583, %v631
        %v633 = vpop.f32.mrf.mxu0
        %v634 = vadd.f32 %v585, %v633
        %635 = vmatmul.bf16.gmra.mxu0 %v433
        %v636 = vpop.f32.mrf.mxu0
        %v637 = vadd.f32 %v588, %v636
        %v638 = vpop.f32.mrf.mxu0
        %v639 = vadd.f32 %v590, %v638
        %640 = vmatmul.bf16.gmra.mxu0 %v435
        %v641 = vpop.f32.mrf.mxu0
        %v642 = vadd.f32 %v593, %v641
        %v643 = vpop.f32.mrf.mxu0
        %v644 = vadd.f32 %v595, %v643
        %645 = vdwg.mxu0
        %v646 = vmax.f32 %v607, 0.0
        %v647 = vmax.f32 %v609, 0.0
        %v648 = vmax.f32 %v612, 0.0
        %v649 = vmax.f32 %v614, 0.0
        %v650 = vmax.f32 %v617, 0.0
        %v651 = vmax.f32 %v619, 0.0
        %v652 = vmax.f32 %v622, 0.0
        %v653 = vmax.f32 %v624, 0.0
        %v654 = vmax.f32 %v627, 0.0
        %v655 = vmax.f32 %v629, 0.0
        %v656 = vmax.f32 %v632, 0.0
        %v657 = vmax.f32 %v634, 0.0
        %v658 = vmax.f32 %v637, 0.0
        %v659 = vmax.f32 %v639, 0.0
        %v660 = vmax.f32 %v642, 0.0
        %v661 = vmax.f32 %v644, 0.0
        %vm662 = vcmask 519168
        %663 = vst.msk [vmem:[#allocation2] sm:$0xf] %vm662, 0
        %vm664 = vcmask 516096
        %665 = vst.msk [vmem:[#allocation2 + $0x4] sm:$0x1] %vm664, 0
        %666 = vst.msk [vmem:[#allocation2 + $0x50] sm:$0xf] %vm662, 0
        %667 = vst.msk [vmem:[#allocation2 + $0x54] sm:$0x1] %vm664, 0
        %s668 = scalar_lea.vmem [#allocation2], 72
        %669 = vst.msk [vmem:[%s668] sm:$0xf] %vm662, 0
        %670 = vst.msk [vmem:[%s668 + $0x4] sm:$0x1] %vm664, 0
        %671 = vst.msk [vmem:[%s668 + $0x50] sm:$0xf] %vm662, 0
        %672 = vst.msk [vmem:[%s668 + $0x54] sm:$0x1] %vm664, 0
        %s673 = scalar_lea.vmem [#allocation2], 8
        %vm674 = vcmask 516096
        %vm675 = vsmask.f32 256
        %vm676 = vmand %vm674, %vm675
        %v677 = vld [vmem:[%s673] sm:$0x1]
        %v678 = vsel %vm676, 0, %v677
        %679 = vst [vmem:[%s673] sm:$0x1] %v678
        %v680 = vld [vmem:[%s673 + $0x8] sm:$0x1]
        %v681 = vsel %vm676, 0, %v680
        %682 = vst [vmem:[%s673 + $0x8] sm:$0x1] %v681
        %v683 = vld [vmem:[%s673 + $0x10] sm:$0x1]
        %v684 = vsel %vm676, 0, %v683
        %685 = vst [vmem:[%s673 + $0x10] sm:$0x1] %v684
        %v686 = vld [vmem:[%s673 + $0x18] sm:$0x1]
        %v687 = vsel %vm676, 0, %v686
        %688 = vst [vmem:[%s673 + $0x18] sm:$0x1] %v687
        %v689 = vld [vmem:[%s673 + $0x20] sm:$0x1]
        %v690 = vsel %vm676, 0, %v689
        %691 = vst [vmem:[%s673 + $0x20] sm:$0x1] %v690
        %v692 = vld [vmem:[%s673 + $0x28] sm:$0x1]
        %v693 = vsel %vm676, 0, %v692
        %694 = vst [vmem:[%s673 + $0x28] sm:$0x1] %v693
        %v695 = vld [vmem:[%s673 + $0x30] sm:$0x1]
        %v696 = vsel %vm676, 0, %v695
        %697 = vst [vmem:[%s673 + $0x30] sm:$0x1] %v696
        %v698 = vld [vmem:[%s673 + $0x38] sm:$0x1]
        %v699 = vsel %vm676, 0, %v698
        %700 = vst [vmem:[%s673 + $0x38] sm:$0x1] %v699
        %v701 = vld [vmem:[%s673 + $0x50] sm:$0x1]
        %v702 = vsel %vm676, 0, %v701
        %703 = vst [vmem:[%s673 + $0x50] sm:$0x1] %v702
        %v704 = vld [vmem:[%s673 + $0x58] sm:$0x1]
        %v705 = vsel %vm676, 0, %v704
        %706 = vst [vmem:[%s673 + $0x58] sm:$0x1] %v705
        %v707 = vld [vmem:[%s673 + $0x60] sm:$0x1]
        %v708 = vsel %vm676, 0, %v707
        %709 = vst [vmem:[%s673 + $0x60] sm:$0x1] %v708
        %v710 = vld [vmem:[%s673 + $0x68] sm:$0x1]
        %v711 = vsel %vm676, 0, %v710
        %712 = vst [vmem:[%s673 + $0x68] sm:$0x1] %v711
        %v713 = vld [vmem:[%s673 + $0x70] sm:$0x1]
        %v714 = vsel %vm676, 0, %v713
        %715 = vst [vmem:[%s673 + $0x70] sm:$0x1] %v714
        %v716 = vld [vmem:[%s673 + $0x78] sm:$0x1]
        %v717 = vsel %vm676, 0, %v716
        %718 = vst [vmem:[%s673 + $0x78] sm:$0x1] %v717
        %v719 = vld [vmem:[%s673 + $0x80] sm:$0x1]
        %v720 = vsel %vm676, 0, %v719
        %721 = vst [vmem:[%s673 + $0x80] sm:$0x1] %v720
        %v722 = vld [vmem:[%s673 + $0x88] sm:$0x1]
        %v723 = vsel %vm676, 0, %v722
        %724 = vst [vmem:[%s673 + $0x88] sm:$0x1] %v723
        %vm725 = vsmask.f32 7938
        %vm726 = vmand %vm674, %vm725
        %v727 = vld [vmem:[%s673 + $0x4] sm:$0x1]
        %v728 = vsel %vm726, 0, %v727
        %729 = vst [vmem:[%s673 + $0x4] sm:$0x1] %v728
        %v730 = vld [vmem:[%s673 + $0xc] sm:$0x1]
        %v731 = vsel %vm726, 0, %v730
        %732 = vst [vmem:[%s673 + $0xc] sm:$0x1] %v731
        %v733 = vld [vmem:[%s673 + $0x14] sm:$0x1]
        %v734 = vsel %vm726, 0, %v733
        %735 = vst [vmem:[%s673 + $0x14] sm:$0x1] %v734
        %v736 = vld [vmem:[%s673 + $0x1c] sm:$0x1]
        %v737 = vsel %vm726, 0, %v736
        %738 = vst [vmem:[%s673 + $0x1c] sm:$0x1] %v737
        %v739 = vld [vmem:[%s673 + $0x24] sm:$0x1]
        %v740 = vsel %vm726, 0, %v739
        %741 = vst [vmem:[%s673 + $0x24] sm:$0x1] %v740
        %v742 = vld [vmem:[%s673 + $0x2c] sm:$0x1]
        %v743 = vsel %vm726, 0, %v742
        %744 = vst [vmem:[%s673 + $0x2c] sm:$0x1] %v743
        %v745 = vld [vmem:[%s673 + $0x34] sm:$0x1]
        %v746 = vsel %vm726, 0, %v745
        %747 = vst [vmem:[%s673 + $0x34] sm:$0x1] %v746
        %v748 = vld [vmem:[%s673 + $0x3c] sm:$0x1]
        %v749 = vsel %vm726, 0, %v748
        %750 = vst [vmem:[%s673 + $0x3c] sm:$0x1] %v749
        %v751 = vld [vmem:[%s673 + $0x54] sm:$0x1]
        %v752 = vsel %vm726, 0, %v751
        %753 = vst [vmem:[%s673 + $0x54] sm:$0x1] %v752
        %v754 = vld [vmem:[%s673 + $0x5c] sm:$0x1]
        %v755 = vsel %vm726, 0, %v754
        %756 = vst [vmem:[%s673 + $0x5c] sm:$0x1] %v755
        %v757 = vld [vmem:[%s673 + $0x64] sm:$0x1]
        %v758 = vsel %vm726, 0, %v757
        %759 = vst [vmem:[%s673 + $0x64] sm:$0x1] %v758
        %v760 = vld [vmem:[%s673 + $0x6c] sm:$0x1]
        %v761 = vsel %vm726, 0, %v760
        %762 = vst [vmem:[%s673 + $0x6c] sm:$0x1] %v761
        %v763 = vld [vmem:[%s673 + $0x74] sm:$0x1]
        %v764 = vsel %vm726, 0, %v763
        %765 = vst [vmem:[%s673 + $0x74] sm:$0x1] %v764
        %v766 = vld [vmem:[%s673 + $0x7c] sm:$0x1]
        %v767 = vsel %vm726, 0, %v766
        %768 = vst [vmem:[%s673 + $0x7c] sm:$0x1] %v767
        %v769 = vld [vmem:[%s673 + $0x84] sm:$0x1]
        %v770 = vsel %vm726, 0, %v769
        %771 = vst [vmem:[%s673 + $0x84] sm:$0x1] %v770
        %v772 = vld [vmem:[%s673 + $0x8c] sm:$0x1]
        %v773 = vsel %vm726, 0, %v772
        %774 = vst [vmem:[%s673 + $0x8c] sm:$0x1] %v773
        %v775 = vpack.c.bf16 %v646, %v646
        %v776 = vpack.c.bf16 %v647, %v647
        %v777 = vpack.c.bf16 %v648, %v648
        %v778 = vpack.c.bf16 %v649, %v649
        %v779 = vpack.c.bf16 %v650, %v650
        %v780 = vpack.c.bf16 %v651, %v651
        %v781 = vpack.c.bf16 %v652, %v652
        %v782 = vpack.c.bf16 %v653, %v653
        %v783 = vpack.c.bf16 %v654, %v654
        %v784 = vpack.c.bf16 %v655, %v655
        %v785 = vpack.c.bf16 %v656, %v656
        %v786 = vpack.c.bf16 %v657, %v657
        %v787 = vpack.c.bf16 %v658, %v658
        %v788 = vpack.c.bf16 %v659, %v659
        %v789 = vpack.c.bf16 %v660, %v660
        %v790 = vpack.c.bf16 %v661, %v661
        %v792 = vshrl.u32 %v775, 16
        %v794 = vrot.slane %v792, 7
        %v795 = vshll.u32 %v775, 16
        %v797 = vor.u32 %v794, %v795
        %v798 = vrot.slane %v794, 4
        %v800 = vshrl.u32 %v776, 16
        %v802 = vrot.slane %v800, 7
        %v803 = vshll.u32 %v776, 16
        %v805 = vor.u32 %v802, %v803
        %v806 = vrot.slane %v802, 4
        %v808 = vshrl.u32 %v777, 16
        %v810 = vrot.slane %v808, 7
        %v811 = vshll.u32 %v777, 16
        %v813 = vor.u32 %v810, %v811
        %v814 = vrot.slane %v810, 4
        %v816 = vshrl.u32 %v778, 16
        %v818 = vrot.slane %v816, 7
        %v819 = vshll.u32 %v778, 16
        %v821 = vor.u32 %v818, %v819
        %v822 = vrot.slane %v818, 4
        %v824 = vshrl.u32 %v779, 16
        %v826 = vrot.slane %v824, 7
        %v827 = vshll.u32 %v779, 16
        %v829 = vor.u32 %v826, %v827
        %v830 = vrot.slane %v826, 4
        %v832 = vshrl.u32 %v780, 16
        %v834 = vrot.slane %v832, 7
        %v835 = vshll.u32 %v780, 16
        %v837 = vor.u32 %v834, %v835
        %v838 = vrot.slane %v834, 4
        %v840 = vshrl.u32 %v781, 16
        %v842 = vrot.slane %v840, 7
        %v843 = vshll.u32 %v781, 16
        %v845 = vor.u32 %v842, %v843
        %v846 = vrot.slane %v842, 4
        %v848 = vshrl.u32 %v782, 16
        %v850 = vrot.slane %v848, 7
        %v851 = vshll.u32 %v782, 16
        %v853 = vor.u32 %v850, %v851
        %v854 = vrot.slane %v850, 4
        %v856 = vshrl.u32 %v783, 16
        %v858 = vrot.slane %v856, 7
        %v859 = vshll.u32 %v783, 16
        %v861 = vor.u32 %v858, %v859
        %v862 = vrot.slane %v858, 4
        %v864 = vshrl.u32 %v784, 16
        %v866 = vrot.slane %v864, 7
        %v867 = vshll.u32 %v784, 16
        %v869 = vor.u32 %v866, %v867
        %v870 = vrot.slane %v866, 4
        %v872 = vshrl.u32 %v785, 16
        %v874 = vrot.slane %v872, 7
        %v875 = vshll.u32 %v785, 16
        %v877 = vor.u32 %v874, %v875
        %v878 = vrot.slane %v874, 4
        %v880 = vshrl.u32 %v786, 16
        %v882 = vrot.slane %v880, 7
        %v883 = vshll.u32 %v786, 16
        %v885 = vor.u32 %v882, %v883
        %v886 = vrot.slane %v882, 4
        %v888 = vshrl.u32 %v787, 16
        %v890 = vrot.slane %v888, 7
        %v891 = vshll.u32 %v787, 16
        %v893 = vor.u32 %v890, %v891
        %v894 = vrot.slane %v890, 4
        %v896 = vshrl.u32 %v788, 16
        %v898 = vrot.slane %v896, 7
        %v899 = vshll.u32 %v788, 16
        %v901 = vor.u32 %v898, %v899
        %v902 = vrot.slane %v898, 4
        %v904 = vshrl.u32 %v789, 16
        %v906 = vrot.slane %v904, 7
        %v907 = vshll.u32 %v789, 16
        %v909 = vor.u32 %v906, %v907
        %v910 = vrot.slane %v906, 4
        %v912 = vshrl.u32 %v790, 16
        %v914 = vrot.slane %v912, 7
        %v915 = vshll.u32 %v790, 16
        %v917 = vor.u32 %v914, %v915
        %v918 = vrot.slane %v914, 4
        %vm951 = vcmask 519168
        %vm952 = vmand %vm951, %vm725
        %v953 = vld [vmem:[%s673] sm:$0xf]
        %v954 = vsel %vm952, %v797, %v953
        %955 = vst [vmem:[%s673] sm:$0xf] %v954
        %v956 = vld [vmem:[%s673 + $0x4] sm:$0x1]
        %v957 = vsel %vm676, %v798, %v956
        %958 = vst [vmem:[%s673 + $0x4] sm:$0x1] %v957
        %v959 = vld [vmem:[%s673 + $0x8] sm:$0xf]
        %v960 = vsel %vm952, %v805, %v959
        %961 = vst [vmem:[%s673 + $0x8] sm:$0xf] %v960
        %v962 = vld [vmem:[%s673 + $0xc] sm:$0x1]
        %v963 = vsel %vm676, %v806, %v962
        %964 = vst [vmem:[%s673 + $0xc] sm:$0x1] %v963
        %v965 = vld [vmem:[%s673 + $0x10] sm:$0xf]
        %v966 = vsel %vm952, %v813, %v965
        %967 = vst [vmem:[%s673 + $0x10] sm:$0xf] %v966
        %v968 = vld [vmem:[%s673 + $0x14] sm:$0x1]
        %v969 = vsel %vm676, %v814, %v968
        %970 = vst [vmem:[%s673 + $0x14] sm:$0x1] %v969
        %v971 = vld [vmem:[%s673 + $0x18] sm:$0xf]
        %v972 = vsel %vm952, %v821, %v971
        %973 = vst [vmem:[%s673 + $0x18] sm:$0xf] %v972
        %v974 = vld [vmem:[%s673 + $0x1c] sm:$0x1]
        %v975 = vsel %vm676, %v822, %v974
        %976 = vst [vmem:[%s673 + $0x1c] sm:$0x1] %v975
        %v977 = vld [vmem:[%s673 + $0x20] sm:$0xf]
        %v978 = vsel %vm952, %v829, %v977
        %979 = vst [vmem:[%s673 + $0x20] sm:$0xf] %v978
        %v980 = vld [vmem:[%s673 + $0x24] sm:$0x1]
        %v981 = vsel %vm676, %v830, %v980
        %982 = vst [vmem:[%s673 + $0x24] sm:$0x1] %v981
        %v983 = vld [vmem:[%s673 + $0x28] sm:$0xf]
        %v984 = vsel %vm952, %v837, %v983
        %985 = vst [vmem:[%s673 + $0x28] sm:$0xf] %v984
        %v986 = vld [vmem:[%s673 + $0x2c] sm:$0x1]
        %v987 = vsel %vm676, %v838, %v986
        %988 = vst [vmem:[%s673 + $0x2c] sm:$0x1] %v987
        %v989 = vld [vmem:[%s673 + $0x30] sm:$0xf]
        %v990 = vsel %vm952, %v845, %v989
        %991 = vst [vmem:[%s673 + $0x30] sm:$0xf] %v990
        %v992 = vld [vmem:[%s673 + $0x34] sm:$0x1]
        %v993 = vsel %vm676, %v846, %v992
        %994 = vst [vmem:[%s673 + $0x34] sm:$0x1] %v993
        %v995 = vld [vmem:[%s673 + $0x38] sm:$0xf]
        %v996 = vsel %vm952, %v853, %v995
        %997 = vst [vmem:[%s673 + $0x38] sm:$0xf] %v996
        %v998 = vld [vmem:[%s673 + $0x3c] sm:$0x1]
        %v999 = vsel %vm676, %v854, %v998
        %1000 = vst [vmem:[%s673 + $0x3c] sm:$0x1] %v999
        %v1001 = vld [vmem:[%s673 + $0x50] sm:$0xf]
        %v1002 = vsel %vm952, %v861, %v1001
        %1003 = vst [vmem:[%s673 + $0x50] sm:$0xf] %v1002
        %v1004 = vld [vmem:[%s673 + $0x54] sm:$0x1]
        %v1005 = vsel %vm676, %v862, %v1004
        %1006 = vst [vmem:[%s673 + $0x54] sm:$0x1] %v1005
        %v1007 = vld [vmem:[%s673 + $0x58] sm:$0xf]
        %v1008 = vsel %vm952, %v869, %v1007
        %1009 = vst [vmem:[%s673 + $0x58] sm:$0xf] %v1008
        %v1010 = vld [vmem:[%s673 + $0x5c] sm:$0x1]
        %v1011 = vsel %vm676, %v870, %v1010
        %1012 = vst [vmem:[%s673 + $0x5c] sm:$0x1] %v1011
        %v1013 = vld [vmem:[%s673 + $0x60] sm:$0xf]
        %v1014 = vsel %vm952, %v877, %v1013
        %1015 = vst [vmem:[%s673 + $0x60] sm:$0xf] %v1014
        %v1016 = vld [vmem:[%s673 + $0x64] sm:$0x1]
        %v1017 = vsel %vm676, %v878, %v1016
        %1018 = vst [vmem:[%s673 + $0x64] sm:$0x1] %v1017
        %v1019 = vld [vmem:[%s673 + $0x68] sm:$0xf]
        %v1020 = vsel %vm952, %v885, %v1019
        %1021 = vst [vmem:[%s673 + $0x68] sm:$0xf] %v1020
        %v1022 = vld [vmem:[%s673 + $0x6c] sm:$0x1]
        %v1023 = vsel %vm676, %v886, %v1022
        %1024 = vst [vmem:[%s673 + $0x6c] sm:$0x1] %v1023
        %v1025 = vld [vmem:[%s673 + $0x70] sm:$0xf]
        %v1026 = vsel %vm952, %v893, %v1025
        %1027 = vst [vmem:[%s673 + $0x70] sm:$0xf] %v1026
        %v1028 = vld [vmem:[%s673 + $0x74] sm:$0x1]
        %v1029 = vsel %vm676, %v894, %v1028
        %1030 = vst [vmem:[%s673 + $0x74] sm:$0x1] %v1029
        %v1031 = vld [vmem:[%s673 + $0x78] sm:$0xf]
        %v1032 = vsel %vm952, %v901, %v1031
        %1033 = vst [vmem:[%s673 + $0x78] sm:$0xf] %v1032
        %v1034 = vld [vmem:[%s673 + $0x7c] sm:$0x1]
        %v1035 = vsel %vm676, %v902, %v1034
        %1036 = vst [vmem:[%s673 + $0x7c] sm:$0x1] %v1035
        %v1037 = vld [vmem:[%s673 + $0x80] sm:$0xf]
        %v1038 = vsel %vm952, %v909, %v1037
        %1039 = vst [vmem:[%s673 + $0x80] sm:$0xf] %v1038
        %v1040 = vld [vmem:[%s673 + $0x84] sm:$0x1]
        %v1041 = vsel %vm676, %v910, %v1040
        %1042 = vst [vmem:[%s673 + $0x84] sm:$0x1] %v1041
        %v1043 = vld [vmem:[%s673 + $0x88] sm:$0xf]
        %v1044 = vsel %vm952, %v917, %v1043
        %1045 = vst [vmem:[%s673 + $0x88] sm:$0xf] %v1044
        %v1046 = vld [vmem:[%s673 + $0x8c] sm:$0x1]
        %v1047 = vsel %vm676, %v918, %v1046
        %1048 = vst [vmem:[%s673 + $0x8c] sm:$0x1] %v1047
        %v1049 = vld [vmem:[#allocation2] sm:$0xf]
        %v1050 = vld [vmem:[#allocation2 + $0x8] sm:$0xf]
        %v1051 = vld [vmem:[#allocation2 + $0x10] sm:$0xf]
        %v1052 = vld [vmem:[#allocation2 + $0x18] sm:$0xf]
        %v1053 = vld [vmem:[#allocation2 + $0x20] sm:$0xf]
        %v1054 = vld [vmem:[#allocation2 + $0x28] sm:$0xf]
        %v1055 = vld [vmem:[#allocation2 + $0x30] sm:$0xf]
        %v1056 = vld [vmem:[#allocation2 + $0x38] sm:$0xf]
        %v1057 = vld [vmem:[#allocation2 + $0x50] sm:$0xf]
        %v1058 = vld [vmem:[#allocation2 + $0x58] sm:$0xf]
        %v1059 = vld [vmem:[#allocation2 + $0x60] sm:$0xf]
        %v1060 = vld [vmem:[#allocation2 + $0x68] sm:$0xf]
        %v1061 = vld [vmem:[#allocation2 + $0x70] sm:$0xf]
        %v1062 = vld [vmem:[#allocation2 + $0x78] sm:$0xf]
        %v1063 = vld [vmem:[#allocation2 + $0x80] sm:$0xf]
        %v1064 = vld [vmem:[#allocation2 + $0x88] sm:$0xf]
        %v1065 = vld [vmem:[#allocation6] sm:$0xf]
        %v1066 = vld [vmem:[#allocation6 + $0x4] sm:$0xf]
        %v1067 = vld [vmem:[#allocation6 + $0x8] sm:$0xf]
        %v1068 = vld [vmem:[#allocation6 + $0xc] sm:$0xf]
        %v1069 = vld [vmem:[#allocation6 + $0x10] sm:$0xf]
        %v1070 = vld [vmem:[#allocation6 + $0x14] sm:$0xf]
        %v1071 = vld [vmem:[#allocation6 + $0x18] sm:$0xf]
        %v1072 = vld [vmem:[#allocation6 + $0x1c] sm:$0xf]
        %v1073 = vld [vmem:[#allocation2 + $0x4] sm:$0x1]
        %v1074 = vld [vmem:[#allocation2 + $0xc] sm:$0x1]
        %v1075 = vld [vmem:[#allocation2 + $0x14] sm:$0x1]
        %v1076 = vld [vmem:[#allocation2 + $0x1c] sm:$0x1]
        %v1077 = vld [vmem:[#allocation2 + $0x24] sm:$0x1]
        %v1078 = vld [vmem:[#allocation2 + $0x2c] sm:$0x1]
        %v1079 = vld [vmem:[#allocation2 + $0x34] sm:$0x1]
        %v1080 = vld [vmem:[#allocation2 + $0x3c] sm:$0x1]
        %v1081 = vld [vmem:[#allocation2 + $0x54] sm:$0x1]
        %v1082 = vld [vmem:[#allocation2 + $0x5c] sm:$0x1]
        %v1083 = vld [vmem:[#allocation2 + $0x64] sm:$0x1]
        %v1084 = vld [vmem:[#allocation2 + $0x6c] sm:$0x1]
        %v1085 = vld [vmem:[#allocation2 + $0x74] sm:$0x1]
        %v1086 = vld [vmem:[#allocation2 + $0x7c] sm:$0x1]
        %v1087 = vld [vmem:[#allocation2 + $0x84] sm:$0x1]
        %v1088 = vld [vmem:[#allocation2 + $0x8c] sm:$0x1]
        %vm1089 = vsmask.f32 3328
        %vm1090 = vsmask.f32 7440
        %vm1091 = vmor %vm1089, %vm1090
        %v1093 = vshrl.u32 %v1049, 16
        %v1095 = vrot.slane %v1093, 4
        %v1096 = vshll.u32 %v1049, 16
        %v1098 = vrot.slane %v1096, 5
        %v1099 = vor.u32 %v1095, %v1098
        %v1100 = vrot.slane %v1099, 4
        %v1102 = vshll.u32 %v1073, 16
        %v1104 = vrot.slane %v1102, 5
        %v1105 = vsel %vm1091, %v1100, %v1104
        %v1107 = vshrl.u32 %v1050, 16
        %v1109 = vrot.slane %v1107, 4
        %v1110 = vshll.u32 %v1050, 16
        %v1112 = vrot.slane %v1110, 5
        %v1113 = vor.u32 %v1109, %v1112
        %v1114 = vrot.slane %v1113, 4
        %v1116 = vshll.u32 %v1074, 16
        %v1118 = vrot.slane %v1116, 5
        %v1119 = vsel %vm1091, %v1114, %v1118
        %v1121 = vshrl.u32 %v1051, 16
        %v1123 = vrot.slane %v1121, 4
        %v1124 = vshll.u32 %v1051, 16
        %v1126 = vrot.slane %v1124, 5
        %v1127 = vor.u32 %v1123, %v1126
        %v1128 = vrot.slane %v1127, 4
        %v1130 = vshll.u32 %v1075, 16
        %v1132 = vrot.slane %v1130, 5
        %v1133 = vsel %vm1091, %v1128, %v1132
        %v1135 = vshrl.u32 %v1052, 16
        %v1137 = vrot.slane %v1135, 4
        %v1138 = vshll.u32 %v1052, 16
        %v1140 = vrot.slane %v1138, 5
        %v1141 = vor.u32 %v1137, %v1140
        %v1142 = vrot.slane %v1141, 4
        %v1144 = vshll.u32 %v1076, 16
        %v1146 = vrot.slane %v1144, 5
        %v1147 = vsel %vm1091, %v1142, %v1146
        %v1149 = vshrl.u32 %v1053, 16
        %v1151 = vrot.slane %v1149, 4
        %v1152 = vshll.u32 %v1053, 16
        %v1154 = vrot.slane %v1152, 5
        %v1155 = vor.u32 %v1151, %v1154
        %v1156 = vrot.slane %v1155, 4
        %v1158 = vshll.u32 %v1077, 16
        %v1160 = vrot.slane %v1158, 5
        %v1161 = vsel %vm1091, %v1156, %v1160
        %v1163 = vshrl.u32 %v1054, 16
        %v1165 = vrot.slane %v1163, 4
        %v1166 = vshll.u32 %v1054, 16
        %v1168 = vrot.slane %v1166, 5
        %v1169 = vor.u32 %v1165, %v1168
        %v1170 = vrot.slane %v1169, 4
        %v1172 = vshll.u32 %v1078, 16
        %v1174 = vrot.slane %v1172, 5
        %v1175 = vsel %vm1091, %v1170, %v1174
        %v1177 = vshrl.u32 %v1055, 16
        %v1179 = vrot.slane %v1177, 4
        %v1180 = vshll.u32 %v1055, 16
        %v1182 = vrot.slane %v1180, 5
        %v1183 = vor.u32 %v1179, %v1182
        %v1184 = vrot.slane %v1183, 4
        %v1186 = vshll.u32 %v1079, 16
        %v1188 = vrot.slane %v1186, 5
        %v1189 = vsel %vm1091, %v1184, %v1188
        %v1191 = vshrl.u32 %v1056, 16
        %v1193 = vrot.slane %v1191, 4
        %v1194 = vshll.u32 %v1056, 16
        %v1196 = vrot.slane %v1194, 5
        %v1197 = vor.u32 %v1193, %v1196
        %v1198 = vrot.slane %v1197, 4
        %v1200 = vshll.u32 %v1080, 16
        %v1202 = vrot.slane %v1200, 5
        %v1203 = vsel %vm1091, %v1198, %v1202
        %v1205 = vshrl.u32 %v1057, 16
        %v1207 = vrot.slane %v1205, 4
        %v1208 = vshll.u32 %v1057, 16
        %v1210 = vrot.slane %v1208, 5
        %v1211 = vor.u32 %v1207, %v1210
        %v1212 = vrot.slane %v1211, 4
        %v1214 = vshll.u32 %v1081, 16
        %v1216 = vrot.slane %v1214, 5
        %v1217 = vsel %vm1091, %v1212, %v1216
        %v1219 = vshrl.u32 %v1058, 16
        %v1221 = vrot.slane %v1219, 4
        %v1222 = vshll.u32 %v1058, 16
        %v1224 = vrot.slane %v1222, 5
        %v1225 = vor.u32 %v1221, %v1224
        %v1226 = vrot.slane %v1225, 4
        %v1228 = vshll.u32 %v1082, 16
        %v1230 = vrot.slane %v1228, 5
        %v1231 = vsel %vm1091, %v1226, %v1230
        %v1233 = vshrl.u32 %v1059, 16
        %v1235 = vrot.slane %v1233, 4
        %v1236 = vshll.u32 %v1059, 16
        %v1238 = vrot.slane %v1236, 5
        %v1239 = vor.u32 %v1235, %v1238
        %v1240 = vrot.slane %v1239, 4
        %v1242 = vshll.u32 %v1083, 16
        %v1244 = vrot.slane %v1242, 5
        %v1245 = vsel %vm1091, %v1240, %v1244
        %v1247 = vshrl.u32 %v1060, 16
        %v1249 = vrot.slane %v1247, 4
        %v1250 = vshll.u32 %v1060, 16
        %v1252 = vrot.slane %v1250, 5
        %v1253 = vor.u32 %v1249, %v1252
        %v1254 = vrot.slane %v1253, 4
        %v1256 = vshll.u32 %v1084, 16
        %v1258 = vrot.slane %v1256, 5
        %v1259 = vsel %vm1091, %v1254, %v1258
        %v1261 = vshrl.u32 %v1061, 16
        %v1263 = vrot.slane %v1261, 4
        %v1264 = vshll.u32 %v1061, 16
        %v1266 = vrot.slane %v1264, 5
        %v1267 = vor.u32 %v1263, %v1266
        %v1268 = vrot.slane %v1267, 4
        %v1270 = vshll.u32 %v1085, 16
        %v1272 = vrot.slane %v1270, 5
        %v1273 = vsel %vm1091, %v1268, %v1272
        %v1275 = vshrl.u32 %v1062, 16
        %v1277 = vrot.slane %v1275, 4
        %v1278 = vshll.u32 %v1062, 16
        %v1280 = vrot.slane %v1278, 5
        %v1281 = vor.u32 %v1277, %v1280
        %v1282 = vrot.slane %v1281, 4
        %v1284 = vshll.u32 %v1086, 16
        %v1286 = vrot.slane %v1284, 5
        %v1287 = vsel %vm1091, %v1282, %v1286
        %v1289 = vshrl.u32 %v1063, 16
        %v1291 = vrot.slane %v1289, 4
        %v1292 = vshll.u32 %v1063, 16
        %v1294 = vrot.slane %v1292, 5
        %v1295 = vor.u32 %v1291, %v1294
        %v1296 = vrot.slane %v1295, 4
        %v1298 = vshll.u32 %v1087, 16
        %v1300 = vrot.slane %v1298, 5
        %v1301 = vsel %vm1091, %v1296, %v1300
        %v1303 = vshrl.u32 %v1064, 16
        %v1305 = vrot.slane %v1303, 4
        %v1306 = vshll.u32 %v1064, 16
        %v1308 = vrot.slane %v1306, 5
        %v1309 = vor.u32 %v1305, %v1308
        %v1310 = vrot.slane %v1309, 4
        %v1312 = vshll.u32 %v1088, 16
        %v1314 = vrot.slane %v1312, 5
        %v1315 = vsel %vm1091, %v1310, %v1314
        %s1316 = scalar_lea.vmem [#allocation6], 32
        %v1317 = vld [vmem:[%s1316] sm:$0xf]
        %v1318 = vld [vmem:[%s1316 + $0x4] sm:$0xf]
        %v1319 = vld [vmem:[%s1316 + $0x8] sm:$0xf]
        %v1320 = vld [vmem:[%s1316 + $0xc] sm:$0xf]
        %v1321 = vld [vmem:[%s1316 + $0x10] sm:$0xf]
        %v1322 = vld [vmem:[%s1316 + $0x14] sm:$0xf]
        %v1323 = vld [vmem:[%s1316 + $0x18] sm:$0xf]
        %v1324 = vld [vmem:[%s1316 + $0x1c] sm:$0xf]
        %v1325 = vunpack.c.l.b16 %v1105
        %v1326 = vunpack.c.l.b16 %v1119
        %v1327 = vunpack.c.l.b16 %v1133
        %v1328 = vunpack.c.l.b16 %v1147
        %v1329 = vunpack.c.l.b16 %v1161
        %v1330 = vunpack.c.l.b16 %v1175
        %v1331 = vunpack.c.l.b16 %v1189
        %v1332 = vunpack.c.l.b16 %v1203
        %v1333 = vunpack.c.l.b16 %v1217
        %v1334 = vunpack.c.l.b16 %v1231
        %v1335 = vunpack.c.l.b16 %v1245
        %v1336 = vunpack.c.l.b16 %v1259
        %v1337 = vunpack.c.l.b16 %v1273
        %v1338 = vunpack.c.l.b16 %v1287
        %v1339 = vunpack.c.l.b16 %v1301
        %v1340 = vunpack.c.l.b16 %v1315
        %v1341 = vpack.c.b16 %v1326, %v1325
        %v1342 = vpack.c.b16 %v1328, %v1327
        %v1343 = vpack.c.b16 %v1330, %v1329
        %v1344 = vpack.c.b16 %v1332, %v1331
        %v1345 = vpack.c.b16 %v1334, %v1333
        %v1346 = vpack.c.b16 %v1336, %v1335
        %v1347 = vpack.c.b16 %v1338, %v1337
        %v1348 = vpack.c.b16 %v1340, %v1339
        %v1357 = vunpack.c.l.b16 %v1317
        %v1358 = vunpack.c.l.b16 %v1318
        %v1359 = vunpack.c.l.b16 %v1319
        %v1360 = vunpack.c.l.b16 %v1320
        %v1361 = vunpack.c.l.b16 %v1321
        %v1362 = vunpack.c.l.b16 %v1322
        %v1363 = vunpack.c.l.b16 %v1323
        %v1364 = vunpack.c.l.b16 %v1324
        %v1365 = vpack.c.b16 %v1358, %v1357
        %v1366 = vpack.c.b16 %v1360, %v1359
        %v1367 = vpack.c.b16 %v1362, %v1361
        %v1368 = vpack.c.b16 %v1364, %v1363
        %vm1373 = vcmask 523264
        %v1375 = vsel %vm1373, %v1341, 0
        %v1378 = vsel %vm1373, %v1342, 0
        %v1381 = vsel %vm1373, %v1343, 0
        %v1384 = vsel %vm1373, %v1344, 0
        %v1387 = vsel %vm1373, %v1345, 0
        %v1390 = vsel %vm1373, %v1346, 0
        %v1393 = vsel %vm1373, %v1347, 0
        %v1396 = vsel %vm1373, %v1348, 0
        %1398 = vmatpush.bf16.msra.mxu0 0
        %1399 = vmatpush.bf16.msra.mxu0 0
        %1400 = vmatpush.bf16.msra.mxu0 0
        %1401 = vmatpush.bf16.msra.mxu0 0
        %1402 = vmatpush.bf16.msra.mxu0 %v1368
        %1403 = vmatpush.bf16.msra.mxu0 %v1367
        %1404 = vmatpush.bf16.msra.mxu0 %v1366
        %1405 = vmatpush.bf16.msra.mxu0 %v1365
        %1406 = vmatmul.bf16.gmra.mxu0 %v1375
        %v1407 = vpop.f32.mrf.mxu0
        %v1408 = vadd.f32 0.0, %v1407
        %v1409 = vpop.f32.mrf.mxu0
        %v1410 = vadd.f32 0.0, %v1409
        %1411 = vmatmul.bf16.gmra.mxu0 %v1378
        %v1412 = vpop.f32.mrf.mxu0
        %v1413 = vadd.f32 0.0, %v1412
        %v1414 = vpop.f32.mrf.mxu0
        %v1415 = vadd.f32 0.0, %v1414
        %1416 = vmatmul.bf16.gmra.mxu0 %v1381
        %v1417 = vpop.f32.mrf.mxu0
        %v1418 = vadd.f32 0.0, %v1417
        %v1419 = vpop.f32.mrf.mxu0
        %v1420 = vadd.f32 0.0, %v1419
        %1421 = vmatmul.bf16.gmra.mxu0 %v1384
        %v1422 = vpop.f32.mrf.mxu0
        %v1423 = vadd.f32 0.0, %v1422
        %v1424 = vpop.f32.mrf.mxu0
        %v1425 = vadd.f32 0.0, %v1424
        %1426 = vmatmul.bf16.gmra.mxu0 %v1387
        %v1427 = vpop.f32.mrf.mxu0
        %v1428 = vadd.f32 0.0, %v1427
        %v1429 = vpop.f32.mrf.mxu0
        %v1430 = vadd.f32 0.0, %v1429
        %1431 = vmatmul.bf16.gmra.mxu0 %v1390
        %v1432 = vpop.f32.mrf.mxu0
        %v1433 = vadd.f32 0.0, %v1432
        %v1434 = vpop.f32.mrf.mxu0
        %v1435 = vadd.f32 0.0, %v1434
        %1436 = vmatmul.bf16.gmra.mxu0 %v1393
        %v1437 = vpop.f32.mrf.mxu0
        %v1438 = vadd.f32 0.0, %v1437
        %v1439 = vpop.f32.mrf.mxu0
        %v1440 = vadd.f32 0.0, %v1439
        %1441 = vmatmul.bf16.gmra.mxu0 %v1396
        %v1442 = vpop.f32.mrf.mxu0
        %v1443 = vadd.f32 0.0, %v1442
        %v1444 = vpop.f32.mrf.mxu0
        %v1445 = vadd.f32 0.0, %v1444
        %1446 = vdwg.mxu0
        %v1463 = vunpack.c.l.b16 %v1049
        %v1464 = vunpack.c.l.b16 %v1050
        %v1465 = vunpack.c.l.b16 %v1051
        %v1466 = vunpack.c.l.b16 %v1052
        %v1467 = vunpack.c.l.b16 %v1053
        %v1468 = vunpack.c.l.b16 %v1054
        %v1469 = vunpack.c.l.b16 %v1055
        %v1470 = vunpack.c.l.b16 %v1056
        %v1471 = vunpack.c.l.b16 %v1057
        %v1472 = vunpack.c.l.b16 %v1058
        %v1473 = vunpack.c.l.b16 %v1059
        %v1474 = vunpack.c.l.b16 %v1060
        %v1475 = vunpack.c.l.b16 %v1061
        %v1476 = vunpack.c.l.b16 %v1062
        %v1477 = vunpack.c.l.b16 %v1063
        %v1478 = vunpack.c.l.b16 %v1064
        %v1479 = vpack.c.b16 %v1464, %v1463
        %v1480 = vpack.c.b16 %v1466, %v1465
        %v1481 = vpack.c.b16 %v1468, %v1467
        %v1482 = vpack.c.b16 %v1470, %v1469
        %v1483 = vpack.c.b16 %v1472, %v1471
        %v1484 = vpack.c.b16 %v1474, %v1473
        %v1485 = vpack.c.b16 %v1476, %v1475
        %v1486 = vpack.c.b16 %v1478, %v1477
        %v1495 = vunpack.c.l.b16 %v1065
        %v1496 = vunpack.c.l.b16 %v1066
        %v1497 = vunpack.c.l.b16 %v1067
        %v1498 = vunpack.c.l.b16 %v1068
        %v1499 = vunpack.c.l.b16 %v1069
        %v1500 = vunpack.c.l.b16 %v1070
        %v1501 = vunpack.c.l.b16 %v1071
        %v1502 = vunpack.c.l.b16 %v1072
        %v1503 = vpack.c.b16 %v1496, %v1495
        %v1504 = vpack.c.b16 %v1498, %v1497
        %v1505 = vpack.c.b16 %v1500, %v1499
        %v1506 = vpack.c.b16 %v1502, %v1501
        %v1512 = vsel %vm1373, %v1479, 0
        %v1515 = vsel %vm1373, %v1480, 0
        %v1518 = vsel %vm1373, %v1481, 0
        %v1521 = vsel %vm1373, %v1482, 0
        %v1524 = vsel %vm1373, %v1483, 0
        %v1527 = vsel %vm1373, %v1484, 0
        %v1530 = vsel %vm1373, %v1485, 0
        %v1533 = vsel %vm1373, %v1486, 0
        %1535 = vmatpush.bf16.msra.mxu0 0
        %1536 = vmatpush.bf16.msra.mxu0 0
        %1537 = vmatpush.bf16.msra.mxu0 0
        %1538 = vmatpush.bf16.msra.mxu0 0
        %1539 = vmatpush.bf16.msra.mxu0 %v1506
        %1540 = vmatpush.bf16.msra.mxu0 %v1505
        %1541 = vmatpush.bf16.msra.mxu0 %v1504
        %1542 = vmatpush.bf16.msra.mxu0 %v1503
        %1543 = vmatmul.bf16.gmra.mxu0 %v1512
        %v1544 = vpop.f32.mrf.mxu0
        %v1545 = vadd.f32 %v1408, %v1544
        %v1546 = vpop.f32.mrf.mxu0
        %v1547 = vadd.f32 %v1410, %v1546
        %1548 = vmatmul.bf16.gmra.mxu0 %v1515
        %v1549 = vpop.f32.mrf.mxu0
        %v1550 = vadd.f32 %v1413, %v1549
        %v1551 = vpop.f32.mrf.mxu0
        %v1552 = vadd.f32 %v1415, %v1551
        %1553 = vmatmul.bf16.gmra.mxu0 %v1518
        %v1554 = vpop.f32.mrf.mxu0
        %v1555 = vadd.f32 %v1418, %v1554
        %v1556 = vpop.f32.mrf.mxu0
        %v1557 = vadd.f32 %v1420, %v1556
        %1558 = vmatmul.bf16.gmra.mxu0 %v1521
        %v1559 = vpop.f32.mrf.mxu0
        %v1560 = vadd.f32 %v1423, %v1559
        %v1561 = vpop.f32.mrf.mxu0
        %v1562 = vadd.f32 %v1425, %v1561
        %1563 = vmatmul.bf16.gmra.mxu0 %v1524
        %v1564 = vpop.f32.mrf.mxu0
        %v1565 = vadd.f32 %v1428, %v1564
        %v1566 = vpop.f32.mrf.mxu0
        %v1567 = vadd.f32 %v1430, %v1566
        %1568 = vmatmul.bf16.gmra.mxu0 %v1527
        %v1569 = vpop.f32.mrf.mxu0
        %v1570 = vadd.f32 %v1433, %v1569
        %v1571 = vpop.f32.mrf.mxu0
        %v1572 = vadd.f32 %v1435, %v1571
        %1573 = vmatmul.bf16.gmra.mxu0 %v1530
        %v1574 = vpop.f32.mrf.mxu0
        %v1575 = vadd.f32 %v1438, %v1574
        %v1576 = vpop.f32.mrf.mxu0
        %v1577 = vadd.f32 %v1440, %v1576
        %1578 = vmatmul.bf16.gmra.mxu0 %v1533
        %v1579 = vpop.f32.mrf.mxu0
        %v1580 = vadd.f32 %v1443, %v1579
        %v1581 = vpop.f32.mrf.mxu0
        %v1582 = vadd.f32 %v1445, %v1581
        %1583 = vdwg.mxu0
        %v1584 = vld [vmem:[#allocation2] sm:$0xe]
        %v1585 = vld [vmem:[#allocation2 + $0x8] sm:$0xe]
        %v1586 = vld [vmem:[#allocation2 + $0x10] sm:$0xe]
        %v1587 = vld [vmem:[#allocation2 + $0x18] sm:$0xe]
        %v1588 = vld [vmem:[#allocation2 + $0x20] sm:$0xe]
        %v1589 = vld [vmem:[#allocation2 + $0x28] sm:$0xe]
        %v1590 = vld [vmem:[#allocation2 + $0x30] sm:$0xe]
        %v1591 = vld [vmem:[#allocation2 + $0x38] sm:$0xe]
        %v1592 = vld [vmem:[#allocation2 + $0x50] sm:$0xe]
        %v1593 = vld [vmem:[#allocation2 + $0x58] sm:$0xe]
        %v1594 = vld [vmem:[#allocation2 + $0x60] sm:$0xe]
        %v1595 = vld [vmem:[#allocation2 + $0x68] sm:$0xe]
        %v1596 = vld [vmem:[#allocation2 + $0x70] sm:$0xe]
        %v1597 = vld [vmem:[#allocation2 + $0x78] sm:$0xe]
        %v1598 = vld [vmem:[#allocation2 + $0x80] sm:$0xe]
        %v1599 = vld [vmem:[#allocation2 + $0x88] sm:$0xe]
        %vm1632 = vcmask 1042432
        %vm1633 = vcmask 1046532
        %vm1634 = vmor %vm1632, %vm1633
        %v1635 = vrot.slane %v1584, 5
        %v1636 = vrot.slane %v1635, 4
        %v1637 = vrot.slane %v1073, 5
        %v1638 = vsel %vm1634, %v1636, %v1637
        %v1639 = vrot.slane %v1585, 5
        %v1640 = vrot.slane %v1639, 4
        %v1641 = vrot.slane %v1074, 5
        %v1642 = vsel %vm1634, %v1640, %v1641
        %v1643 = vrot.slane %v1586, 5
        %v1644 = vrot.slane %v1643, 4
        %v1645 = vrot.slane %v1075, 5
        %v1646 = vsel %vm1634, %v1644, %v1645
        %v1647 = vrot.slane %v1587, 5
        %v1648 = vrot.slane %v1647, 4
        %v1649 = vrot.slane %v1076, 5
        %v1650 = vsel %vm1634, %v1648, %v1649
        %v1651 = vrot.slane %v1588, 5
        %v1652 = vrot.slane %v1651, 4
        %v1653 = vrot.slane %v1077, 5
        %v1654 = vsel %vm1634, %v1652, %v1653
        %v1655 = vrot.slane %v1589, 5
        %v1656 = vrot.slane %v1655, 4
        %v1657 = vrot.slane %v1078, 5
        %v1658 = vsel %vm1634, %v1656, %v1657
        %v1659 = vrot.slane %v1590, 5
        %v1660 = vrot.slane %v1659, 4
        %v1661 = vrot.slane %v1079, 5
        %v1662 = vsel %vm1634, %v1660, %v1661
        %v1663 = vrot.slane %v1591, 5
        %v1664 = vrot.slane %v1663, 4
        %v1665 = vrot.slane %v1080, 5
        %v1666 = vsel %vm1634, %v1664, %v1665
        %v1667 = vrot.slane %v1592, 5
        %v1668 = vrot.slane %v1667, 4
        %v1669 = vrot.slane %v1081, 5
        %v1670 = vsel %vm1634, %v1668, %v1669
        %v1671 = vrot.slane %v1593, 5
        %v1672 = vrot.slane %v1671, 4
        %v1673 = vrot.slane %v1082, 5
        %v1674 = vsel %vm1634, %v1672, %v1673
        %v1675 = vrot.slane %v1594, 5
        %v1676 = vrot.slane %v1675, 4
        %v1677 = vrot.slane %v1083, 5
        %v1678 = vsel %vm1634, %v1676, %v1677
        %v1679 = vrot.slane %v1595, 5
        %v1680 = vrot.slane %v1679, 4
        %v1681 = vrot.slane %v1084, 5
        %v1682 = vsel %vm1634, %v1680, %v1681
        %v1683 = vrot.slane %v1596, 5
        %v1684 = vrot.slane %v1683, 4
        %v1685 = vrot.slane %v1085, 5
        %v1686 = vsel %vm1634, %v1684, %v1685
        %v1687 = vrot.slane %v1597, 5
        %v1688 = vrot.slane %v1687, 4
        %v1689 = vrot.slane %v1086, 5
        %v1690 = vsel %vm1634, %v1688, %v1689
        %v1691 = vrot.slane %v1598, 5
        %v1692 = vrot.slane %v1691, 4
        %v1693 = vrot.slane %v1087, 5
        %v1694 = vsel %vm1634, %v1692, %v1693
        %v1695 = vrot.slane %v1599, 5
        %v1696 = vrot.slane %v1695, 4
        %v1697 = vrot.slane %v1088, 5
        %v1698 = vsel %vm1634, %v1696, %v1697
        %s1699 = scalar_lea.vmem [#allocation6], 64
        %v1700 = vld [vmem:[%s1699] sm:$0xf]
        %v1701 = vld [vmem:[%s1699 + $0x4] sm:$0xf]
        %v1702 = vld [vmem:[%s1699 + $0x8] sm:$0xf]
        %v1703 = vld [vmem:[%s1699 + $0xc] sm:$0xf]
        %v1704 = vld [vmem:[%s1699 + $0x10] sm:$0xf]
        %v1705 = vld [vmem:[%s1699 + $0x14] sm:$0xf]
        %v1706 = vld [vmem:[%s1699 + $0x18] sm:$0xf]
        %v1707 = vld [vmem:[%s1699 + $0x1c] sm:$0xf]
        %v1708 = vunpack.c.l.b16 %v1638
        %v1709 = vunpack.c.l.b16 %v1642
        %v1710 = vunpack.c.l.b16 %v1646
        %v1711 = vunpack.c.l.b16 %v1650
        %v1712 = vunpack.c.l.b16 %v1654
        %v1713 = vunpack.c.l.b16 %v1658
        %v1714 = vunpack.c.l.b16 %v1662
        %v1715 = vunpack.c.l.b16 %v1666
        %v1716 = vunpack.c.l.b16 %v1670
        %v1717 = vunpack.c.l.b16 %v1674
        %v1718 = vunpack.c.l.b16 %v1678
        %v1719 = vunpack.c.l.b16 %v1682
        %v1720 = vunpack.c.l.b16 %v1686
        %v1721 = vunpack.c.l.b16 %v1690
        %v1722 = vunpack.c.l.b16 %v1694
        %v1723 = vunpack.c.l.b16 %v1698
        %v1724 = vpack.c.b16 %v1709, %v1708
        %v1725 = vpack.c.b16 %v1711, %v1710
        %v1726 = vpack.c.b16 %v1713, %v1712
        %v1727 = vpack.c.b16 %v1715, %v1714
        %v1728 = vpack.c.b16 %v1717, %v1716
        %v1729 = vpack.c.b16 %v1719, %v1718
        %v1730 = vpack.c.b16 %v1721, %v1720
        %v1731 = vpack.c.b16 %v1723, %v1722
        %v1740 = vunpack.c.l.b16 %v1700
        %v1741 = vunpack.c.l.b16 %v1701
        %v1742 = vunpack.c.l.b16 %v1702
        %v1743 = vunpack.c.l.b16 %v1703
        %v1744 = vunpack.c.l.b16 %v1704
        %v1745 = vunpack.c.l.b16 %v1705
        %v1746 = vunpack.c.l.b16 %v1706
        %v1747 = vunpack.c.l.b16 %v1707
        %v1748 = vpack.c.b16 %v1741, %v1740
        %v1749 = vpack.c.b16 %v1743, %v1742
        %v1750 = vpack.c.b16 %v1745, %v1744
        %v1751 = vpack.c.b16 %v1747, %v1746
        %v1757 = vsel %vm1373, %v1724, 0
        %v1760 = vsel %vm1373, %v1725, 0
        %v1763 = vsel %vm1373, %v1726, 0
        %v1766 = vsel %vm1373, %v1727, 0
        %v1769 = vsel %vm1373, %v1728, 0
        %v1772 = vsel %vm1373, %v1729, 0
        %v1775 = vsel %vm1373, %v1730, 0
        %v1778 = vsel %vm1373, %v1731, 0
        %1780 = vmatpush.bf16.msra.mxu0 0
        %1781 = vmatpush.bf16.msra.mxu0 0
        %1782 = vmatpush.bf16.msra.mxu0 0
        %1783 = vmatpush.bf16.msra.mxu0 0
        %1784 = vmatpush.bf16.msra.mxu0 %v1751
        %1785 = vmatpush.bf16.msra.mxu0 %v1750
        %1786 = vmatpush.bf16.msra.mxu0 %v1749
        %1787 = vmatpush.bf16.msra.mxu0 %v1748
        %1788 = vmatmul.bf16.gmra.mxu0 %v1757
        %v1789 = vpop.f32.mrf.mxu0
        %v1790 = vadd.f32 0.0, %v1789
        %v1791 = vpop.f32.mrf.mxu0
        %v1792 = vadd.f32 0.0, %v1791
        %1793 = vmatmul.bf16.gmra.mxu0 %v1760
        %v1794 = vpop.f32.mrf.mxu0
        %v1795 = vadd.f32 0.0, %v1794
        %v1796 = vpop.f32.mrf.mxu0
        %v1797 = vadd.f32 0.0, %v1796
        %1798 = vmatmul.bf16.gmra.mxu0 %v1763
        %v1799 = vpop.f32.mrf.mxu0
        %v1800 = vadd.f32 0.0, %v1799
        %v1801 = vpop.f32.mrf.mxu0
        %v1802 = vadd.f32 0.0, %v1801
        %1803 = vmatmul.bf16.gmra.mxu0 %v1766
        %v1804 = vpop.f32.mrf.mxu0
        %v1805 = vadd.f32 0.0, %v1804
        %v1806 = vpop.f32.mrf.mxu0
        %v1807 = vadd.f32 0.0, %v1806
        %1808 = vmatmul.bf16.gmra.mxu0 %v1769
        %v1809 = vpop.f32.mrf.mxu0
        %v1810 = vadd.f32 0.0, %v1809
        %v1811 = vpop.f32.mrf.mxu0
        %v1812 = vadd.f32 0.0, %v1811
        %1813 = vmatmul.bf16.gmra.mxu0 %v1772
        %v1814 = vpop.f32.mrf.mxu0
        %v1815 = vadd.f32 0.0, %v1814
        %v1816 = vpop.f32.mrf.mxu0
        %v1817 = vadd.f32 0.0, %v1816
        %1818 = vmatmul.bf16.gmra.mxu0 %v1775
        %v1819 = vpop.f32.mrf.mxu0
        %v1820 = vadd.f32 0.0, %v1819
        %v1821 = vpop.f32.mrf.mxu0
        %v1822 = vadd.f32 0.0, %v1821
        %1823 = vmatmul.bf16.gmra.mxu0 %v1778
        %v1824 = vpop.f32.mrf.mxu0
        %v1825 = vadd.f32 0.0, %v1824
        %v1826 = vpop.f32.mrf.mxu0
        %v1827 = vadd.f32 0.0, %v1826
        %1828 = vdwg.mxu0
        %v1829 = vadd.f32 %v1545, %v1790
        %v1830 = vadd.f32 %v1547, %v1792
        %v1831 = vadd.f32 %v1550, %v1795
        %v1832 = vadd.f32 %v1552, %v1797
        %v1833 = vadd.f32 %v1555, %v1800
        %v1834 = vadd.f32 %v1557, %v1802
        %v1835 = vadd.f32 %v1560, %v1805
        %v1836 = vadd.f32 %v1562, %v1807
        %v1837 = vadd.f32 %v1565, %v1810
        %v1838 = vadd.f32 %v1567, %v1812
        %v1839 = vadd.f32 %v1570, %v1815
        %v1840 = vadd.f32 %v1572, %v1817
        %v1841 = vadd.f32 %v1575, %v1820
        %v1842 = vadd.f32 %v1577, %v1822
        %v1843 = vadd.f32 %v1580, %v1825
        %v1844 = vadd.f32 %v1582, %v1827
        %v1845 = vld [vmem:[%s673] sm:$0xf]
        %v1846 = vld [vmem:[%s673 + $0x8] sm:$0xf]
        %v1847 = vld [vmem:[%s673 + $0x10] sm:$0xf]
        %v1848 = vld [vmem:[%s673 + $0x18] sm:$0xf]
        %v1849 = vld [vmem:[%s673 + $0x20] sm:$0xf]
        %v1850 = vld [vmem:[%s673 + $0x28] sm:$0xf]
        %v1851 = vld [vmem:[%s673 + $0x30] sm:$0xf]
        %v1852 = vld [vmem:[%s673 + $0x38] sm:$0xf]
        %v1853 = vld [vmem:[%s673 + $0x50] sm:$0xf]
        %v1854 = vld [vmem:[%s673 + $0x58] sm:$0xf]
        %v1855 = vld [vmem:[%s673 + $0x60] sm:$0xf]
        %v1856 = vld [vmem:[%s673 + $0x68] sm:$0xf]
        %v1857 = vld [vmem:[%s673 + $0x70] sm:$0xf]
        %v1858 = vld [vmem:[%s673 + $0x78] sm:$0xf]
        %v1859 = vld [vmem:[%s673 + $0x80] sm:$0xf]
        %v1860 = vld [vmem:[%s673 + $0x88] sm:$0xf]
        %s1861 = scalar_lea.vmem [#allocation6], 96
        %v1862 = vld [vmem:[%s1861] sm:$0xf]
        %v1863 = vld [vmem:[%s1861 + $0x4] sm:$0xf]
        %v1864 = vld [vmem:[%s1861 + $0x8] sm:$0xf]
        %v1865 = vld [vmem:[%s1861 + $0xc] sm:$0xf]
        %v1866 = vld [vmem:[%s1861 + $0x10] sm:$0xf]
        %v1867 = vld [vmem:[%s1861 + $0x14] sm:$0xf]
        %v1868 = vld [vmem:[%s1861 + $0x18] sm:$0xf]
        %v1869 = vld [vmem:[%s1861 + $0x1c] sm:$0xf]
        %v1886 = vunpack.c.l.b16 %v1845
        %v1887 = vunpack.c.l.b16 %v1846
        %v1888 = vunpack.c.l.b16 %v1847
        %v1889 = vunpack.c.l.b16 %v1848
        %v1890 = vunpack.c.l.b16 %v1849
        %v1891 = vunpack.c.l.b16 %v1850
        %v1892 = vunpack.c.l.b16 %v1851
        %v1893 = vunpack.c.l.b16 %v1852
        %v1894 = vunpack.c.l.b16 %v1853
        %v1895 = vunpack.c.l.b16 %v1854
        %v1896 = vunpack.c.l.b16 %v1855
        %v1897 = vunpack.c.l.b16 %v1856
        %v1898 = vunpack.c.l.b16 %v1857
        %v1899 = vunpack.c.l.b16 %v1858
        %v1900 = vunpack.c.l.b16 %v1859
        %v1901 = vunpack.c.l.b16 %v1860
        %v1902 = vpack.c.b16 %v1887, %v1886
        %v1903 = vpack.c.b16 %v1889, %v1888
        %v1904 = vpack.c.b16 %v1891, %v1890
        %v1905 = vpack.c.b16 %v1893, %v1892
        %v1906 = vpack.c.b16 %v1895, %v1894
        %v1907 = vpack.c.b16 %v1897, %v1896
        %v1908 = vpack.c.b16 %v1899, %v1898
        %v1909 = vpack.c.b16 %v1901, %v1900
        %v1918 = vunpack.c.l.b16 %v1862
        %v1919 = vunpack.c.l.b16 %v1863
        %v1920 = vunpack.c.l.b16 %v1864
        %v1921 = vunpack.c.l.b16 %v1865
        %v1922 = vunpack.c.l.b16 %v1866
        %v1923 = vunpack.c.l.b16 %v1867
        %v1924 = vunpack.c.l.b16 %v1868
        %v1925 = vunpack.c.l.b16 %v1869
        %v1926 = vpack.c.b16 %v1919, %v1918
        %v1927 = vpack.c.b16 %v1921, %v1920
        %v1928 = vpack.c.b16 %v1923, %v1922
        %v1929 = vpack.c.b16 %v1925, %v1924
        %v1935 = vsel %vm1373, %v1902, 0
        %v1938 = vsel %vm1373, %v1903, 0
        %v1941 = vsel %vm1373, %v1904, 0
        %v1944 = vsel %vm1373, %v1905, 0
        %v1947 = vsel %vm1373, %v1906, 0
        %v1950 = vsel %vm1373, %v1907, 0
        %v1953 = vsel %vm1373, %v1908, 0
        %v1956 = vsel %vm1373, %v1909, 0
        %1958 = vmatpush.bf16.msra.mxu0 0
        %1959 = vmatpush.bf16.msra.mxu0 0
        %1960 = vmatpush.bf16.msra.mxu0 0
        %1961 = vmatpush.bf16.msra.mxu0 0
        %1962 = vmatpush.bf16.msra.mxu0 %v1929
        %1963 = vmatpush.bf16.msra.mxu0 %v1928
        %1964 = vmatpush.bf16.msra.mxu0 %v1927
        %1965 = vmatpush.bf16.msra.mxu0 %v1926
        %1966 = vmatmul.bf16.gmra.mxu0 %v1935
        %v1967 = vpop.f32.mrf.mxu0
        %v1968 = vadd.f32 0.0, %v1967
        %v1969 = vpop.f32.mrf.mxu0
        %v1970 = vadd.f32 0.0, %v1969
        %1971 = vmatmul.bf16.gmra.mxu0 %v1938
        %v1972 = vpop.f32.mrf.mxu0
        %v1973 = vadd.f32 0.0, %v1972
        %v1974 = vpop.f32.mrf.mxu0
        %v1975 = vadd.f32 0.0, %v1974
        %1976 = vmatmul.bf16.gmra.mxu0 %v1941
        %v1977 = vpop.f32.mrf.mxu0
        %v1978 = vadd.f32 0.0, %v1977
        %v1979 = vpop.f32.mrf.mxu0
        %v1980 = vadd.f32 0.0, %v1979
        %1981 = vmatmul.bf16.gmra.mxu0 %v1944
        %v1982 = vpop.f32.mrf.mxu0
        %v1983 = vadd.f32 0.0, %v1982
        %v1984 = vpop.f32.mrf.mxu0
        %v1985 = vadd.f32 0.0, %v1984
        %1986 = vmatmul.bf16.gmra.mxu0 %v1947
        %v1987 = vpop.f32.mrf.mxu0
        %v1988 = vadd.f32 0.0, %v1987
        %v1989 = vpop.f32.mrf.mxu0
        %v1990 = vadd.f32 0.0, %v1989
        %1991 = vmatmul.bf16.gmra.mxu0 %v1950
        %v1992 = vpop.f32.mrf.mxu0
        %v1993 = vadd.f32 0.0, %v1992
        %v1994 = vpop.f32.mrf.mxu0
        %v1995 = vadd.f32 0.0, %v1994
        %1996 = vmatmul.bf16.gmra.mxu0 %v1953
        %v1997 = vpop.f32.mrf.mxu0
        %v1998 = vadd.f32 0.0, %v1997
        %v1999 = vpop.f32.mrf.mxu0
        %v2000 = vadd.f32 0.0, %v1999
        %2001 = vmatmul.bf16.gmra.mxu0 %v1956
        %v2002 = vpop.f32.mrf.mxu0
        %v2003 = vadd.f32 0.0, %v2002
        %v2004 = vpop.f32.mrf.mxu0
        %v2005 = vadd.f32 0.0, %v2004
        %2006 = vdwg.mxu0
        %v2007 = vadd.f32 %v1829, %v1968
        %v2008 = vadd.f32 %v1830, %v1970
        %v2009 = vadd.f32 %v1831, %v1973
        %v2010 = vadd.f32 %v1832, %v1975
        %v2011 = vadd.f32 %v1833, %v1978
        %v2012 = vadd.f32 %v1834, %v1980
        %v2013 = vadd.f32 %v1835, %v1983
        %v2014 = vadd.f32 %v1836, %v1985
        %v2015 = vadd.f32 %v1837, %v1988
        %v2016 = vadd.f32 %v1838, %v1990
        %v2017 = vadd.f32 %v1839, %v1993
        %v2018 = vadd.f32 %v1840, %v1995
        %v2019 = vadd.f32 %v1841, %v1998
        %v2020 = vadd.f32 %v1842, %v2000
        %v2021 = vadd.f32 %v1843, %v2003
        %v2022 = vadd.f32 %v1844, %v2005
        %v2023 = vld [vmem:[%s673] sm:$0xf]
        %v2024 = vld [vmem:[%s673 + $0x4] sm:$0x1]
        %v2025 = vld [vmem:[%s673 + $0x8] sm:$0xf]
        %v2026 = vld [vmem:[%s673 + $0xc] sm:$0x1]
        %v2027 = vld [vmem:[%s673 + $0x10] sm:$0xf]
        %v2028 = vld [vmem:[%s673 + $0x14] sm:$0x1]
        %v2029 = vld [vmem:[%s673 + $0x18] sm:$0xf]
        %v2030 = vld [vmem:[%s673 + $0x1c] sm:$0x1]
        %v2031 = vld [vmem:[%s673 + $0x20] sm:$0xf]
        %v2032 = vld [vmem:[%s673 + $0x24] sm:$0x1]
        %v2033 = vld [vmem:[%s673 + $0x28] sm:$0xf]
        %v2034 = vld [vmem:[%s673 + $0x2c] sm:$0x1]
        %v2035 = vld [vmem:[%s673 + $0x30] sm:$0xf]
        %v2036 = vld [vmem:[%s673 + $0x34] sm:$0x1]
        %v2037 = vld [vmem:[%s673 + $0x38] sm:$0xf]
        %v2038 = vld [vmem:[%s673 + $0x3c] sm:$0x1]
        %v2039 = vld [vmem:[%s673 + $0x50] sm:$0xf]
        %v2040 = vld [vmem:[%s673 + $0x54] sm:$0x1]
        %v2041 = vld [vmem:[%s673 + $0x58] sm:$0xf]
        %v2042 = vld [vmem:[%s673 + $0x5c] sm:$0x1]
        %v2043 = vld [vmem:[%s673 + $0x60] sm:$0xf]
        %v2044 = vld [vmem:[%s673 + $0x64] sm:$0x1]
        %v2045 = vld [vmem:[%s673 + $0x68] sm:$0xf]
        %v2046 = vld [vmem:[%s673 + $0x6c] sm:$0x1]
        %v2047 = vld [vmem:[%s673 + $0x70] sm:$0xf]
        %v2048 = vld [vmem:[%s673 + $0x74] sm:$0x1]
        %v2049 = vld [vmem:[%s673 + $0x78] sm:$0xf]
        %v2050 = vld [vmem:[%s673 + $0x7c] sm:$0x1]
        %v2051 = vld [vmem:[%s673 + $0x80] sm:$0xf]
        %v2052 = vld [vmem:[%s673 + $0x84] sm:$0x1]
        %v2053 = vld [vmem:[%s673 + $0x88] sm:$0xf]
        %v2054 = vld [vmem:[%s673 + $0x8c] sm:$0x1]
        %v2056 = vshrl.u32 %v2023, 16
        %v2058 = vrot.slane %v2056, 4
        %v2059 = vshll.u32 %v2023, 16
        %v2061 = vrot.slane %v2059, 5
        %v2062 = vor.u32 %v2058, %v2061
        %v2063 = vrot.slane %v2062, 4
        %v2065 = vshll.u32 %v2024, 16
        %v2067 = vrot.slane %v2065, 5
        %v2068 = vsel %vm1091, %v2063, %v2067
        %v2070 = vshrl.u32 %v2025, 16
        %v2072 = vrot.slane %v2070, 4
        %v2073 = vshll.u32 %v2025, 16
        %v2075 = vrot.slane %v2073, 5
        %v2076 = vor.u32 %v2072, %v2075
        %v2077 = vrot.slane %v2076, 4
        %v2079 = vshll.u32 %v2026, 16
        %v2081 = vrot.slane %v2079, 5
        %v2082 = vsel %vm1091, %v2077, %v2081
        %v2084 = vshrl.u32 %v2027, 16
        %v2086 = vrot.slane %v2084, 4
        %v2087 = vshll.u32 %v2027, 16
        %v2089 = vrot.slane %v2087, 5
        %v2090 = vor.u32 %v2086, %v2089
        %v2091 = vrot.slane %v2090, 4
        %v2093 = vshll.u32 %v2028, 16
        %v2095 = vrot.slane %v2093, 5
        %v2096 = vsel %vm1091, %v2091, %v2095
        %v2098 = vshrl.u32 %v2029, 16
        %v2100 = vrot.slane %v2098, 4
        %v2101 = vshll.u32 %v2029, 16
        %v2103 = vrot.slane %v2101, 5
        %v2104 = vor.u32 %v2100, %v2103
        %v2105 = vrot.slane %v2104, 4
        %v2107 = vshll.u32 %v2030, 16
        %v2109 = vrot.slane %v2107, 5
        %v2110 = vsel %vm1091, %v2105, %v2109
        %v2112 = vshrl.u32 %v2031, 16
        %v2114 = vrot.slane %v2112, 4
        %v2115 = vshll.u32 %v2031, 16
        %v2117 = vrot.slane %v2115, 5
        %v2118 = vor.u32 %v2114, %v2117
        %v2119 = vrot.slane %v2118, 4
        %v2121 = vshll.u32 %v2032, 16
        %v2123 = vrot.slane %v2121, 5
        %v2124 = vsel %vm1091, %v2119, %v2123
        %v2126 = vshrl.u32 %v2033, 16
        %v2128 = vrot.slane %v2126, 4
        %v2129 = vshll.u32 %v2033, 16
        %v2131 = vrot.slane %v2129, 5
        %v2132 = vor.u32 %v2128, %v2131
        %v2133 = vrot.slane %v2132, 4
        %v2135 = vshll.u32 %v2034, 16
        %v2137 = vrot.slane %v2135, 5
        %v2138 = vsel %vm1091, %v2133, %v2137
        %v2140 = vshrl.u32 %v2035, 16
        %v2142 = vrot.slane %v2140, 4
        %v2143 = vshll.u32 %v2035, 16
        %v2145 = vrot.slane %v2143, 5
        %v2146 = vor.u32 %v2142, %v2145
        %v2147 = vrot.slane %v2146, 4
        %v2149 = vshll.u32 %v2036, 16
        %v2151 = vrot.slane %v2149, 5
        %v2152 = vsel %vm1091, %v2147, %v2151
        %v2154 = vshrl.u32 %v2037, 16
        %v2156 = vrot.slane %v2154, 4
        %v2157 = vshll.u32 %v2037, 16
        %v2159 = vrot.slane %v2157, 5
        %v2160 = vor.u32 %v2156, %v2159
        %v2161 = vrot.slane %v2160, 4
        %v2163 = vshll.u32 %v2038, 16
        %v2165 = vrot.slane %v2163, 5
        %v2166 = vsel %vm1091, %v2161, %v2165
        %v2168 = vshrl.u32 %v2039, 16
        %v2170 = vrot.slane %v2168, 4
        %v2171 = vshll.u32 %v2039, 16
        %v2173 = vrot.slane %v2171, 5
        %v2174 = vor.u32 %v2170, %v2173
        %v2175 = vrot.slane %v2174, 4
        %v2177 = vshll.u32 %v2040, 16
        %v2179 = vrot.slane %v2177, 5
        %v2180 = vsel %vm1091, %v2175, %v2179
        %v2182 = vshrl.u32 %v2041, 16
        %v2184 = vrot.slane %v2182, 4
        %v2185 = vshll.u32 %v2041, 16
        %v2187 = vrot.slane %v2185, 5
        %v2188 = vor.u32 %v2184, %v2187
        %v2189 = vrot.slane %v2188, 4
        %v2191 = vshll.u32 %v2042, 16
        %v2193 = vrot.slane %v2191, 5
        %v2194 = vsel %vm1091, %v2189, %v2193
        %v2196 = vshrl.u32 %v2043, 16
        %v2198 = vrot.slane %v2196, 4
        %v2199 = vshll.u32 %v2043, 16
        %v2201 = vrot.slane %v2199, 5
        %v2202 = vor.u32 %v2198, %v2201
        %v2203 = vrot.slane %v2202, 4
        %v2205 = vshll.u32 %v2044, 16
        %v2207 = vrot.slane %v2205, 5
        %v2208 = vsel %vm1091, %v2203, %v2207
        %v2210 = vshrl.u32 %v2045, 16
        %v2212 = vrot.slane %v2210, 4
        %v2213 = vshll.u32 %v2045, 16
        %v2215 = vrot.slane %v2213, 5
        %v2216 = vor.u32 %v2212, %v2215
        %v2217 = vrot.slane %v2216, 4
        %v2219 = vshll.u32 %v2046, 16
        %v2221 = vrot.slane %v2219, 5
        %v2222 = vsel %vm1091, %v2217, %v2221
        %v2224 = vshrl.u32 %v2047, 16
        %v2226 = vrot.slane %v2224, 4
        %v2227 = vshll.u32 %v2047, 16
        %v2229 = vrot.slane %v2227, 5
        %v2230 = vor.u32 %v2226, %v2229
        %v2231 = vrot.slane %v2230, 4
        %v2233 = vshll.u32 %v2048, 16
        %v2235 = vrot.slane %v2233, 5
        %v2236 = vsel %vm1091, %v2231, %v2235
        %v2238 = vshrl.u32 %v2049, 16
        %v2240 = vrot.slane %v2238, 4
        %v2241 = vshll.u32 %v2049, 16
        %v2243 = vrot.slane %v2241, 5
        %v2244 = vor.u32 %v2240, %v2243
        %v2245 = vrot.slane %v2244, 4
        %v2247 = vshll.u32 %v2050, 16
        %v2249 = vrot.slane %v2247, 5
        %v2250 = vsel %vm1091, %v2245, %v2249
        %v2252 = vshrl.u32 %v2051, 16
        %v2254 = vrot.slane %v2252, 4
        %v2255 = vshll.u32 %v2051, 16
        %v2257 = vrot.slane %v2255, 5
        %v2258 = vor.u32 %v2254, %v2257
        %v2259 = vrot.slane %v2258, 4
        %v2261 = vshll.u32 %v2052, 16
        %v2263 = vrot.slane %v2261, 5
        %v2264 = vsel %vm1091, %v2259, %v2263
        %v2266 = vshrl.u32 %v2053, 16
        %v2268 = vrot.slane %v2266, 4
        %v2269 = vshll.u32 %v2053, 16
        %v2271 = vrot.slane %v2269, 5
        %v2272 = vor.u32 %v2268, %v2271
        %v2273 = vrot.slane %v2272, 4
        %v2275 = vshll.u32 %v2054, 16
        %v2277 = vrot.slane %v2275, 5
        %v2278 = vsel %vm1091, %v2273, %v2277
        %s2279 = scalar_lea.vmem [#allocation6], 128
        %v2280 = vld [vmem:[%s2279] sm:$0xf]
        %v2281 = vld [vmem:[%s2279 + $0x4] sm:$0xf]
        %v2282 = vld [vmem:[%s2279 + $0x8] sm:$0xf]
        %v2283 = vld [vmem:[%s2279 + $0xc] sm:$0xf]
        %v2284 = vld [vmem:[%s2279 + $0x10] sm:$0xf]
        %v2285 = vld [vmem:[%s2279 + $0x14] sm:$0xf]
        %v2286 = vld [vmem:[%s2279 + $0x18] sm:$0xf]
        %v2287 = vld [vmem:[%s2279 + $0x1c] sm:$0xf]
        %v2288 = vunpack.c.l.b16 %v2068
        %v2289 = vunpack.c.l.b16 %v2082
        %v2290 = vunpack.c.l.b16 %v2096
        %v2291 = vunpack.c.l.b16 %v2110
        %v2292 = vunpack.c.l.b16 %v2124
        %v2293 = vunpack.c.l.b16 %v2138
        %v2294 = vunpack.c.l.b16 %v2152
        %v2295 = vunpack.c.l.b16 %v2166
        %v2296 = vunpack.c.l.b16 %v2180
        %v2297 = vunpack.c.l.b16 %v2194
        %v2298 = vunpack.c.l.b16 %v2208
        %v2299 = vunpack.c.l.b16 %v2222
        %v2300 = vunpack.c.l.b16 %v2236
        %v2301 = vunpack.c.l.b16 %v2250
        %v2302 = vunpack.c.l.b16 %v2264
        %v2303 = vunpack.c.l.b16 %v2278
        %v2304 = vpack.c.b16 %v2289, %v2288
        %v2305 = vpack.c.b16 %v2291, %v2290
        %v2306 = vpack.c.b16 %v2293, %v2292
        %v2307 = vpack.c.b16 %v2295, %v2294
        %v2308 = vpack.c.b16 %v2297, %v2296
        %v2309 = vpack.c.b16 %v2299, %v2298
        %v2310 = vpack.c.b16 %v2301, %v2300
        %v2311 = vpack.c.b16 %v2303, %v2302
        %v2320 = vunpack.c.l.b16 %v2280
        %v2321 = vunpack.c.l.b16 %v2281
        %v2322 = vunpack.c.l.b16 %v2282
        %v2323 = vunpack.c.l.b16 %v2283
        %v2324 = vunpack.c.l.b16 %v2284
        %v2325 = vunpack.c.l.b16 %v2285
        %v2326 = vunpack.c.l.b16 %v2286
        %v2327 = vunpack.c.l.b16 %v2287
        %v2328 = vpack.c.b16 %v2321, %v2320
        %v2329 = vpack.c.b16 %v2323, %v2322
        %v2330 = vpack.c.b16 %v2325, %v2324
        %v2331 = vpack.c.b16 %v2327, %v2326
        %v2337 = vsel %vm1373, %v2304, 0
        %v2340 = vsel %vm1373, %v2305, 0
        %v2343 = vsel %vm1373, %v2306, 0
        %v2346 = vsel %vm1373, %v2307, 0
        %v2349 = vsel %vm1373, %v2308, 0
        %v2352 = vsel %vm1373, %v2309, 0
        %v2355 = vsel %vm1373, %v2310, 0
        %v2358 = vsel %vm1373, %v2311, 0
        %2360 = vmatpush.bf16.msra.mxu0 0
        %2361 = vmatpush.bf16.msra.mxu0 0
        %2362 = vmatpush.bf16.msra.mxu0 0
        %2363 = vmatpush.bf16.msra.mxu0 0
        %2364 = vmatpush.bf16.msra.mxu0 %v2331
        %2365 = vmatpush.bf16.msra.mxu0 %v2330
        %2366 = vmatpush.bf16.msra.mxu0 %v2329
        %2367 = vmatpush.bf16.msra.mxu0 %v2328
        %2368 = vmatmul.bf16.gmra.mxu0 %v2337
        %v2369 = vpop.f32.mrf.mxu0
        %v2370 = vadd.f32 0.0, %v2369
        %v2371 = vpop.f32.mrf.mxu0
        %v2372 = vadd.f32 0.0, %v2371
        %2373 = vmatmul.bf16.gmra.mxu0 %v2340
        %v2374 = vpop.f32.mrf.mxu0
        %v2375 = vadd.f32 0.0, %v2374
        %v2376 = vpop.f32.mrf.mxu0
        %v2377 = vadd.f32 0.0, %v2376
        %2378 = vmatmul.bf16.gmra.mxu0 %v2343
        %v2379 = vpop.f32.mrf.mxu0
        %v2380 = vadd.f32 0.0, %v2379
        %v2381 = vpop.f32.mrf.mxu0
        %v2382 = vadd.f32 0.0, %v2381
        %2383 = vmatmul.bf16.gmra.mxu0 %v2346
        %v2384 = vpop.f32.mrf.mxu0
        %v2385 = vadd.f32 0.0, %v2384
        %v2386 = vpop.f32.mrf.mxu0
        %v2387 = vadd.f32 0.0, %v2386
        %2388 = vmatmul.bf16.gmra.mxu0 %v2349
        %v2389 = vpop.f32.mrf.mxu0
        %v2390 = vadd.f32 0.0, %v2389
        %v2391 = vpop.f32.mrf.mxu0
        %v2392 = vadd.f32 0.0, %v2391
        %2393 = vmatmul.bf16.gmra.mxu0 %v2352
        %v2394 = vpop.f32.mrf.mxu0
        %v2395 = vadd.f32 0.0, %v2394
        %v2396 = vpop.f32.mrf.mxu0
        %v2397 = vadd.f32 0.0, %v2396
        %2398 = vmatmul.bf16.gmra.mxu0 %v2355
        %v2399 = vpop.f32.mrf.mxu0
        %v2400 = vadd.f32 0.0, %v2399
        %v2401 = vpop.f32.mrf.mxu0
        %v2402 = vadd.f32 0.0, %v2401
        %2403 = vmatmul.bf16.gmra.mxu0 %v2358
        %v2404 = vpop.f32.mrf.mxu0
        %v2405 = vadd.f32 0.0, %v2404
        %v2406 = vpop.f32.mrf.mxu0
        %v2407 = vadd.f32 0.0, %v2406
        %2408 = vdwg.mxu0
        %v2409 = vadd.f32 %v2007, %v2370
        %v2410 = vadd.f32 %v2008, %v2372
        %v2411 = vadd.f32 %v2009, %v2375
        %v2412 = vadd.f32 %v2010, %v2377
        %v2413 = vadd.f32 %v2011, %v2380
        %v2414 = vadd.f32 %v2012, %v2382
        %v2415 = vadd.f32 %v2013, %v2385
        %v2416 = vadd.f32 %v2014, %v2387
        %v2417 = vadd.f32 %v2015, %v2390
        %v2418 = vadd.f32 %v2016, %v2392
        %v2419 = vadd.f32 %v2017, %v2395
        %v2420 = vadd.f32 %v2018, %v2397
        %v2421 = vadd.f32 %v2019, %v2400
        %v2422 = vadd.f32 %v2020, %v2402
        %v2423 = vadd.f32 %v2021, %v2405
        %v2424 = vadd.f32 %v2022, %v2407
        %v2425 = vld [vmem:[%s673] sm:$0xe]
        %v2426 = vld [vmem:[%s673 + $0x8] sm:$0xe]
        %v2427 = vld [vmem:[%s673 + $0x10] sm:$0xe]
        %v2428 = vld [vmem:[%s673 + $0x18] sm:$0xe]
        %v2429 = vld [vmem:[%s673 + $0x20] sm:$0xe]
        %v2430 = vld [vmem:[%s673 + $0x28] sm:$0xe]
        %v2431 = vld [vmem:[%s673 + $0x30] sm:$0xe]
        %v2432 = vld [vmem:[%s673 + $0x38] sm:$0xe]
        %v2433 = vld [vmem:[%s673 + $0x50] sm:$0xe]
        %v2434 = vld [vmem:[%s673 + $0x58] sm:$0xe]
        %v2435 = vld [vmem:[%s673 + $0x60] sm:$0xe]
        %v2436 = vld [vmem:[%s673 + $0x68] sm:$0xe]
        %v2437 = vld [vmem:[%s673 + $0x70] sm:$0xe]
        %v2438 = vld [vmem:[%s673 + $0x78] sm:$0xe]
        %v2439 = vld [vmem:[%s673 + $0x80] sm:$0xe]
        %v2440 = vld [vmem:[%s673 + $0x88] sm:$0xe]
        %v2473 = vrot.slane %v2425, 5
        %v2474 = vrot.slane %v2473, 4
        %v2475 = vrot.slane %v2024, 5
        %v2476 = vsel %vm1634, %v2474, %v2475
        %v2477 = vrot.slane %v2426, 5
        %v2478 = vrot.slane %v2477, 4
        %v2479 = vrot.slane %v2026, 5
        %v2480 = vsel %vm1634, %v2478, %v2479
        %v2481 = vrot.slane %v2427, 5
        %v2482 = vrot.slane %v2481, 4
        %v2483 = vrot.slane %v2028, 5
        %v2484 = vsel %vm1634, %v2482, %v2483
        %v2485 = vrot.slane %v2428, 5
        %v2486 = vrot.slane %v2485, 4
        %v2487 = vrot.slane %v2030, 5
        %v2488 = vsel %vm1634, %v2486, %v2487
        %v2489 = vrot.slane %v2429, 5
        %v2490 = vrot.slane %v2489, 4
        %v2491 = vrot.slane %v2032, 5
        %v2492 = vsel %vm1634, %v2490, %v2491
        %v2493 = vrot.slane %v2430, 5
        %v2494 = vrot.slane %v2493, 4
        %v2495 = vrot.slane %v2034, 5
        %v2496 = vsel %vm1634, %v2494, %v2495
        %v2497 = vrot.slane %v2431, 5
        %v2498 = vrot.slane %v2497, 4
        %v2499 = vrot.slane %v2036, 5
        %v2500 = vsel %vm1634, %v2498, %v2499
        %v2501 = vrot.slane %v2432, 5
        %v2502 = vrot.slane %v2501, 4
        %v2503 = vrot.slane %v2038, 5
        %v2504 = vsel %vm1634, %v2502, %v2503
        %v2505 = vrot.slane %v2433, 5
        %v2506 = vrot.slane %v2505, 4
        %v2507 = vrot.slane %v2040, 5
        %v2508 = vsel %vm1634, %v2506, %v2507
        %v2509 = vrot.slane %v2434, 5
        %v2510 = vrot.slane %v2509, 4
        %v2511 = vrot.slane %v2042, 5
        %v2512 = vsel %vm1634, %v2510, %v2511
        %v2513 = vrot.slane %v2435, 5
        %v2514 = vrot.slane %v2513, 4
        %v2515 = vrot.slane %v2044, 5
        %v2516 = vsel %vm1634, %v2514, %v2515
        %v2517 = vrot.slane %v2436, 5
        %v2518 = vrot.slane %v2517, 4
        %v2519 = vrot.slane %v2046, 5
        %v2520 = vsel %vm1634, %v2518, %v2519
        %v2521 = vrot.slane %v2437, 5
        %v2522 = vrot.slane %v2521, 4
        %v2523 = vrot.slane %v2048, 5
        %v2524 = vsel %vm1634, %v2522, %v2523
        %v2525 = vrot.slane %v2438, 5
        %v2526 = vrot.slane %v2525, 4
        %v2527 = vrot.slane %v2050, 5
        %v2528 = vsel %vm1634, %v2526, %v2527
        %v2529 = vrot.slane %v2439, 5
        %v2530 = vrot.slane %v2529, 4
        %v2531 = vrot.slane %v2052, 5
        %v2532 = vsel %vm1634, %v2530, %v2531
        %v2533 = vrot.slane %v2440, 5
        %v2534 = vrot.slane %v2533, 4
        %v2535 = vrot.slane %v2054, 5
        %v2536 = vsel %vm1634, %v2534, %v2535
        %s2537 = scalar_lea.vmem [#allocation6], 160
        %v2538 = vld [vmem:[%s2537] sm:$0xf]
        %v2539 = vld [vmem:[%s2537 + $0x4] sm:$0xf]
        %v2540 = vld [vmem:[%s2537 + $0x8] sm:$0xf]
        %v2541 = vld [vmem:[%s2537 + $0xc] sm:$0xf]
        %v2542 = vld [vmem:[%s2537 + $0x10] sm:$0xf]
        %v2543 = vld [vmem:[%s2537 + $0x14] sm:$0xf]
        %v2544 = vld [vmem:[%s2537 + $0x18] sm:$0xf]
        %v2545 = vld [vmem:[%s2537 + $0x1c] sm:$0xf]
        %v2546 = vunpack.c.l.b16 %v2476
        %v2547 = vunpack.c.l.b16 %v2480
        %v2548 = vunpack.c.l.b16 %v2484
        %v2549 = vunpack.c.l.b16 %v2488
        %v2550 = vunpack.c.l.b16 %v2492
        %v2551 = vunpack.c.l.b16 %v2496
        %v2552 = vunpack.c.l.b16 %v2500
        %v2553 = vunpack.c.l.b16 %v2504
        %v2554 = vunpack.c.l.b16 %v2508
        %v2555 = vunpack.c.l.b16 %v2512
        %v2556 = vunpack.c.l.b16 %v2516
        %v2557 = vunpack.c.l.b16 %v2520
        %v2558 = vunpack.c.l.b16 %v2524
        %v2559 = vunpack.c.l.b16 %v2528
        %v2560 = vunpack.c.l.b16 %v2532
        %v2561 = vunpack.c.l.b16 %v2536
        %v2562 = vpack.c.b16 %v2547, %v2546
        %v2563 = vpack.c.b16 %v2549, %v2548
        %v2564 = vpack.c.b16 %v2551, %v2550
        %v2565 = vpack.c.b16 %v2553, %v2552
        %v2566 = vpack.c.b16 %v2555, %v2554
        %v2567 = vpack.c.b16 %v2557, %v2556
        %v2568 = vpack.c.b16 %v2559, %v2558
        %v2569 = vpack.c.b16 %v2561, %v2560
        %v2578 = vunpack.c.l.b16 %v2538
        %v2579 = vunpack.c.l.b16 %v2539
        %v2580 = vunpack.c.l.b16 %v2540
        %v2581 = vunpack.c.l.b16 %v2541
        %v2582 = vunpack.c.l.b16 %v2542
        %v2583 = vunpack.c.l.b16 %v2543
        %v2584 = vunpack.c.l.b16 %v2544
        %v2585 = vunpack.c.l.b16 %v2545
        %v2586 = vpack.c.b16 %v2579, %v2578
        %v2587 = vpack.c.b16 %v2581, %v2580
        %v2588 = vpack.c.b16 %v2583, %v2582
        %v2589 = vpack.c.b16 %v2585, %v2584
        %v2595 = vsel %vm1373, %v2562, 0
        %v2598 = vsel %vm1373, %v2563, 0
        %v2601 = vsel %vm1373, %v2564, 0
        %v2604 = vsel %vm1373, %v2565, 0
        %v2607 = vsel %vm1373, %v2566, 0
        %v2610 = vsel %vm1373, %v2567, 0
        %v2613 = vsel %vm1373, %v2568, 0
        %v2616 = vsel %vm1373, %v2569, 0
        %2618 = vmatpush.bf16.msra.mxu0 0
        %2619 = vmatpush.bf16.msra.mxu0 0
        %2620 = vmatpush.bf16.msra.mxu0 0
        %2621 = vmatpush.bf16.msra.mxu0 0
        %2622 = vmatpush.bf16.msra.mxu0 %v2589
        %2623 = vmatpush.bf16.msra.mxu0 %v2588
        %2624 = vmatpush.bf16.msra.mxu0 %v2587
        %2625 = vmatpush.bf16.msra.mxu0 %v2586
        %2626 = vmatmul.bf16.gmra.mxu0 %v2595
        %v2627 = vpop.f32.mrf.mxu0
        %v2628 = vadd.f32 0.0, %v2627
        %v2629 = vpop.f32.mrf.mxu0
        %v2630 = vadd.f32 0.0, %v2629
        %2631 = vmatmul.bf16.gmra.mxu0 %v2598
        %v2632 = vpop.f32.mrf.mxu0
        %v2633 = vadd.f32 0.0, %v2632
        %v2634 = vpop.f32.mrf.mxu0
        %v2635 = vadd.f32 0.0, %v2634
        %2636 = vmatmul.bf16.gmra.mxu0 %v2601
        %v2637 = vpop.f32.mrf.mxu0
        %v2638 = vadd.f32 0.0, %v2637
        %v2639 = vpop.f32.mrf.mxu0
        %v2640 = vadd.f32 0.0, %v2639
        %2641 = vmatmul.bf16.gmra.mxu0 %v2604
        %v2642 = vpop.f32.mrf.mxu0
        %v2643 = vadd.f32 0.0, %v2642
        %v2644 = vpop.f32.mrf.mxu0
        %v2645 = vadd.f32 0.0, %v2644
        %2646 = vmatmul.bf16.gmra.mxu0 %v2607
        %v2647 = vpop.f32.mrf.mxu0
        %v2648 = vadd.f32 0.0, %v2647
        %v2649 = vpop.f32.mrf.mxu0
        %v2650 = vadd.f32 0.0, %v2649
        %2651 = vmatmul.bf16.gmra.mxu0 %v2610
        %v2652 = vpop.f32.mrf.mxu0
        %v2653 = vadd.f32 0.0, %v2652
        %v2654 = vpop.f32.mrf.mxu0
        %v2655 = vadd.f32 0.0, %v2654
        %2656 = vmatmul.bf16.gmra.mxu0 %v2613
        %v2657 = vpop.f32.mrf.mxu0
        %v2658 = vadd.f32 0.0, %v2657
        %v2659 = vpop.f32.mrf.mxu0
        %v2660 = vadd.f32 0.0, %v2659
        %2661 = vmatmul.bf16.gmra.mxu0 %v2616
        %v2662 = vpop.f32.mrf.mxu0
        %v2663 = vadd.f32 0.0, %v2662
        %v2664 = vpop.f32.mrf.mxu0
        %v2665 = vadd.f32 0.0, %v2664
        %2666 = vdwg.mxu0
        %v2667 = vadd.f32 %v2409, %v2628
        %v2668 = vadd.f32 %v2410, %v2630
        %v2669 = vadd.f32 %v2411, %v2633
        %v2670 = vadd.f32 %v2412, %v2635
        %v2671 = vadd.f32 %v2413, %v2638
        %v2672 = vadd.f32 %v2414, %v2640
        %v2673 = vadd.f32 %v2415, %v2643
        %v2674 = vadd.f32 %v2416, %v2645
        %v2675 = vadd.f32 %v2417, %v2648
        %v2676 = vadd.f32 %v2418, %v2650
        %v2677 = vadd.f32 %v2419, %v2653
        %v2678 = vadd.f32 %v2420, %v2655
        %v2679 = vadd.f32 %v2421, %v2658
        %v2680 = vadd.f32 %v2422, %v2660
        %v2681 = vadd.f32 %v2423, %v2663
        %v2682 = vadd.f32 %v2424, %v2665
        %s2683 = scalar_lea.vmem [#allocation2], 16
        %v2684 = vld [vmem:[%s2683] sm:$0xf]
        %v2685 = vld [vmem:[%s2683 + $0x8] sm:$0xf]
        %v2686 = vld [vmem:[%s2683 + $0x10] sm:$0xf]
        %v2687 = vld [vmem:[%s2683 + $0x18] sm:$0xf]
        %v2688 = vld [vmem:[%s2683 + $0x20] sm:$0xf]
        %v2689 = vld [vmem:[%s2683 + $0x28] sm:$0xf]
        %v2690 = vld [vmem:[%s2683 + $0x30] sm:$0xf]
        %v2691 = vld [vmem:[%s2683 + $0x38] sm:$0xf]
        %v2692 = vld [vmem:[%s2683 + $0x50] sm:$0xf]
        %v2693 = vld [vmem:[%s2683 + $0x58] sm:$0xf]
        %v2694 = vld [vmem:[%s2683 + $0x60] sm:$0xf]
        %v2695 = vld [vmem:[%s2683 + $0x68] sm:$0xf]
        %v2696 = vld [vmem:[%s2683 + $0x70] sm:$0xf]
        %v2697 = vld [vmem:[%s2683 + $0x78] sm:$0xf]
        %v2698 = vld [vmem:[%s2683 + $0x80] sm:$0xf]
        %v2699 = vld [vmem:[%s2683 + $0x88] sm:$0xf]
        %s2700 = scalar_lea.vmem [#allocation6], 192
        %v2701 = vld [vmem:[%s2700] sm:$0xf]
        %v2702 = vld [vmem:[%s2700 + $0x4] sm:$0xf]
        %v2703 = vld [vmem:[%s2700 + $0x8] sm:$0xf]
        %v2704 = vld [vmem:[%s2700 + $0xc] sm:$0xf]
        %v2705 = vld [vmem:[%s2700 + $0x10] sm:$0xf]
        %v2706 = vld [vmem:[%s2700 + $0x14] sm:$0xf]
        %v2707 = vld [vmem:[%s2700 + $0x18] sm:$0xf]
        %v2708 = vld [vmem:[%s2700 + $0x1c] sm:$0xf]
        %v2725 = vunpack.c.l.b16 %v2684
        %v2726 = vunpack.c.l.b16 %v2685
        %v2727 = vunpack.c.l.b16 %v2686
        %v2728 = vunpack.c.l.b16 %v2687
        %v2729 = vunpack.c.l.b16 %v2688
        %v2730 = vunpack.c.l.b16 %v2689
        %v2731 = vunpack.c.l.b16 %v2690
        %v2732 = vunpack.c.l.b16 %v2691
        %v2733 = vunpack.c.l.b16 %v2692
        %v2734 = vunpack.c.l.b16 %v2693
        %v2735 = vunpack.c.l.b16 %v2694
        %v2736 = vunpack.c.l.b16 %v2695
        %v2737 = vunpack.c.l.b16 %v2696
        %v2738 = vunpack.c.l.b16 %v2697
        %v2739 = vunpack.c.l.b16 %v2698
        %v2740 = vunpack.c.l.b16 %v2699
        %v2741 = vpack.c.b16 %v2726, %v2725
        %v2742 = vpack.c.b16 %v2728, %v2727
        %v2743 = vpack.c.b16 %v2730, %v2729
        %v2744 = vpack.c.b16 %v2732, %v2731
        %v2745 = vpack.c.b16 %v2734, %v2733
        %v2746 = vpack.c.b16 %v2736, %v2735
        %v2747 = vpack.c.b16 %v2738, %v2737
        %v2748 = vpack.c.b16 %v2740, %v2739
        %v2757 = vunpack.c.l.b16 %v2701
        %v2758 = vunpack.c.l.b16 %v2702
        %v2759 = vunpack.c.l.b16 %v2703
        %v2760 = vunpack.c.l.b16 %v2704
        %v2761 = vunpack.c.l.b16 %v2705
        %v2762 = vunpack.c.l.b16 %v2706
        %v2763 = vunpack.c.l.b16 %v2707
        %v2764 = vunpack.c.l.b16 %v2708
        %v2765 = vpack.c.b16 %v2758, %v2757
        %v2766 = vpack.c.b16 %v2760, %v2759
        %v2767 = vpack.c.b16 %v2762, %v2761
        %v2768 = vpack.c.b16 %v2764, %v2763
        %v2774 = vsel %vm1373, %v2741, 0
        %v2777 = vsel %vm1373, %v2742, 0
        %v2780 = vsel %vm1373, %v2743, 0
        %v2783 = vsel %vm1373, %v2744, 0
        %v2786 = vsel %vm1373, %v2745, 0
        %v2789 = vsel %vm1373, %v2746, 0
        %v2792 = vsel %vm1373, %v2747, 0
        %v2795 = vsel %vm1373, %v2748, 0
        %2797 = vmatpush.bf16.msra.mxu0 0
        %2798 = vmatpush.bf16.msra.mxu0 0
        %2799 = vmatpush.bf16.msra.mxu0 0
        %2800 = vmatpush.bf16.msra.mxu0 0
        %2801 = vmatpush.bf16.msra.mxu0 %v2768
        %2802 = vmatpush.bf16.msra.mxu0 %v2767
        %2803 = vmatpush.bf16.msra.mxu0 %v2766
        %2804 = vmatpush.bf16.msra.mxu0 %v2765
        %2805 = vmatmul.bf16.gmra.mxu0 %v2774
        %v2806 = vpop.f32.mrf.mxu0
        %v2807 = vadd.f32 0.0, %v2806
        %v2808 = vpop.f32.mrf.mxu0
        %v2809 = vadd.f32 0.0, %v2808
        %2810 = vmatmul.bf16.gmra.mxu0 %v2777
        %v2811 = vpop.f32.mrf.mxu0
        %v2812 = vadd.f32 0.0, %v2811
        %v2813 = vpop.f32.mrf.mxu0
        %v2814 = vadd.f32 0.0, %v2813
        %2815 = vmatmul.bf16.gmra.mxu0 %v2780
        %v2816 = vpop.f32.mrf.mxu0
        %v2817 = vadd.f32 0.0, %v2816
        %v2818 = vpop.f32.mrf.mxu0
        %v2819 = vadd.f32 0.0, %v2818
        %2820 = vmatmul.bf16.gmra.mxu0 %v2783
        %v2821 = vpop.f32.mrf.mxu0
        %v2822 = vadd.f32 0.0, %v2821
        %v2823 = vpop.f32.mrf.mxu0
        %v2824 = vadd.f32 0.0, %v2823
        %2825 = vmatmul.bf16.gmra.mxu0 %v2786
        %v2826 = vpop.f32.mrf.mxu0
        %v2827 = vadd.f32 0.0, %v2826
        %v2828 = vpop.f32.mrf.mxu0
        %v2829 = vadd.f32 0.0, %v2828
        %2830 = vmatmul.bf16.gmra.mxu0 %v2789
        %v2831 = vpop.f32.mrf.mxu0
        %v2832 = vadd.f32 0.0, %v2831
        %v2833 = vpop.f32.mrf.mxu0
        %v2834 = vadd.f32 0.0, %v2833
        %2835 = vmatmul.bf16.gmra.mxu0 %v2792
        %v2836 = vpop.f32.mrf.mxu0
        %v2837 = vadd.f32 0.0, %v2836
        %v2838 = vpop.f32.mrf.mxu0
        %v2839 = vadd.f32 0.0, %v2838
        %2840 = vmatmul.bf16.gmra.mxu0 %v2795
        %v2841 = vpop.f32.mrf.mxu0
        %v2842 = vadd.f32 0.0, %v2841
        %v2843 = vpop.f32.mrf.mxu0
        %v2844 = vadd.f32 0.0, %v2843
        %2845 = vdwg.mxu0
        %v2846 = vadd.f32 %v2667, %v2807
        %v2847 = vadd.f32 %v2668, %v2809
        %v2848 = vadd.f32 %v2669, %v2812
        %v2849 = vadd.f32 %v2670, %v2814
        %v2850 = vadd.f32 %v2671, %v2817
        %v2851 = vadd.f32 %v2672, %v2819
        %v2852 = vadd.f32 %v2673, %v2822
        %v2853 = vadd.f32 %v2674, %v2824
        %v2854 = vadd.f32 %v2675, %v2827
        %v2855 = vadd.f32 %v2676, %v2829
        %v2856 = vadd.f32 %v2677, %v2832
        %v2857 = vadd.f32 %v2678, %v2834
        %v2858 = vadd.f32 %v2679, %v2837
        %v2859 = vadd.f32 %v2680, %v2839
        %v2860 = vadd.f32 %v2681, %v2842
        %v2861 = vadd.f32 %v2682, %v2844
        %v2862 = vld [vmem:[%s2683] sm:$0xf]
        %v2863 = vld [vmem:[%s2683 + $0x4] sm:$0x1]
        %v2864 = vld [vmem:[%s2683 + $0x8] sm:$0xf]
        %v2865 = vld [vmem:[%s2683 + $0xc] sm:$0x1]
        %v2866 = vld [vmem:[%s2683 + $0x10] sm:$0xf]
        %v2867 = vld [vmem:[%s2683 + $0x14] sm:$0x1]
        %v2868 = vld [vmem:[%s2683 + $0x18] sm:$0xf]
        %v2869 = vld [vmem:[%s2683 + $0x1c] sm:$0x1]
        %v2870 = vld [vmem:[%s2683 + $0x20] sm:$0xf]
        %v2871 = vld [vmem:[%s2683 + $0x24] sm:$0x1]
        %v2872 = vld [vmem:[%s2683 + $0x28] sm:$0xf]
        %v2873 = vld [vmem:[%s2683 + $0x2c] sm:$0x1]
        %v2874 = vld [vmem:[%s2683 + $0x30] sm:$0xf]
        %v2875 = vld [vmem:[%s2683 + $0x34] sm:$0x1]
        %v2876 = vld [vmem:[%s2683 + $0x38] sm:$0xf]
        %v2877 = vld [vmem:[%s2683 + $0x3c] sm:$0x1]
        %v2878 = vld [vmem:[%s2683 + $0x50] sm:$0xf]
        %v2879 = vld [vmem:[%s2683 + $0x54] sm:$0x1]
        %v2880 = vld [vmem:[%s2683 + $0x58] sm:$0xf]
        %v2881 = vld [vmem:[%s2683 + $0x5c] sm:$0x1]
        %v2882 = vld [vmem:[%s2683 + $0x60] sm:$0xf]
        %v2883 = vld [vmem:[%s2683 + $0x64] sm:$0x1]
        %v2884 = vld [vmem:[%s2683 + $0x68] sm:$0xf]
        %v2885 = vld [vmem:[%s2683 + $0x6c] sm:$0x1]
        %v2886 = vld [vmem:[%s2683 + $0x70] sm:$0xf]
        %v2887 = vld [vmem:[%s2683 + $0x74] sm:$0x1]
        %v2888 = vld [vmem:[%s2683 + $0x78] sm:$0xf]
        %v2889 = vld [vmem:[%s2683 + $0x7c] sm:$0x1]
        %v2890 = vld [vmem:[%s2683 + $0x80] sm:$0xf]
        %v2891 = vld [vmem:[%s2683 + $0x84] sm:$0x1]
        %v2892 = vld [vmem:[%s2683 + $0x88] sm:$0xf]
        %v2893 = vld [vmem:[%s2683 + $0x8c] sm:$0x1]
        %v2895 = vshrl.u32 %v2862, 16
        %v2897 = vrot.slane %v2895, 4
        %v2898 = vshll.u32 %v2862, 16
        %v2900 = vrot.slane %v2898, 5
        %v2901 = vor.u32 %v2897, %v2900
        %v2902 = vrot.slane %v2901, 4
        %v2904 = vshll.u32 %v2863, 16
        %v2906 = vrot.slane %v2904, 5
        %v2907 = vsel %vm1091, %v2902, %v2906
        %v2909 = vshrl.u32 %v2864, 16
        %v2911 = vrot.slane %v2909, 4
        %v2912 = vshll.u32 %v2864, 16
        %v2914 = vrot.slane %v2912, 5
        %v2915 = vor.u32 %v2911, %v2914
        %v2916 = vrot.slane %v2915, 4
        %v2918 = vshll.u32 %v2865, 16
        %v2920 = vrot.slane %v2918, 5
        %v2921 = vsel %vm1091, %v2916, %v2920
        %v2923 = vshrl.u32 %v2866, 16
        %v2925 = vrot.slane %v2923, 4
        %v2926 = vshll.u32 %v2866, 16
        %v2928 = vrot.slane %v2926, 5
        %v2929 = vor.u32 %v2925, %v2928
        %v2930 = vrot.slane %v2929, 4
        %v2932 = vshll.u32 %v2867, 16
        %v2934 = vrot.slane %v2932, 5
        %v2935 = vsel %vm1091, %v2930, %v2934
        %v2937 = vshrl.u32 %v2868, 16
        %v2939 = vrot.slane %v2937, 4
        %v2940 = vshll.u32 %v2868, 16
        %v2942 = vrot.slane %v2940, 5
        %v2943 = vor.u32 %v2939, %v2942
        %v2944 = vrot.slane %v2943, 4
        %v2946 = vshll.u32 %v2869, 16
        %v2948 = vrot.slane %v2946, 5
        %v2949 = vsel %vm1091, %v2944, %v2948
        %v2951 = vshrl.u32 %v2870, 16
        %v2953 = vrot.slane %v2951, 4
        %v2954 = vshll.u32 %v2870, 16
        %v2956 = vrot.slane %v2954, 5
        %v2957 = vor.u32 %v2953, %v2956
        %v2958 = vrot.slane %v2957, 4
        %v2960 = vshll.u32 %v2871, 16
        %v2962 = vrot.slane %v2960, 5
        %v2963 = vsel %vm1091, %v2958, %v2962
        %v2965 = vshrl.u32 %v2872, 16
        %v2967 = vrot.slane %v2965, 4
        %v2968 = vshll.u32 %v2872, 16
        %v2970 = vrot.slane %v2968, 5
        %v2971 = vor.u32 %v2967, %v2970
        %v2972 = vrot.slane %v2971, 4
        %v2974 = vshll.u32 %v2873, 16
        %v2976 = vrot.slane %v2974, 5
        %v2977 = vsel %vm1091, %v2972, %v2976
        %v2979 = vshrl.u32 %v2874, 16
        %v2981 = vrot.slane %v2979, 4
        %v2982 = vshll.u32 %v2874, 16
        %v2984 = vrot.slane %v2982, 5
        %v2985 = vor.u32 %v2981, %v2984
        %v2986 = vrot.slane %v2985, 4
        %v2988 = vshll.u32 %v2875, 16
        %v2990 = vrot.slane %v2988, 5
        %v2991 = vsel %vm1091, %v2986, %v2990
        %v2993 = vshrl.u32 %v2876, 16
        %v2995 = vrot.slane %v2993, 4
        %v2996 = vshll.u32 %v2876, 16
        %v2998 = vrot.slane %v2996, 5
        %v2999 = vor.u32 %v2995, %v2998
        %v3000 = vrot.slane %v2999, 4
        %v3002 = vshll.u32 %v2877, 16
        %v3004 = vrot.slane %v3002, 5
        %v3005 = vsel %vm1091, %v3000, %v3004
        %v3007 = vshrl.u32 %v2878, 16
        %v3009 = vrot.slane %v3007, 4
        %v3010 = vshll.u32 %v2878, 16
        %v3012 = vrot.slane %v3010, 5
        %v3013 = vor.u32 %v3009, %v3012
        %v3014 = vrot.slane %v3013, 4
        %v3016 = vshll.u32 %v2879, 16
        %v3018 = vrot.slane %v3016, 5
        %v3019 = vsel %vm1091, %v3014, %v3018
        %v3021 = vshrl.u32 %v2880, 16
        %v3023 = vrot.slane %v3021, 4
        %v3024 = vshll.u32 %v2880, 16
        %v3026 = vrot.slane %v3024, 5
        %v3027 = vor.u32 %v3023, %v3026
        %v3028 = vrot.slane %v3027, 4
        %v3030 = vshll.u32 %v2881, 16
        %v3032 = vrot.slane %v3030, 5
        %v3033 = vsel %vm1091, %v3028, %v3032
        %v3035 = vshrl.u32 %v2882, 16
        %v3037 = vrot.slane %v3035, 4
        %v3038 = vshll.u32 %v2882, 16
        %v3040 = vrot.slane %v3038, 5
        %v3041 = vor.u32 %v3037, %v3040
        %v3042 = vrot.slane %v3041, 4
        %v3044 = vshll.u32 %v2883, 16
        %v3046 = vrot.slane %v3044, 5
        %v3047 = vsel %vm1091, %v3042, %v3046
        %v3049 = vshrl.u32 %v2884, 16
        %v3051 = vrot.slane %v3049, 4
        %v3052 = vshll.u32 %v2884, 16
        %v3054 = vrot.slane %v3052, 5
        %v3055 = vor.u32 %v3051, %v3054
        %v3056 = vrot.slane %v3055, 4
        %v3058 = vshll.u32 %v2885, 16
        %v3060 = vrot.slane %v3058, 5
        %v3061 = vsel %vm1091, %v3056, %v3060
        %v3063 = vshrl.u32 %v2886, 16
        %v3065 = vrot.slane %v3063, 4
        %v3066 = vshll.u32 %v2886, 16
        %v3068 = vrot.slane %v3066, 5
        %v3069 = vor.u32 %v3065, %v3068
        %v3070 = vrot.slane %v3069, 4
        %v3072 = vshll.u32 %v2887, 16
        %v3074 = vrot.slane %v3072, 5
        %v3075 = vsel %vm1091, %v3070, %v3074
        %v3077 = vshrl.u32 %v2888, 16
        %v3079 = vrot.slane %v3077, 4
        %v3080 = vshll.u32 %v2888, 16
        %v3082 = vrot.slane %v3080, 5
        %v3083 = vor.u32 %v3079, %v3082
        %v3084 = vrot.slane %v3083, 4
        %v3086 = vshll.u32 %v2889, 16
        %v3088 = vrot.slane %v3086, 5
        %v3089 = vsel %vm1091, %v3084, %v3088
        %v3091 = vshrl.u32 %v2890, 16
        %v3093 = vrot.slane %v3091, 4
        %v3094 = vshll.u32 %v2890, 16
        %v3096 = vrot.slane %v3094, 5
        %v3097 = vor.u32 %v3093, %v3096
        %v3098 = vrot.slane %v3097, 4
        %v3100 = vshll.u32 %v2891, 16
        %v3102 = vrot.slane %v3100, 5
        %v3103 = vsel %vm1091, %v3098, %v3102
        %v3105 = vshrl.u32 %v2892, 16
        %v3107 = vrot.slane %v3105, 4
        %v3108 = vshll.u32 %v2892, 16
        %v3110 = vrot.slane %v3108, 5
        %v3111 = vor.u32 %v3107, %v3110
        %v3112 = vrot.slane %v3111, 4
        %v3114 = vshll.u32 %v2893, 16
        %v3116 = vrot.slane %v3114, 5
        %v3117 = vsel %vm1091, %v3112, %v3116
        %s3118 = scalar_lea.vmem [#allocation6], 224
        %v3119 = vld [vmem:[%s3118] sm:$0xf]
        %v3120 = vld [vmem:[%s3118 + $0x4] sm:$0xf]
        %v3121 = vld [vmem:[%s3118 + $0x8] sm:$0xf]
        %v3122 = vld [vmem:[%s3118 + $0xc] sm:$0xf]
        %v3123 = vld [vmem:[%s3118 + $0x10] sm:$0xf]
        %v3124 = vld [vmem:[%s3118 + $0x14] sm:$0xf]
        %v3125 = vld [vmem:[%s3118 + $0x18] sm:$0xf]
        %v3126 = vld [vmem:[%s3118 + $0x1c] sm:$0xf]
        %v3127 = vunpack.c.l.b16 %v2907
        %v3128 = vunpack.c.l.b16 %v2921
        %v3129 = vunpack.c.l.b16 %v2935
        %v3130 = vunpack.c.l.b16 %v2949
        %v3131 = vunpack.c.l.b16 %v2963
        %v3132 = vunpack.c.l.b16 %v2977
        %v3133 = vunpack.c.l.b16 %v2991
        %v3134 = vunpack.c.l.b16 %v3005
        %v3135 = vunpack.c.l.b16 %v3019
        %v3136 = vunpack.c.l.b16 %v3033
        %v3137 = vunpack.c.l.b16 %v3047
        %v3138 = vunpack.c.l.b16 %v3061
        %v3139 = vunpack.c.l.b16 %v3075
        %v3140 = vunpack.c.l.b16 %v3089
        %v3141 = vunpack.c.l.b16 %v3103
        %v3142 = vunpack.c.l.b16 %v3117
        %v3143 = vpack.c.b16 %v3128, %v3127
        %v3144 = vpack.c.b16 %v3130, %v3129
        %v3145 = vpack.c.b16 %v3132, %v3131
        %v3146 = vpack.c.b16 %v3134, %v3133
        %v3147 = vpack.c.b16 %v3136, %v3135
        %v3148 = vpack.c.b16 %v3138, %v3137
        %v3149 = vpack.c.b16 %v3140, %v3139
        %v3150 = vpack.c.b16 %v3142, %v3141
        %v3159 = vunpack.c.l.b16 %v3119
        %v3160 = vunpack.c.l.b16 %v3120
        %v3161 = vunpack.c.l.b16 %v3121
        %v3162 = vunpack.c.l.b16 %v3122
        %v3163 = vunpack.c.l.b16 %v3123
        %v3164 = vunpack.c.l.b16 %v3124
        %v3165 = vunpack.c.l.b16 %v3125
        %v3166 = vunpack.c.l.b16 %v3126
        %v3167 = vpack.c.b16 %v3160, %v3159
        %v3168 = vpack.c.b16 %v3162, %v3161
        %v3169 = vpack.c.b16 %v3164, %v3163
        %v3170 = vpack.c.b16 %v3166, %v3165
        %v3176 = vsel %vm1373, %v3143, 0
        %v3179 = vsel %vm1373, %v3144, 0
        %v3182 = vsel %vm1373, %v3145, 0
        %v3185 = vsel %vm1373, %v3146, 0
        %v3188 = vsel %vm1373, %v3147, 0
        %v3191 = vsel %vm1373, %v3148, 0
        %v3194 = vsel %vm1373, %v3149, 0
        %v3197 = vsel %vm1373, %v3150, 0
        %3199 = vmatpush.bf16.msra.mxu0 0
        %3200 = vmatpush.bf16.msra.mxu0 0
        %3201 = vmatpush.bf16.msra.mxu0 0
        %3202 = vmatpush.bf16.msra.mxu0 0
        %3203 = vmatpush.bf16.msra.mxu0 %v3170
        %3204 = vmatpush.bf16.msra.mxu0 %v3169
        %3205 = vmatpush.bf16.msra.mxu0 %v3168
        %3206 = vmatpush.bf16.msra.mxu0 %v3167
        %3207 = vmatmul.bf16.gmra.mxu0 %v3176
        %v3208 = vpop.f32.mrf.mxu0
        %v3209 = vadd.f32 0.0, %v3208
        %v3210 = vpop.f32.mrf.mxu0
        %v3211 = vadd.f32 0.0, %v3210
        %3212 = vmatmul.bf16.gmra.mxu0 %v3179
        %v3213 = vpop.f32.mrf.mxu0
        %v3214 = vadd.f32 0.0, %v3213
        %v3215 = vpop.f32.mrf.mxu0
        %v3216 = vadd.f32 0.0, %v3215
        %3217 = vmatmul.bf16.gmra.mxu0 %v3182
        %v3218 = vpop.f32.mrf.mxu0
        %v3219 = vadd.f32 0.0, %v3218
        %v3220 = vpop.f32.mrf.mxu0
        %v3221 = vadd.f32 0.0, %v3220
        %3222 = vmatmul.bf16.gmra.mxu0 %v3185
        %v3223 = vpop.f32.mrf.mxu0
        %v3224 = vadd.f32 0.0, %v3223
        %v3225 = vpop.f32.mrf.mxu0
        %v3226 = vadd.f32 0.0, %v3225
        %3227 = vmatmul.bf16.gmra.mxu0 %v3188
        %v3228 = vpop.f32.mrf.mxu0
        %v3229 = vadd.f32 0.0, %v3228
        %v3230 = vpop.f32.mrf.mxu0
        %v3231 = vadd.f32 0.0, %v3230
        %3232 = vmatmul.bf16.gmra.mxu0 %v3191
        %v3233 = vpop.f32.mrf.mxu0
        %v3234 = vadd.f32 0.0, %v3233
        %v3235 = vpop.f32.mrf.mxu0
        %v3236 = vadd.f32 0.0, %v3235
        %3237 = vmatmul.bf16.gmra.mxu0 %v3194
        %v3238 = vpop.f32.mrf.mxu0
        %v3239 = vadd.f32 0.0, %v3238
        %v3240 = vpop.f32.mrf.mxu0
        %v3241 = vadd.f32 0.0, %v3240
        %3242 = vmatmul.bf16.gmra.mxu0 %v3197
        %v3243 = vpop.f32.mrf.mxu0
        %v3244 = vadd.f32 0.0, %v3243
        %v3245 = vpop.f32.mrf.mxu0
        %v3246 = vadd.f32 0.0, %v3245
        %3247 = vdwg.mxu0
        %v3248 = vadd.f32 %v2846, %v3209
        %v3249 = vadd.f32 %v2847, %v3211
        %v3250 = vadd.f32 %v2848, %v3214
        %v3251 = vadd.f32 %v2849, %v3216
        %v3252 = vadd.f32 %v2850, %v3219
        %v3253 = vadd.f32 %v2851, %v3221
        %v3254 = vadd.f32 %v2852, %v3224
        %v3255 = vadd.f32 %v2853, %v3226
        %v3256 = vadd.f32 %v2854, %v3229
        %v3257 = vadd.f32 %v2855, %v3231
        %v3258 = vadd.f32 %v2856, %v3234
        %v3259 = vadd.f32 %v2857, %v3236
        %v3260 = vadd.f32 %v2858, %v3239
        %v3261 = vadd.f32 %v2859, %v3241
        %v3262 = vadd.f32 %v2860, %v3244
        %v3263 = vadd.f32 %v2861, %v3246
        %v3264 = vld [vmem:[%s2683] sm:$0xe]
        %v3265 = vld [vmem:[%s2683 + $0x8] sm:$0xe]
        %v3266 = vld [vmem:[%s2683 + $0x10] sm:$0xe]
        %v3267 = vld [vmem:[%s2683 + $0x18] sm:$0xe]
        %v3268 = vld [vmem:[%s2683 + $0x20] sm:$0xe]
        %v3269 = vld [vmem:[%s2683 + $0x28] sm:$0xe]
        %v3270 = vld [vmem:[%s2683 + $0x30] sm:$0xe]
        %v3271 = vld [vmem:[%s2683 + $0x38] sm:$0xe]
        %v3272 = vld [vmem:[%s2683 + $0x50] sm:$0xe]
        %v3273 = vld [vmem:[%s2683 + $0x58] sm:$0xe]
        %v3274 = vld [vmem:[%s2683 + $0x60] sm:$0xe]
        %v3275 = vld [vmem:[%s2683 + $0x68] sm:$0xe]
        %v3276 = vld [vmem:[%s2683 + $0x70] sm:$0xe]
        %v3277 = vld [vmem:[%s2683 + $0x78] sm:$0xe]
        %v3278 = vld [vmem:[%s2683 + $0x80] sm:$0xe]
        %v3279 = vld [vmem:[%s2683 + $0x88] sm:$0xe]
        %v3312 = vrot.slane %v3264, 5
        %v3313 = vrot.slane %v3312, 4
        %v3314 = vrot.slane %v2863, 5
        %v3315 = vsel %vm1634, %v3313, %v3314
        %v3316 = vrot.slane %v3265, 5
        %v3317 = vrot.slane %v3316, 4
        %v3318 = vrot.slane %v2865, 5
        %v3319 = vsel %vm1634, %v3317, %v3318
        %v3320 = vrot.slane %v3266, 5
        %v3321 = vrot.slane %v3320, 4
        %v3322 = vrot.slane %v2867, 5
        %v3323 = vsel %vm1634, %v3321, %v3322
        %v3324 = vrot.slane %v3267, 5
        %v3325 = vrot.slane %v3324, 4
        %v3326 = vrot.slane %v2869, 5
        %v3327 = vsel %vm1634, %v3325, %v3326
        %v3328 = vrot.slane %v3268, 5
        %v3329 = vrot.slane %v3328, 4
        %v3330 = vrot.slane %v2871, 5
        %v3331 = vsel %vm1634, %v3329, %v3330
        %v3332 = vrot.slane %v3269, 5
        %v3333 = vrot.slane %v3332, 4
        %v3334 = vrot.slane %v2873, 5
        %v3335 = vsel %vm1634, %v3333, %v3334
        %v3336 = vrot.slane %v3270, 5
        %v3337 = vrot.slane %v3336, 4
        %v3338 = vrot.slane %v2875, 5
        %v3339 = vsel %vm1634, %v3337, %v3338
        %v3340 = vrot.slane %v3271, 5
        %v3341 = vrot.slane %v3340, 4
        %v3342 = vrot.slane %v2877, 5
        %v3343 = vsel %vm1634, %v3341, %v3342
        %v3344 = vrot.slane %v3272, 5
        %v3345 = vrot.slane %v3344, 4
        %v3346 = vrot.slane %v2879, 5
        %v3347 = vsel %vm1634, %v3345, %v3346
        %v3348 = vrot.slane %v3273, 5
        %v3349 = vrot.slane %v3348, 4
        %v3350 = vrot.slane %v2881, 5
        %v3351 = vsel %vm1634, %v3349, %v3350
        %v3352 = vrot.slane %v3274, 5
        %v3353 = vrot.slane %v3352, 4
        %v3354 = vrot.slane %v2883, 5
        %v3355 = vsel %vm1634, %v3353, %v3354
        %v3356 = vrot.slane %v3275, 5
        %v3357 = vrot.slane %v3356, 4
        %v3358 = vrot.slane %v2885, 5
        %v3359 = vsel %vm1634, %v3357, %v3358
        %v3360 = vrot.slane %v3276, 5
        %v3361 = vrot.slane %v3360, 4
        %v3362 = vrot.slane %v2887, 5
        %v3363 = vsel %vm1634, %v3361, %v3362
        %v3364 = vrot.slane %v3277, 5
        %v3365 = vrot.slane %v3364, 4
        %v3366 = vrot.slane %v2889, 5
        %v3367 = vsel %vm1634, %v3365, %v3366
        %v3368 = vrot.slane %v3278, 5
        %v3369 = vrot.slane %v3368, 4
        %v3370 = vrot.slane %v2891, 5
        %v3371 = vsel %vm1634, %v3369, %v3370
        %v3372 = vrot.slane %v3279, 5
        %v3373 = vrot.slane %v3372, 4
        %v3374 = vrot.slane %v2893, 5
        %v3375 = vsel %vm1634, %v3373, %v3374
        %s3376 = scalar_lea.vmem [#allocation6], 256
        %v3377 = vld [vmem:[%s3376] sm:$0xf]
        %v3378 = vld [vmem:[%s3376 + $0x4] sm:$0xf]
        %v3379 = vld [vmem:[%s3376 + $0x8] sm:$0xf]
        %v3380 = vld [vmem:[%s3376 + $0xc] sm:$0xf]
        %v3381 = vld [vmem:[%s3376 + $0x10] sm:$0xf]
        %v3382 = vld [vmem:[%s3376 + $0x14] sm:$0xf]
        %v3383 = vld [vmem:[%s3376 + $0x18] sm:$0xf]
        %v3384 = vld [vmem:[%s3376 + $0x1c] sm:$0xf]
        %v3385 = vunpack.c.l.b16 %v3315
        %v3386 = vunpack.c.l.b16 %v3319
        %v3387 = vunpack.c.l.b16 %v3323
        %v3388 = vunpack.c.l.b16 %v3327
        %v3389 = vunpack.c.l.b16 %v3331
        %v3390 = vunpack.c.l.b16 %v3335
        %v3391 = vunpack.c.l.b16 %v3339
        %v3392 = vunpack.c.l.b16 %v3343
        %v3393 = vunpack.c.l.b16 %v3347
        %v3394 = vunpack.c.l.b16 %v3351
        %v3395 = vunpack.c.l.b16 %v3355
        %v3396 = vunpack.c.l.b16 %v3359
        %v3397 = vunpack.c.l.b16 %v3363
        %v3398 = vunpack.c.l.b16 %v3367
        %v3399 = vunpack.c.l.b16 %v3371
        %v3400 = vunpack.c.l.b16 %v3375
        %v3401 = vpack.c.b16 %v3386, %v3385
        %v3402 = vpack.c.b16 %v3388, %v3387
        %v3403 = vpack.c.b16 %v3390, %v3389
        %v3404 = vpack.c.b16 %v3392, %v3391
        %v3405 = vpack.c.b16 %v3394, %v3393
        %v3406 = vpack.c.b16 %v3396, %v3395
        %v3407 = vpack.c.b16 %v3398, %v3397
        %v3408 = vpack.c.b16 %v3400, %v3399
        %v3417 = vunpack.c.l.b16 %v3377
        %v3418 = vunpack.c.l.b16 %v3378
        %v3419 = vunpack.c.l.b16 %v3379
        %v3420 = vunpack.c.l.b16 %v3380
        %v3421 = vunpack.c.l.b16 %v3381
        %v3422 = vunpack.c.l.b16 %v3382
        %v3423 = vunpack.c.l.b16 %v3383
        %v3424 = vunpack.c.l.b16 %v3384
        %v3425 = vpack.c.b16 %v3418, %v3417
        %v3426 = vpack.c.b16 %v3420, %v3419
        %v3427 = vpack.c.b16 %v3422, %v3421
        %v3428 = vpack.c.b16 %v3424, %v3423
        %v3434 = vsel %vm1373, %v3401, 0
        %v3437 = vsel %vm1373, %v3402, 0
        %v3440 = vsel %vm1373, %v3403, 0
        %v3443 = vsel %vm1373, %v3404, 0
        %v3446 = vsel %vm1373, %v3405, 0
        %v3449 = vsel %vm1373, %v3406, 0
        %v3452 = vsel %vm1373, %v3407, 0
        %v3455 = vsel %vm1373, %v3408, 0
        %3457 = vmatpush.bf16.msra.mxu0 0
        %3458 = vmatpush.bf16.msra.mxu0 0
        %3459 = vmatpush.bf16.msra.mxu0 0
        %3460 = vmatpush.bf16.msra.mxu0 0
        %3461 = vmatpush.bf16.msra.mxu0 %v3428
        %3462 = vmatpush.bf16.msra.mxu0 %v3427
        %3463 = vmatpush.bf16.msra.mxu0 %v3426
        %3464 = vmatpush.bf16.msra.mxu0 %v3425
        %3465 = vmatmul.bf16.gmra.mxu0 %v3434
        %v3466 = vpop.f32.mrf.mxu0
        %v3467 = vadd.f32 0.0, %v3466
        %v3468 = vpop.f32.mrf.mxu0
        %v3469 = vadd.f32 0.0, %v3468
        %3470 = vmatmul.bf16.gmra.mxu0 %v3437
        %v3471 = vpop.f32.mrf.mxu0
        %v3472 = vadd.f32 0.0, %v3471
        %v3473 = vpop.f32.mrf.mxu0
        %v3474 = vadd.f32 0.0, %v3473
        %3475 = vmatmul.bf16.gmra.mxu0 %v3440
        %v3476 = vpop.f32.mrf.mxu0
        %v3477 = vadd.f32 0.0, %v3476
        %v3478 = vpop.f32.mrf.mxu0
        %v3479 = vadd.f32 0.0, %v3478
        %3480 = vmatmul.bf16.gmra.mxu0 %v3443
        %v3481 = vpop.f32.mrf.mxu0
        %v3482 = vadd.f32 0.0, %v3481
        %v3483 = vpop.f32.mrf.mxu0
        %v3484 = vadd.f32 0.0, %v3483
        %3485 = vmatmul.bf16.gmra.mxu0 %v3446
        %v3486 = vpop.f32.mrf.mxu0
        %v3487 = vadd.f32 0.0, %v3486
        %v3488 = vpop.f32.mrf.mxu0
        %v3489 = vadd.f32 0.0, %v3488
        %3490 = vmatmul.bf16.gmra.mxu0 %v3449
        %v3491 = vpop.f32.mrf.mxu0
        %v3492 = vadd.f32 0.0, %v3491
        %v3493 = vpop.f32.mrf.mxu0
        %v3494 = vadd.f32 0.0, %v3493
        %3495 = vmatmul.bf16.gmra.mxu0 %v3452
        %v3496 = vpop.f32.mrf.mxu0
        %v3497 = vadd.f32 0.0, %v3496
        %v3498 = vpop.f32.mrf.mxu0
        %v3499 = vadd.f32 0.0, %v3498
        %3500 = vmatmul.bf16.gmra.mxu0 %v3455
        %v3501 = vpop.f32.mrf.mxu0
        %v3502 = vadd.f32 0.0, %v3501
        %v3503 = vpop.f32.mrf.mxu0
        %v3504 = vadd.f32 0.0, %v3503
        %3505 = vdwg.mxu0
        %v3506 = vadd.f32 %v3248, %v3467
        %v3507 = vadd.f32 %v3249, %v3469
        %v3508 = vadd.f32 %v3250, %v3472
        %v3509 = vadd.f32 %v3251, %v3474
        %v3510 = vadd.f32 %v3252, %v3477
        %v3511 = vadd.f32 %v3253, %v3479
        %v3512 = vadd.f32 %v3254, %v3482
        %v3513 = vadd.f32 %v3255, %v3484
        %v3514 = vadd.f32 %v3256, %v3487
        %v3515 = vadd.f32 %v3257, %v3489
        %v3516 = vadd.f32 %v3258, %v3492
        %v3517 = vadd.f32 %v3259, %v3494
        %v3518 = vadd.f32 %v3260, %v3497
        %v3519 = vadd.f32 %v3261, %v3499
        %v3520 = vadd.f32 %v3262, %v3502
        %v3521 = vadd.f32 %v3263, %v3504
        %v3522 = vld [vmem:[%s4] sm:$0x1]
        %v3524 = vperm.slane %v3522, 0
        %v3526 = vadd.f32 %v3506, %v3524
        %v3527 = vadd.f32 %v3507, %v3524
        %v3528 = vadd.f32 %v3508, %v3524
        %v3529 = vadd.f32 %v3509, %v3524
        %v3530 = vadd.f32 %v3510, %v3524
        %v3531 = vadd.f32 %v3511, %v3524
        %v3532 = vadd.f32 %v3512, %v3524
        %v3533 = vadd.f32 %v3513, %v3524
        %v3534 = vadd.f32 %v3514, %v3524
        %v3535 = vadd.f32 %v3515, %v3524
        %v3536 = vadd.f32 %v3516, %v3524
        %v3537 = vadd.f32 %v3517, %v3524
        %v3538 = vadd.f32 %v3518, %v3524
        %v3539 = vadd.f32 %v3519, %v3524
        %v3540 = vadd.f32 %v3520, %v3524
        %v3541 = vadd.f32 %v3521, %v3524
        %v3542 = vmax.f32 %v3526, 0.0
        %v3543 = vmax.f32 %v3527, 0.0
        %v3544 = vmax.f32 %v3528, 0.0
        %v3545 = vmax.f32 %v3529, 0.0
        %v3546 = vmax.f32 %v3530, 0.0
        %v3547 = vmax.f32 %v3531, 0.0
        %v3548 = vmax.f32 %v3532, 0.0
        %v3549 = vmax.f32 %v3533, 0.0
        %v3550 = vmax.f32 %v3534, 0.0
        %v3551 = vmax.f32 %v3535, 0.0
        %v3552 = vmax.f32 %v3536, 0.0
        %v3553 = vmax.f32 %v3537, 0.0
        %v3554 = vmax.f32 %v3538, 0.0
        %v3555 = vmax.f32 %v3539, 0.0
        %v3556 = vmax.f32 %v3540, 0.0
        %v3557 = vmax.f32 %v3541, 0.0
        %v3558 = vpack.c.bf16 %v3543, %v3542
        %v3559 = vpack.c.bf16 %v3545, %v3544
        %v3560 = vpack.c.bf16 %v3547, %v3546
        %v3561 = vpack.c.bf16 %v3549, %v3548
        %v3562 = vpack.c.bf16 %v3551, %v3550
        %v3563 = vpack.c.bf16 %v3553, %v3552
        %v3564 = vpack.c.bf16 %v3555, %v3554
        %v3565 = vpack.c.bf16 %v3557, %v3556
        %v3566 = vld [vmem:[%s5] sm:$0xff]
        %v3567 = vld [vmem:[%s5 + $0x8] sm:$0xff]
        %v3568 = vld [vmem:[%s5 + $0x10] sm:$0xff]
        %v3569 = vld [vmem:[%s5 + $0x18] sm:$0xff]
        %v3570 = vld [vmem:[%s5 + $0x20] sm:$0xff]
        %v3571 = vld [vmem:[%s5 + $0x28] sm:$0xff]
        %v3572 = vld [vmem:[%s5 + $0x30] sm:$0xff]
        %v3573 = vld [vmem:[%s5 + $0x38] sm:$0xff]
        %v3574 = vld [vmem:[%s280] sm:$0xff]
        %v3575 = vld [vmem:[%s280 + $0x8] sm:$0xff]
        %v3576 = vld [vmem:[%s280 + $0x10] sm:$0xff]
        %v3577 = vld [vmem:[%s280 + $0x18] sm:$0xff]
        %v3578 = vld [vmem:[%s280 + $0x20] sm:$0xff]
        %v3579 = vld [vmem:[%s280 + $0x28] sm:$0xff]
        %v3580 = vld [vmem:[%s280 + $0x30] sm:$0xff]
        %v3581 = vld [vmem:[%s280 + $0x38] sm:$0xff]
        %v3582 = vld [vmem:[%s280 + $0x40] sm:$0xff]
        %v3583 = vld [vmem:[%s280 + $0x48] sm:$0xff]
        %v3584 = vld [vmem:[%s280 + $0x50] sm:$0xff]
        %v3585 = vld [vmem:[%s280 + $0x58] sm:$0xff]
        %v3586 = vld [vmem:[%s280 + $0x60] sm:$0xff]
        %v3587 = vld [vmem:[%s280 + $0x68] sm:$0xff]
        %v3588 = vld [vmem:[%s280 + $0x70] sm:$0xff]
        %v3589 = vld [vmem:[%s280 + $0x78] sm:$0xff]
        %v3590 = vunpack.c.l.bf16 %v3574
        %v3591 = vunpack.c.h.bf16 %v3574
        %v3592 = vunpack.c.l.bf16 %v3575
        %v3593 = vunpack.c.h.bf16 %v3575
        %v3594 = vunpack.c.l.bf16 %v3576
        %v3595 = vunpack.c.h.bf16 %v3576
        %v3596 = vunpack.c.l.bf16 %v3577
        %v3597 = vunpack.c.h.bf16 %v3577
        %v3598 = vunpack.c.l.bf16 %v3578
        %v3599 = vunpack.c.h.bf16 %v3578
        %v3600 = vunpack.c.l.bf16 %v3579
        %v3601 = vunpack.c.h.bf16 %v3579
        %v3602 = vunpack.c.l.bf16 %v3580
        %v3603 = vunpack.c.h.bf16 %v3580
        %v3604 = vunpack.c.l.bf16 %v3581
        %v3605 = vunpack.c.h.bf16 %v3581
        %v3606 = vunpack.c.l.bf16 %v3582
        %v3607 = vunpack.c.h.bf16 %v3582
        %v3608 = vunpack.c.l.bf16 %v3583
        %v3609 = vunpack.c.h.bf16 %v3583
        %v3610 = vunpack.c.l.bf16 %v3584
        %v3611 = vunpack.c.h.bf16 %v3584
        %v3612 = vunpack.c.l.bf16 %v3585
        %v3613 = vunpack.c.h.bf16 %v3585
        %v3614 = vunpack.c.l.bf16 %v3586
        %v3615 = vunpack.c.h.bf16 %v3586
        %v3616 = vunpack.c.l.bf16 %v3587
        %v3617 = vunpack.c.h.bf16 %v3587
        %v3618 = vunpack.c.l.bf16 %v3588
        %v3619 = vunpack.c.h.bf16 %v3588
        %v3620 = vunpack.c.l.bf16 %v3589
        %v3621 = vunpack.c.h.bf16 %v3589
        %v3622 = vld [vmem:[%s6] sm:$0x3]
        %v3624 = vperm.slane %v3622, 0
        %v3625 = vperm.slane %v3622, 1
        %v3636 = vunpack.c.l.b16 %v3566
        %v3637 = vunpack.c.h.b16 %v3566
        %v3638 = vunpack.c.l.b16 %v3567
        %v3639 = vunpack.c.h.b16 %v3567
        %v3640 = vunpack.c.l.b16 %v3568
        %v3641 = vunpack.c.h.b16 %v3568
        %v3642 = vunpack.c.l.b16 %v3569
        %v3643 = vunpack.c.h.b16 %v3569
        %v3644 = vunpack.c.l.b16 %v3570
        %v3645 = vunpack.c.h.b16 %v3570
        %v3646 = vunpack.c.l.b16 %v3571
        %v3647 = vunpack.c.h.b16 %v3571
        %v3648 = vunpack.c.l.b16 %v3572
        %v3649 = vunpack.c.h.b16 %v3572
        %v3650 = vunpack.c.l.b16 %v3573
        %v3651 = vunpack.c.h.b16 %v3573
        %v3652 = vpack.c.b16 %v3638, %v3636
        %v3653 = vpack.c.b16 %v3639, %v3637
        %v3654 = vpack.c.b16 %v3642, %v3640
        %v3655 = vpack.c.b16 %v3643, %v3641
        %v3656 = vpack.c.b16 %v3646, %v3644
        %v3657 = vpack.c.b16 %v3647, %v3645
        %v3658 = vpack.c.b16 %v3650, %v3648
        %v3659 = vpack.c.b16 %v3651, %v3649
        %v3669 = vsel %vm1373, %v3558, 0
        %v3672 = vsel %vm1373, %v3559, 0
        %v3675 = vsel %vm1373, %v3560, 0
        %v3678 = vsel %vm1373, %v3561, 0
        %v3681 = vsel %vm1373, %v3562, 0
        %v3684 = vsel %vm1373, %v3563, 0
        %v3687 = vsel %vm1373, %v3564, 0
        %v3690 = vsel %vm1373, %v3565, 0
        %3692 = vmatpush.bf16.msra.mxu0 0
        %3693 = vmatpush.bf16.msra.mxu0 0
        %3694 = vmatpush.bf16.msra.mxu0 0
        %3695 = vmatpush.bf16.msra.mxu0 0
        %3696 = vmatpush.bf16.msra.mxu0 %v3658
        %3697 = vmatpush.bf16.msra.mxu0 %v3656
        %3698 = vmatpush.bf16.msra.mxu0 %v3654
        %3699 = vmatpush.bf16.msra.mxu0 %v3652
        %3700 = vmatmul.bf16.gmra.mxu0 %v3669
        %v3701 = vpop.f32.mrf.mxu0
        %v3702 = vadd.f32 %v3624, %v3701
        %v3703 = vpop.f32.mrf.mxu0
        %v3704 = vadd.f32 %v3624, %v3703
        %3705 = vmatmul.bf16.gmra.mxu0 %v3672
        %v3706 = vpop.f32.mrf.mxu0
        %v3707 = vadd.f32 %v3624, %v3706
        %v3708 = vpop.f32.mrf.mxu0
        %v3709 = vadd.f32 %v3624, %v3708
        %3710 = vmatmul.bf16.gmra.mxu0 %v3675
        %v3711 = vpop.f32.mrf.mxu0
        %v3712 = vadd.f32 %v3624, %v3711
        %v3713 = vpop.f32.mrf.mxu0
        %v3714 = vadd.f32 %v3624, %v3713
        %3715 = vmatmul.bf16.gmra.mxu0 %v3678
        %v3716 = vpop.f32.mrf.mxu0
        %v3717 = vadd.f32 %v3624, %v3716
        %v3718 = vpop.f32.mrf.mxu0
        %v3719 = vadd.f32 %v3624, %v3718
        %3720 = vmatmul.bf16.gmra.mxu0 %v3681
        %v3721 = vpop.f32.mrf.mxu0
        %v3722 = vadd.f32 %v3624, %v3721
        %v3723 = vpop.f32.mrf.mxu0
        %v3724 = vadd.f32 %v3624, %v3723
        %3725 = vmatmul.bf16.gmra.mxu0 %v3684
        %v3726 = vpop.f32.mrf.mxu0
        %v3727 = vadd.f32 %v3624, %v3726
        %v3728 = vpop.f32.mrf.mxu0
        %v3729 = vadd.f32 %v3624, %v3728
        %3730 = vmatmul.bf16.gmra.mxu0 %v3687
        %v3731 = vpop.f32.mrf.mxu0
        %v3732 = vadd.f32 %v3624, %v3731
        %v3733 = vpop.f32.mrf.mxu0
        %v3734 = vadd.f32 %v3624, %v3733
        %3735 = vmatmul.bf16.gmra.mxu0 %v3690
        %v3736 = vpop.f32.mrf.mxu0
        %v3737 = vadd.f32 %v3624, %v3736
        %v3738 = vpop.f32.mrf.mxu0
        %v3739 = vadd.f32 %v3624, %v3738
        %3740 = vdwg.mxu0
        %3741 = vmatpush.bf16.msra.mxu0 0
        %3742 = vmatpush.bf16.msra.mxu0 0
        %3743 = vmatpush.bf16.msra.mxu0 0
        %3744 = vmatpush.bf16.msra.mxu0 0
        %3745 = vmatpush.bf16.msra.mxu0 %v3659
        %3746 = vmatpush.bf16.msra.mxu0 %v3657
        %3747 = vmatpush.bf16.msra.mxu0 %v3655
        %3748 = vmatpush.bf16.msra.mxu0 %v3653
        %3749 = vmatmul.bf16.gmra.mxu0 %v3669
        %v3750 = vpop.f32.mrf.mxu0
        %v3751 = vadd.f32 %v3625, %v3750
        %v3752 = vpop.f32.mrf.mxu0
        %v3753 = vadd.f32 %v3625, %v3752
        %3754 = vmatmul.bf16.gmra.mxu0 %v3672
        %v3755 = vpop.f32.mrf.mxu0
        %v3756 = vadd.f32 %v3625, %v3755
        %v3757 = vpop.f32.mrf.mxu0
        %v3758 = vadd.f32 %v3625, %v3757
        %3759 = vmatmul.bf16.gmra.mxu0 %v3675
        %v3760 = vpop.f32.mrf.mxu0
        %v3761 = vadd.f32 %v3625, %v3760
        %v3762 = vpop.f32.mrf.mxu0
        %v3763 = vadd.f32 %v3625, %v3762
        %3764 = vmatmul.bf16.gmra.mxu0 %v3678
        %v3765 = vpop.f32.mrf.mxu0
        %v3766 = vadd.f32 %v3625, %v3765
        %v3767 = vpop.f32.mrf.mxu0
        %v3768 = vadd.f32 %v3625, %v3767
        %3769 = vmatmul.bf16.gmra.mxu0 %v3681
        %v3770 = vpop.f32.mrf.mxu0
        %v3771 = vadd.f32 %v3625, %v3770
        %v3772 = vpop.f32.mrf.mxu0
        %v3773 = vadd.f32 %v3625, %v3772
        %3774 = vmatmul.bf16.gmra.mxu0 %v3684
        %v3775 = vpop.f32.mrf.mxu0
        %v3776 = vadd.f32 %v3625, %v3775
        %v3777 = vpop.f32.mrf.mxu0
        %v3778 = vadd.f32 %v3625, %v3777
        %3779 = vmatmul.bf16.gmra.mxu0 %v3687
        %v3780 = vpop.f32.mrf.mxu0
        %v3781 = vadd.f32 %v3625, %v3780
        %v3782 = vpop.f32.mrf.mxu0
        %v3783 = vadd.f32 %v3625, %v3782
        %3784 = vmatmul.bf16.gmra.mxu0 %v3690
        %v3785 = vpop.f32.mrf.mxu0
        %v3786 = vadd.f32 %v3625, %v3785
        %v3787 = vpop.f32.mrf.mxu0
        %v3788 = vadd.f32 %v3625, %v3787
        %3789 = vdwg.mxu0
        %v3790 = vadd.f32 %v3702, %v3590
        %v3791 = vadd.f32 %v3751, %v3591
        %v3792 = vadd.f32 %v3704, %v3592
        %v3793 = vadd.f32 %v3753, %v3593
        %v3794 = vadd.f32 %v3707, %v3594
        %v3795 = vadd.f32 %v3756, %v3595
        %v3796 = vadd.f32 %v3709, %v3596
        %v3797 = vadd.f32 %v3758, %v3597
        %v3798 = vadd.f32 %v3712, %v3598
        %v3799 = vadd.f32 %v3761, %v3599
        %v3800 = vadd.f32 %v3714, %v3600
        %v3801 = vadd.f32 %v3763, %v3601
        %v3802 = vadd.f32 %v3717, %v3602
        %v3803 = vadd.f32 %v3766, %v3603
        %v3804 = vadd.f32 %v3719, %v3604
        %v3805 = vadd.f32 %v3768, %v3605
        %v3806 = vadd.f32 %v3722, %v3606
        %v3807 = vadd.f32 %v3771, %v3607
        %v3808 = vadd.f32 %v3724, %v3608
        %v3809 = vadd.f32 %v3773, %v3609
        %v3810 = vadd.f32 %v3727, %v3610
        %v3811 = vadd.f32 %v3776, %v3611
        %v3812 = vadd.f32 %v3729, %v3612
        %v3813 = vadd.f32 %v3778, %v3613
        %v3814 = vadd.f32 %v3732, %v3614
        %v3815 = vadd.f32 %v3781, %v3615
        %v3816 = vadd.f32 %v3734, %v3616
        %v3817 = vadd.f32 %v3783, %v3617
        %v3818 = vadd.f32 %v3737, %v3618
        %v3819 = vadd.f32 %v3786, %v3619
        %v3820 = vadd.f32 %v3739, %v3620
        %v3821 = vadd.f32 %v3788, %v3621
        %v3822 = vmax.f32 %v3790, 0.0
        %v3823 = vmax.f32 %v3791, 0.0
        %v3824 = vmax.f32 %v3792, 0.0
        %v3825 = vmax.f32 %v3793, 0.0
        %v3826 = vmax.f32 %v3794, 0.0
        %v3827 = vmax.f32 %v3795, 0.0
        %v3828 = vmax.f32 %v3796, 0.0
        %v3829 = vmax.f32 %v3797, 0.0
        %v3830 = vmax.f32 %v3798, 0.0
        %v3831 = vmax.f32 %v3799, 0.0
        %v3832 = vmax.f32 %v3800, 0.0
        %v3833 = vmax.f32 %v3801, 0.0
        %v3834 = vmax.f32 %v3802, 0.0
        %v3835 = vmax.f32 %v3803, 0.0
        %v3836 = vmax.f32 %v3804, 0.0
        %v3837 = vmax.f32 %v3805, 0.0
        %v3838 = vmax.f32 %v3806, 0.0
        %v3839 = vmax.f32 %v3807, 0.0
        %v3840 = vmax.f32 %v3808, 0.0
        %v3841 = vmax.f32 %v3809, 0.0
        %v3842 = vmax.f32 %v3810, 0.0
        %v3843 = vmax.f32 %v3811, 0.0
        %v3844 = vmax.f32 %v3812, 0.0
        %v3845 = vmax.f32 %v3813, 0.0
        %v3846 = vmax.f32 %v3814, 0.0
        %v3847 = vmax.f32 %v3815, 0.0
        %v3848 = vmax.f32 %v3816, 0.0
        %v3849 = vmax.f32 %v3817, 0.0
        %v3850 = vmax.f32 %v3818, 0.0
        %v3851 = vmax.f32 %v3819, 0.0
        %v3852 = vmax.f32 %v3820, 0.0
        %v3853 = vmax.f32 %v3821, 0.0
        %v3854 = vpack.c.bf16 %v3823, %v3822
        %v3855 = vpack.c.bf16 %v3825, %v3824
        %v3856 = vpack.c.bf16 %v3827, %v3826
        %v3857 = vpack.c.bf16 %v3829, %v3828
        %v3858 = vpack.c.bf16 %v3831, %v3830
        %v3859 = vpack.c.bf16 %v3833, %v3832
        %v3860 = vpack.c.bf16 %v3835, %v3834
        %v3861 = vpack.c.bf16 %v3837, %v3836
        %v3862 = vpack.c.bf16 %v3839, %v3838
        %v3863 = vpack.c.bf16 %v3841, %v3840
        %v3864 = vpack.c.bf16 %v3843, %v3842
        %v3865 = vpack.c.bf16 %v3845, %v3844
        %v3866 = vpack.c.bf16 %v3847, %v3846
        %v3867 = vpack.c.bf16 %v3849, %v3848
        %v3868 = vpack.c.bf16 %v3851, %v3850
        %v3869 = vpack.c.bf16 %v3853, %v3852
        %3870 = vst [vmem:[%s316] sm:$0xff] %v3854
        %3871 = vst [vmem:[%s316 + $0x8] sm:$0xff] %v3855
        %3872 = vst [vmem:[%s316 + $0x10] sm:$0xff] %v3856
        %3873 = vst [vmem:[%s316 + $0x18] sm:$0xff] %v3857
        %3874 = vst [vmem:[%s316 + $0x20] sm:$0xff] %v3858
        %3875 = vst [vmem:[%s316 + $0x28] sm:$0xff] %v3859
        %3876 = vst [vmem:[%s316 + $0x30] sm:$0xff] %v3860
        %3877 = vst [vmem:[%s316 + $0x38] sm:$0xff] %v3861
        %3878 = vst [vmem:[%s316 + $0x40] sm:$0xff] %v3862
        %3879 = vst [vmem:[%s316 + $0x48] sm:$0xff] %v3863
        %3880 = vst [vmem:[%s316 + $0x50] sm:$0xff] %v3864
        %3881 = vst [vmem:[%s316 + $0x58] sm:$0xff] %v3865
        %3882 = vst [vmem:[%s316 + $0x60] sm:$0xff] %v3866
        %3883 = vst [vmem:[%s316 + $0x68] sm:$0xff] %v3867
        %3884 = vst [vmem:[%s316 + $0x70] sm:$0xff] %v3868
        %3885 = vst [vmem:[%s316 + $0x78] sm:$0xff] %v3869
        %s3886 = sand.u32 %s185, 1
        %s3887 = scalar_lea.sflag [#allocation5], %s3886
        %s3888 = sand.u32 %s185, 1
        %s3889 = smul.addr %s3888, 128
        %s3890 = scalar_lea.vmem [#allocation8], %s3889
        // Predicated region
        $region57: #{tpu_custom_call.1} parent=47 // pred_check
          %p3891 = pneg %p195
        $region58: #{tpu_custom_call.1} parent=47 // pred_check_branch
          %3893 = sbr.rel (%p3891) target = $region60
        $region59: #{tpu_custom_call.1} parent=47 // pred_region
          %s3894 = smul.u32 2, %s25
          %3896 = vsyncadd %s3887, 0
          %s3897 = smul.addr %s3894, 16
          %s3898 = smul.addr %s3897, 4
          %s3899 = scalar_lea.hbm %s7, %s3898
          %s3900 = sshll.u32 %s3890, 4
          %s3901 = int_to_ptr.vmem [resolvable:$true] %s3900
          %s3902 = sshll.u32 %s3899, 4
          %s3903 = int_to_ptr.hbm [resolvable:$true] %s3902
          %3908 = dma.vmem_to_hbm [thread:$0]  %s3901, 2048, %s3903, %s3887, 128, 128, 8
        $region60: #{tpu_custom_call.1} parent=47 // pred_fallthru
          _
      $region48: #{tpu_custom_call.1} parent=5 // pred_fallthru
        _
      %p3909 = scmp.le.s32.totalorder 2, %s20
      // Predicated region
      $region61: #{tpu_custom_call.1} parent=5 // pred_check
        %p3910 = pneg %p3909
      $region62: #{tpu_custom_call.1} parent=5 // pred_check_branch
        %3912 = sbr.rel (%p3910) target = $region64
      $region63: #{tpu_custom_call.1} parent=5 // pred_region
        %s3913 = ssub.s32 %s20, 2
        // Predicated region
        $region65: #{tpu_custom_call.1} parent=63 // pred_check
          %p3914 = pneg %p201
        $region66: #{tpu_custom_call.1} parent=63 // pred_check_branch
          %3916 = sbr.rel (%p3914) target = $region68
        $region67: #{tpu_custom_call.1} parent=63 // pred_region
          %s3917 = sand.u32 %s186, 1
          %s3918 = scalar_lea.sflag [#allocation5], %s3917
          %s3919 = sand.u32 %s186, 1
          %s3920 = smul.addr %s3919, 128
          %s3921 = scalar_lea.vmem [#allocation8], %s3920
          %3923 = dma.done %s3918, 2048
        $region68: #{tpu_custom_call.1} parent=63 // pred_fallthru
          _
      $region64: #{tpu_custom_call.1} parent=5 // pred_fallthru
        _
    $region6: #{tpu_custom_call.1} parent=1 // loop_footer
      %s24 = sadd.s32 1, %s20
    $region7: #{tpu_custom_call.1} parent=1 // loop_footer_branch
      %19 = sbr.rel target = $region3
    $region8: #{tpu_custom_call.1} parent=1 // loop_exit
      _
    %3924 = vsyncpa [#allocation4], 1
    %s3925 = scalar_lea.sflag [#allocation4], 1
    %3926 = vsyncpa %s3925, 1
    %3927 = vsyncpa [#allocation7], 1
    %3928 = vsyncpa [#allocation5], 1
    %s3929 = scalar_lea.sflag [#allocation5], 1
    %3930 = vsyncpa %s3929, 1

</llo_original>
